<compile_context>
chip_gen: v7x
topology: tpu7x:2x2x1
jax: 0.10.0
libtpu: 0.0.40
codegen_flags: <defaults>
</compile_context>

<pallas_src>
import math

import numpy as np
import jax
import jax.numpy as jnp
from jax import lax
from jax.experimental import pallas as pl
from jax.experimental.pallas import tpu as pltpu

# ----------------------------------------------------------------------------
# Static architecture constants for this config
# ----------------------------------------------------------------------------
N = 2              # batch
T_IN = 16          # input time steps
F_IN = 16          # input freq bins (== rnn_input_size before conv)
C0, C1 = 8, 8      # conv output channels
T_OUT = 8          # time steps after conv layer 0 (stride 2 in H)
W_OUT = 8          # freq bins after the conv stack
HID = 32           # RNN hidden size per direction
FEAT = C1 * W_OUT  # 64 = RNN layer-0 input size (C*W)
NDIR_H = 2 * HID   # 64 = bidirectional feature width
ROWS = T_OUT * N   # 16 = flattened (t, n) rows
BN_EPS = 1e-5


# ----------------------------------------------------------------------------
# The fused encoder kernel
# ----------------------------------------------------------------------------
def _encoder_kernel(x_ref, l0_ref, b0_ref, l1_ref, b1_ref, pm_ref, vec_ref,
                    r_ref, rnn0_ref, rnn1_ref, o_ref, hbuf_ref):
    f32 = jnp.float32

    def dot(a, b):
        return jnp.dot(a, b, preferred_element_type=f32)

    def conv_bn_relu(xin, l_ref, b_ref, bias, gamma, beta, pmat):
        # conv as sum_i (L_i @ X) @ B_i  (zero padding / stride folded into L, B)
        y = dot(dot(l_ref[0], xin), b_ref[0])
        y = y + dot(dot(l_ref[1], xin), b_ref[1])
        y = y + dot(dot(l_ref[2], xin), b_ref[2])
        y = y + bias
        # BatchNorm2d (train-mode batch stats) + ReLU.  `pmat` averages over the
        # batch-lane group of each channel and broadcasts back to all its lanes.
        mean_l = dot(jnp.sum(y, axis=0, keepdims=True), pmat)       # per-channel mean
        ex2_l = dot(jnp.sum(y * y, axis=0, keepdims=True), pmat)    # per-channel E[x^2]
        var_l = ex2_l - mean_l * mean_l                             # biased variance
        inv_l = lax.rsqrt(var_l + BN_EPS)
        return jnp.maximum((y - mean_l) * inv_l * gamma + beta, 0.0)

    vec = vec_ref[...]                      # (8, 64) packed per-layer vectors
    x = x_ref[...]                          # (N*T_IN, F_IN) = (32, 16)

    # conv layer 0: (2,1,16,16) -> (2,8,8,8); output rows=(n,h), lanes=(w,c)
    y0 = conv_bn_relu(x, l0_ref, b0_ref,
                      vec[0:1, :], vec[1:2, :], vec[2:3, :], pm_ref[0])
    # conv layer 1: (2,8,8,8) -> (2,8,8,8); output rows=(t,n), lanes=(c,w)
    # (already the PyTorch transpose(1,2).view(...).transpose(0,1) layout)
    y1 = conv_bn_relu(y0, l1_ref, b1_ref,
                      vec[3:4, :], vec[4:5, :], vec[5:6, :], pm_ref[1])

    rmat = r_ref[...]                       # (16,16) time-block reversal permutation
    lane = lax.broadcasted_iota(jnp.int32, (ROWS, NDIR_H), 1)
    fwd_mask = lane < HID

    def birnn_layer(xin, w_ref):
        # Hoisted input projections: fwd uses xin, bwd uses time-reversed xin.
        u_all = dot(xin, w_ref[0]) + dot(dot(rmat, xin), w_ref[1])   # (16, 64)
        whh = w_ref[2]                                               # block-diag (64,64)
        h = jnp.zeros((N, NDIR_H), f32)
        # Fully unrolled serial recurrence (T_OUT=8 is static); only a tiny
        # (2,64)@(64,64) dot + add + tanh per step stays on the critical path.
        for t in range(T_OUT):
            u = u_all[N * t:N * (t + 1), :]
            h = jnp.tanh(u + dot(h, whh))
            hbuf_ref[N * t:N * (t + 1), :] = h
        hs = hbuf_ref[...]
        # fwd half already in output time order; bwd half needs time reversal.
        return jnp.where(fwd_mask, hs, dot(rmat, hs))

    h0 = birnn_layer(y1, rnn0_ref)

    # SequenceWise BatchNorm1d before RNN layer 1 (train-mode batch stats).
    mean = jnp.sum(h0, axis=0, keepdims=True) * (1.0 / ROWS)
    xc = h0 - mean
    var = jnp.sum(xc * xc, axis=0, keepdims=True) * (1.0 / ROWS)
    h0n = xc * lax.rsqrt(var + BN_EPS) * vec[6:7, :] + vec[7:8, :]

    o_ref[...] = birnn_layer(h0n, rnn1_ref)


def _encoder_pallas(x2d, p):
    return pl.pallas_call(
        _encoder_kernel,
        out_shape=jax.ShapeDtypeStruct((ROWS, NDIR_H), jnp.float32),
        scratch_shapes=[pltpu.VMEM((ROWS, NDIR_H), jnp.float32)],
    )(x2d, p["L0"], p["B0"], p["L1"], p["B1"], p["Pm"], p["vec"], p["R"],
      p["rnn0"], p["rnn1"])


@jax.jit
def encoder_forward(x, params):
    # x: (N, T, F) == PyTorch input; unsqueeze(1) -> conv with C_in=1.
    n, t, f = x.shape
    out = _encoder_pallas(x.reshape(n * t, f), params)   # (T_OUT*N, 2H), rows=(t, n)
    return out.reshape(T_OUT, n, NDIR_H)                 # free reshape -> (T, N, 2H)


# ----------------------------------------------------------------------------
# Parameter generation: random "PyTorch-equivalent" weights, re-laid-out once
# into the matmul-friendly form the kernel consumes.
# ----------------------------------------------------------------------------
def init_params(key):
    ks = jax.random.split(key, 20)

    def rnd(k, shape, scale):
        return np.asarray(scale * jax.random.normal(k, shape, jnp.float32),
                          np.float32)

    # conv weights in (kh, kw, cin, cout) layout (== PyTorch weight[co,ci,i,j])
    w0 = rnd(ks[0], (3, 3, 1, C0), 1.0 / math.sqrt(9 * 1))
    b0 = rnd(ks[1], (C0,), 0.1)
    g0 = 1.0 + rnd(ks[2], (C0,), 0.1)
    be0 = rnd(ks[3], (C0,), 0.05)
    w1 = rnd(ks[4], (3, 3, C0, C1), 1.0 / math.sqrt(9 * C0))
    b1 = rnd(ks[5], (C1,), 0.1)
    g1 = 1.0 + rnd(ks[6], (C1,), 0.1)
    be1 = rnd(ks[7], (C1,), 0.05)

    sc = 1.0 / math.sqrt(HID)
    wih0_f = rnd(ks[8], (FEAT, HID), sc)
    whh0_f = rnd(ks[9], (HID, HID), sc)
    wih0_b = rnd(ks[10], (FEAT, HID), sc)
    whh0_b = rnd(ks[11], (HID, HID), sc)
    gbn1 = 1.0 + rnd(ks[12], (NDIR_H,), 0.1)
    bbn1 = rnd(ks[13], (NDIR_H,), 0.05)
    wih1_f = rnd(ks[14], (NDIR_H, HID), sc)
    whh1_f = rnd(ks[15], (HID, HID), sc)
    wih1_b = rnd(ks[16], (NDIR_H, HID), sc)
    whh1_b = rnd(ks[17], (HID, HID), sc)

    # --- conv layer 0: rows (n, h), lanes (w, c); stride 2, pad 1 ------------
    L0 = np.zeros((3, ROWS, N * T_IN), np.float32)
    for i in range(3):
        for n in range(N):
            for ho in range(T_OUT):
                h = 2 * ho + i - 1
                if 0 <= h < T_IN:
                    L0[i, n * T_OUT + ho, n * T_IN + h] = 1.0
    B0 = np.zeros((3, F_IN, W_OUT * C0), np.float32)
    for i in range(3):
        for w in range(F_IN):
            for wo in range(W_OUT):
                j = w - 2 * wo + 1
                if 0 <= j < 3:
                    B0[i, w, wo * C0:(wo + 1) * C0] = w0[i, j, 0, :]

    # --- conv layer 1: output rows (t, n), lanes (c, w); stride 1, pad 1 -----
    L1 = np.zeros((3, ROWS, ROWS), np.float32)
    for i in range(3):
        for ho in range(T_OUT):
            for n in range(N):
                h = ho + i - 1
                if 0 <= h < T_OUT:
                    L1[i, ho * N + n, n * T_OUT + h] = 1.0
    B1 = np.zeros((3, W_OUT * C0, C1 * W_OUT), np.float32)
    for i in range(3):
        for w in range(W_OUT):
            for wo in range(W_OUT):
                j = w - wo + 1
                if 0 <= j < 3:
                    for c in range(C0):
                        B1[i, w * C0 + c, wo::W_OUT] = w1[i, j, c, :]

    # --- packed per-layer vectors (all expanded to the 64-lane layouts) ------
    bias0 = np.tile(b0, W_OUT)          # lanes (w, c): index wo*8+co
    g0_l = np.tile(g0, W_OUT)
    be0_l = np.tile(be0, W_OUT)
    bias1 = np.repeat(b1, W_OUT)        # lanes (c, w): index co*8+wo
    g1_l = np.repeat(g1, W_OUT)
    be1_l = np.repeat(be1, W_OUT)
    vec = np.stack([bias0, g0_l, be0_l, bias1, g1_l, be1_l, gbn1, bbn1], axis=0)

    # --- BatchNorm2d channel-averaging projections (include 1/count) ---------
    cnt = float(N * T_OUT * W_OUT)                                    # 128 per channel
    T0 = np.kron(np.ones((W_OUT, 1), np.float32), np.eye(C0, dtype=np.float32))
    T1 = np.kron(np.eye(C1, dtype=np.float32), np.ones((W_OUT, 1), np.float32))
    Pm = np.stack([T0 @ T0.T / cnt, T1 @ T1.T / cnt], axis=0)         # (2, 64, 64)

    # --- time-block reversal permutation over rows = (t, n) ------------------
    R = np.zeros((ROWS, ROWS), np.float32)
    for t in range(T_OUT):
        for n in range(N):
            R[t * N + n, (T_OUT - 1 - t) * N + n] = 1.0

    # --- RNN weights: [wih_fwd padded | wih_bwd padded | block-diag whh] ------
    def pack_rnn(wih_f, wih_b, whh_f, whh_b):
        wF = np.zeros((NDIR_H, NDIR_H), np.float32)
        wF[:, :HID] = wih_f
        wB = np.zeros((NDIR_H, NDIR_H), np.float32)
        wB[:, HID:] = wih_b
        wbd = np.zeros((NDIR_H, NDIR_H), np.float32)
        wbd[:HID, :HID] = whh_f
        wbd[HID:, HID:] = whh_b
        return np.stack([wF, wB, wbd], axis=0)

    rnn0 = pack_rnn(wih0_f, wih0_b, whh0_f, whh0_b)
    rnn1 = pack_rnn(wih1_f, wih1_b, whh1_f, whh1_b)

    raw = dict(L0=L0, B0=B0, L1=L1, B1=B1, Pm=Pm, vec=vec, R=R,
               rnn0=rnn0, rnn1=rnn1)
    return {k: jnp.asarray(v, jnp.float32) for k, v in raw.items()}


# ----------------------------------------------------------------------------
if __name__ == "__main__":
    key = jax.random.PRNGKey(0)
    pkey, xkey = jax.random.split(key)
    params = init_params(pkey)

    # batch=2, time=16, freq=16 (freq == rnn_input_size)
    x = jax.random.normal(xkey, (N, T_IN, F_IN), jnp.float32)

    out = encoder_forward(x, params)
    out = jax.block_until_ready(out)

    # conv: 16 -> 8 time steps; feature = 2 * hidden_size = 64
    assert out.shape == (T_OUT, N, NDIR_H), out.shape
    assert bool(jnp.all(jnp.isfinite(out)))
    print("KERNEL_OK")
</pallas_src>

<mosaic_0001>
module attributes {stable_mosaic.version = 11 : i64} {
  func.func @_encoder_kernel(%arg0: memref<32x16xf32, #tpu.memory_space<vmem>>, %arg1: memref<3x16x32xf32, #tpu.memory_space<vmem>>, %arg2: memref<3x16x64xf32, #tpu.memory_space<vmem>>, %arg3: memref<3x16x16xf32, #tpu.memory_space<vmem>>, %arg4: memref<3x64x64xf32, #tpu.memory_space<vmem>>, %arg5: memref<2x64x64xf32, #tpu.memory_space<vmem>>, %arg6: memref<8x64xf32, #tpu.memory_space<vmem>>, %arg7: memref<16x16xf32, #tpu.memory_space<vmem>>, %arg8: memref<3x64x64xf32, #tpu.memory_space<vmem>>, %arg9: memref<3x64x64xf32, #tpu.memory_space<vmem>>, %arg10: memref<16x64xf32, #tpu.memory_space<vmem>>, %arg11: memref<16x64xf32, #tpu.memory_space<vmem>>) attributes {dimension_semantics = [], scalar_prefetch = 0 : i64, scratch_operands = 1 : i64, tpu.core_type = #tpu.core_type<tc>} {
    %c0 = arith.constant 0 : index
    %c0_0 = arith.constant 0 : index
    %0 = vector.load %arg6[%c0, %c0_0] : memref<8x64xf32, #tpu.memory_space<vmem>>, vector<8x64xf32>
    %c0_1 = arith.constant 0 : index
    %c0_2 = arith.constant 0 : index
    %1 = vector.load %arg0[%c0_1, %c0_2] : memref<32x16xf32, #tpu.memory_space<vmem>>, vector<32x16xf32>
    %2 = vector.extract_strided_slice %0 {offsets = [0, 0], sizes = [1, 64], strides = [1, 1]} : vector<8x64xf32> to vector<1x64xf32>
    %3 = vector.extract_strided_slice %0 {offsets = [1, 0], sizes = [1, 64], strides = [1, 1]} : vector<8x64xf32> to vector<1x64xf32>
    %4 = vector.extract_strided_slice %0 {offsets = [2, 0], sizes = [1, 64], strides = [1, 1]} : vector<8x64xf32> to vector<1x64xf32>
    %c0_3 = arith.constant 0 : index
    %c0_4 = arith.constant 0 : index
    %c0_5 = arith.constant 0 : index
    %5 = vector.load %arg5[%c0_3, %c0_4, %c0_5] : memref<2x64x64xf32, #tpu.memory_space<vmem>>, vector<1x64x64xf32>
    %6 = vector.shape_cast %5 : vector<1x64x64xf32> to vector<64x64xf32>
    %c0_6 = arith.constant 0 : index
    %c0_7 = arith.constant 0 : index
    %c0_8 = arith.constant 0 : index
    %7 = vector.load %arg1[%c0_6, %c0_7, %c0_8] : memref<3x16x32xf32, #tpu.memory_space<vmem>>, vector<1x16x32xf32>
    %8 = vector.shape_cast %7 : vector<1x16x32xf32> to vector<16x32xf32>
    %cst = arith.constant dense<0.000000e+00> : vector<16x16xf32>
    %9 = tpu.matmul %8, %1, %cst {dimension_numbers = #tpu.dot_dimension_numbers<[1], [0], [0], [1], [0, 0, 1, 1], [], []>} : vector<16x32xf32>, vector<32x16xf32>, vector<16x16xf32> -> vector<16x16xf32>
    %c0_9 = arith.constant 0 : index
    %c0_10 = arith.constant 0 : index
    %c0_11 = arith.constant 0 : index
    %10 = vector.load %arg2[%c0_9, %c0_10, %c0_11] : memref<3x16x64xf32, #tpu.memory_space<vmem>>, vector<1x16x64xf32>
    %11 = vector.shape_cast %10 : vector<1x16x64xf32> to vector<16x64xf32>
    %cst_12 = arith.constant dense<0.000000e+00> : vector<16x64xf32>
    %12 = tpu.matmul %9, %11, %cst_12 {dimension_numbers = #tpu.dot_dimension_numbers<[1], [0], [0], [1], [0, 0, 1, 1], [], []>} : vector<16x16xf32>, vector<16x64xf32>, vector<16x64xf32> -> vector<16x64xf32>
    %c1 = arith.constant 1 : index
    %c0_13 = arith.constant 0 : index
    %c0_14 = arith.constant 0 : index
    %13 = vector.load %arg1[%c1, %c0_13, %c0_14] : memref<3x16x32xf32, #tpu.memory_space<vmem>>, vector<1x16x32xf32>
    %14 = vector.shape_cast %13 : vector<1x16x32xf32> to vector<16x32xf32>
    %cst_15 = arith.constant dense<0.000000e+00> : vector<16x16xf32>
    %15 = tpu.matmul %14, %1, %cst_15 {dimension_numbers = #tpu.dot_dimension_numbers<[1], [0], [0], [1], [0, 0, 1, 1], [], []>} : vector<16x32xf32>, vector<32x16xf32>, vector<16x16xf32> -> vector<16x16xf32>
    %c1_16 = arith.constant 1 : index
    %c0_17 = arith.constant 0 : index
    %c0_18 = arith.constant 0 : index
    %16 = vector.load %arg2[%c1_16, %c0_17, %c0_18] : memref<3x16x64xf32, #tpu.memory_space<vmem>>, vector<1x16x64xf32>
    %17 = vector.shape_cast %16 : vector<1x16x64xf32> to vector<16x64xf32>
    %cst_19 = arith.constant dense<0.000000e+00> : vector<16x64xf32>
    %18 = tpu.matmul %15, %17, %cst_19 {dimension_numbers = #tpu.dot_dimension_numbers<[1], [0], [0], [1], [0, 0, 1, 1], [], []>} : vector<16x16xf32>, vector<16x64xf32>, vector<16x64xf32> -> vector<16x64xf32>
    %19 = arith.addf %12, %18 : vector<16x64xf32>
    %c2 = arith.constant 2 : index
    %c0_20 = arith.constant 0 : index
    %c0_21 = arith.constant 0 : index
    %20 = vector.load %arg1[%c2, %c0_20, %c0_21] : memref<3x16x32xf32, #tpu.memory_space<vmem>>, vector<1x16x32xf32>
    %21 = vector.shape_cast %20 : vector<1x16x32xf32> to vector<16x32xf32>
    %cst_22 = arith.constant dense<0.000000e+00> : vector<16x16xf32>
    %22 = tpu.matmul %21, %1, %cst_22 {dimension_numbers = #tpu.dot_dimension_numbers<[1], [0], [0], [1], [0, 0, 1, 1], [], []>} : vector<16x32xf32>, vector<32x16xf32>, vector<16x16xf32> -> vector<16x16xf32>
    %c2_23 = arith.constant 2 : index
    %c0_24 = arith.constant 0 : index
    %c0_25 = arith.constant 0 : index
    %23 = vector.load %arg2[%c2_23, %c0_24, %c0_25] : memref<3x16x64xf32, #tpu.memory_space<vmem>>, vector<1x16x64xf32>
    %24 = vector.shape_cast %23 : vector<1x16x64xf32> to vector<16x64xf32>
    %cst_26 = arith.constant dense<0.000000e+00> : vector<16x64xf32>
    %25 = tpu.matmul %22, %24, %cst_26 {dimension_numbers = #tpu.dot_dimension_numbers<[1], [0], [0], [1], [0, 0, 1, 1], [], []>} : vector<16x16xf32>, vector<16x64xf32>, vector<16x64xf32> -> vector<16x64xf32>
    %26 = arith.addf %19, %25 : vector<16x64xf32>
    %27 = vector.broadcast %2 : vector<1x64xf32> to vector<16x64xf32>
    %28 = arith.addf %26, %27 : vector<16x64xf32>
    %cst_27 = arith.constant dense<0.000000e+00> : vector<64xf32>
    %29 = vector.multi_reduction <add>, %28, %cst_27 [0] : vector<16x64xf32> to vector<64xf32>
    %30 = vector.shape_cast %29 : vector<64xf32> to vector<1x64xf32>
    %cst_28 = arith.constant dense<0.000000e+00> : vector<1x64xf32>
    %31 = tpu.matmul %30, %6, %cst_28 {dimension_numbers = #tpu.dot_dimension_numbers<[1], [0], [0], [1], [0, 0, 1, 1], [], []>} : vector<1x64xf32>, vector<64x64xf32>, vector<1x64xf32> -> vector<1x64xf32>
    %32 = arith.mulf %28, %28 : vector<16x64xf32>
    %cst_29 = arith.constant dense<0.000000e+00> : vector<64xf32>
    %33 = vector.multi_reduction <add>, %32, %cst_29 [0] : vector<16x64xf32> to vector<64xf32>
    %34 = vector.shape_cast %33 : vector<64xf32> to vector<1x64xf32>
    %cst_30 = arith.constant dense<0.000000e+00> : vector<1x64xf32>
    %35 = tpu.matmul %34, %6, %cst_30 {dimension_numbers = #tpu.dot_dimension_numbers<[1], [0], [0], [1], [0, 0, 1, 1], [], []>} : vector<1x64xf32>, vector<64x64xf32>, vector<1x64xf32> -> vector<1x64xf32>
    %36 = arith.mulf %31, %31 : vector<1x64xf32>
    %37 = arith.subf %35, %36 : vector<1x64xf32>
    %cst_31 = arith.constant 9.99999974E-6 : f32
    %38 = vector.broadcast %cst_31 : f32 to vector<1x64xf32>
    %39 = arith.addf %37, %38 : vector<1x64xf32>
    %40 = math.rsqrt %39 : vector<1x64xf32>
    %41 = vector.broadcast %31 : vector<1x64xf32> to vector<16x64xf32>
    %42 = arith.subf %28, %41 : vector<16x64xf32>
    %43 = vector.broadcast %40 : vector<1x64xf32> to vector<16x64xf32>
    %44 = arith.mulf %42, %43 : vector<16x64xf32>
    %45 = vector.broadcast %3 : vector<1x64xf32> to vector<16x64xf32>
    %46 = arith.mulf %44, %45 : vector<16x64xf32>
    %47 = vector.broadcast %4 : vector<1x64xf32> to vector<16x64xf32>
    %48 = arith.addf %46, %47 : vector<16x64xf32>
    %cst_32 = arith.constant 0.000000e+00 : f32
    %49 = vector.broadcast %cst_32 : f32 to vector<16x64xf32>
    %50 = arith.maximumf %48, %49 : vector<16x64xf32>
    %51 = vector.extract_strided_slice %0 {offsets = [3, 0], sizes = [1, 64], strides = [1, 1]} : vector<8x64xf32> to vector<1x64xf32>
    %52 = vector.extract_strided_slice %0 {offsets = [4, 0], sizes = [1, 64], strides = [1, 1]} : vector<8x64xf32> to vector<1x64xf32>
    %53 = vector.extract_strided_slice %0 {offsets = [5, 0], sizes = [1, 64], strides = [1, 1]} : vector<8x64xf32> to vector<1x64xf32>
    %c1_33 = arith.constant 1 : index
    %c0_34 = arith.constant 0 : index
    %c0_35 = arith.constant 0 : index
    %54 = vector.load %arg5[%c1_33, %c0_34, %c0_35] : memref<2x64x64xf32, #tpu.memory_space<vmem>>, vector<1x64x64xf32>
    %55 = vector.shape_cast %54 : vector<1x64x64xf32> to vector<64x64xf32>
    %c0_36 = arith.constant 0 : index
    %c0_37 = arith.constant 0 : index
    %c0_38 = arith.constant 0 : index
    %56 = vector.load %arg3[%c0_36, %c0_37, %c0_38] : memref<3x16x16xf32, #tpu.memory_space<vmem>>, vector<1x16x16xf32>
    %57 = vector.shape_cast %56 : vector<1x16x16xf32> to vector<16x16xf32>
    %cst_39 = arith.constant dense<0.000000e+00> : vector<16x64xf32>
    %58 = tpu.matmul %57, %50, %cst_39 {dimension_numbers = #tpu.dot_dimension_numbers<[1], [0], [0], [1], [0, 0, 1, 1], [], []>} : vector<16x16xf32>, vector<16x64xf32>, vector<16x64xf32> -> vector<16x64xf32>
    %c0_40 = arith.constant 0 : index
    %c0_41 = arith.constant 0 : index
    %c0_42 = arith.constant 0 : index
    %59 = vector.load %arg4[%c0_40, %c0_41, %c0_42] : memref<3x64x64xf32, #tpu.memory_space<vmem>>, vector<1x64x64xf32>
    %60 = vector.shape_cast %59 : vector<1x64x64xf32> to vector<64x64xf32>
    %cst_43 = arith.constant dense<0.000000e+00> : vector<16x64xf32>
    %61 = tpu.matmul %58, %60, %cst_43 {dimension_numbers = #tpu.dot_dimension_numbers<[1], [0], [0], [1], [0, 0, 1, 1], [], []>} : vector<16x64xf32>, vector<64x64xf32>, vector<16x64xf32> -> vector<16x64xf32>
    %c1_44 = arith.constant 1 : index
    %c0_45 = arith.constant 0 : index
    %c0_46 = arith.constant 0 : index
    %62 = vector.load %arg3[%c1_44, %c0_45, %c0_46] : memref<3x16x16xf32, #tpu.memory_space<vmem>>, vector<1x16x16xf32>
    %63 = vector.shape_cast %62 : vector<1x16x16xf32> to vector<16x16xf32>
    %cst_47 = arith.constant dense<0.000000e+00> : vector<16x64xf32>
    %64 = tpu.matmul %63, %50, %cst_47 {dimension_numbers = #tpu.dot_dimension_numbers<[1], [0], [0], [1], [0, 0, 1, 1], [], []>} : vector<16x16xf32>, vector<16x64xf32>, vector<16x64xf32> -> vector<16x64xf32>
    %c1_48 = arith.constant 1 : index
    %c0_49 = arith.constant 0 : index
    %c0_50 = arith.constant 0 : index
    %65 = vector.load %arg4[%c1_48, %c0_49, %c0_50] : memref<3x64x64xf32, #tpu.memory_space<vmem>>, vector<1x64x64xf32>
    %66 = vector.shape_cast %65 : vector<1x64x64xf32> to vector<64x64xf32>
    %cst_51 = arith.constant dense<0.000000e+00> : vector<16x64xf32>
    %67 = tpu.matmul %64, %66, %cst_51 {dimension_numbers = #tpu.dot_dimension_numbers<[1], [0], [0], [1], [0, 0, 1, 1], [], []>} : vector<16x64xf32>, vector<64x64xf32>, vector<16x64xf32> -> vector<16x64xf32>
    %68 = arith.addf %61, %67 : vector<16x64xf32>
    %c2_52 = arith.constant 2 : index
    %c0_53 = arith.constant 0 : index
    %c0_54 = arith.constant 0 : index
    %69 = vector.load %arg3[%c2_52, %c0_53, %c0_54] : memref<3x16x16xf32, #tpu.memory_space<vmem>>, vector<1x16x16xf32>
    %70 = vector.shape_cast %69 : vector<1x16x16xf32> to vector<16x16xf32>
    %cst_55 = arith.constant dense<0.000000e+00> : vector<16x64xf32>
    %71 = tpu.matmul %70, %50, %cst_55 {dimension_numbers = #tpu.dot_dimension_numbers<[1], [0], [0], [1], [0, 0, 1, 1], [], []>} : vector<16x16xf32>, vector<16x64xf32>, vector<16x64xf32> -> vector<16x64xf32>
    %c2_56 = arith.constant 2 : index
    %c0_57 = arith.constant 0 : index
    %c0_58 = arith.constant 0 : index
    %72 = vector.load %arg4[%c2_56, %c0_57, %c0_58] : memref<3x64x64xf32, #tpu.memory_space<vmem>>, vector<1x64x64xf32>
    %73 = vector.shape_cast %72 : vector<1x64x64xf32> to vector<64x64xf32>
    %cst_59 = arith.constant dense<0.000000e+00> : vector<16x64xf32>
    %74 = tpu.matmul %71, %73, %cst_59 {dimension_numbers = #tpu.dot_dimension_numbers<[1], [0], [0], [1], [0, 0, 1, 1], [], []>} : vector<16x64xf32>, vector<64x64xf32>, vector<16x64xf32> -> vector<16x64xf32>
    %75 = arith.addf %68, %74 : vector<16x64xf32>
    %76 = vector.broadcast %51 : vector<1x64xf32> to vector<16x64xf32>
    %77 = arith.addf %75, %76 : vector<16x64xf32>
    %cst_60 = arith.constant dense<0.000000e+00> : vector<64xf32>
    %78 = vector.multi_reduction <add>, %77, %cst_60 [0] : vector<16x64xf32> to vector<64xf32>
    %79 = vector.shape_cast %78 : vector<64xf32> to vector<1x64xf32>
    %cst_61 = arith.constant dense<0.000000e+00> : vector<1x64xf32>
    %80 = tpu.matmul %79, %55, %cst_61 {dimension_numbers = #tpu.dot_dimension_numbers<[1], [0], [0], [1], [0, 0, 1, 1], [], []>} : vector<1x64xf32>, vector<64x64xf32>, vector<1x64xf32> -> vector<1x64xf32>
    %81 = arith.mulf %77, %77 : vector<16x64xf32>
    %cst_62 = arith.constant dense<0.000000e+00> : vector<64xf32>
    %82 = vector.multi_reduction <add>, %81, %cst_62 [0] : vector<16x64xf32> to vector<64xf32>
    %83 = vector.shape_cast %82 : vector<64xf32> to vector<1x64xf32>
    %cst_63 = arith.constant dense<0.000000e+00> : vector<1x64xf32>
    %84 = tpu.matmul %83, %55, %cst_63 {dimension_numbers = #tpu.dot_dimension_numbers<[1], [0], [0], [1], [0, 0, 1, 1], [], []>} : vector<1x64xf32>, vector<64x64xf32>, vector<1x64xf32> -> vector<1x64xf32>
    %85 = arith.mulf %80, %80 : vector<1x64xf32>
    %86 = arith.subf %84, %85 : vector<1x64xf32>
    %cst_64 = arith.constant 9.99999974E-6 : f32
    %87 = vector.broadcast %cst_64 : f32 to vector<1x64xf32>
    %88 = arith.addf %86, %87 : vector<1x64xf32>
    %89 = math.rsqrt %88 : vector<1x64xf32>
    %90 = vector.broadcast %80 : vector<1x64xf32> to vector<16x64xf32>
    %91 = arith.subf %77, %90 : vector<16x64xf32>
    %92 = vector.broadcast %89 : vector<1x64xf32> to vector<16x64xf32>
    %93 = arith.mulf %91, %92 : vector<16x64xf32>
    %94 = vector.broadcast %52 : vector<1x64xf32> to vector<16x64xf32>
    %95 = arith.mulf %93, %94 : vector<16x64xf32>
    %96 = vector.broadcast %53 : vector<1x64xf32> to vector<16x64xf32>
    %97 = arith.addf %95, %96 : vector<16x64xf32>
    %cst_65 = arith.constant 0.000000e+00 : f32
    %98 = vector.broadcast %cst_65 : f32 to vector<16x64xf32>
    %99 = arith.maximumf %97, %98 : vector<16x64xf32>
    %c0_66 = arith.constant 0 : index
    %c0_67 = arith.constant 0 : index
    %100 = vector.load %arg7[%c0_66, %c0_67] : memref<16x16xf32, #tpu.memory_space<vmem>>, vector<16x16xf32>
    %101 = tpu.iota {dimensions = array<i32: 1>} : vector<16x64xi32>
    %c32_i32 = arith.constant 32 : i32
    %102 = vector.broadcast %c32_i32 : i32 to vector<16x64xi32>
    %103 = arith.cmpi slt, %101, %102 : vector<16x64xi32>
    %c0_68 = arith.constant 0 : index
    %c0_69 = arith.constant 0 : index
    %c0_70 = arith.constant 0 : index
    %104 = vector.load %arg8[%c0_68, %c0_69, %c0_70] : memref<3x64x64xf32, #tpu.memory_space<vmem>>, vector<1x64x64xf32>
    %105 = vector.shape_cast %104 : vector<1x64x64xf32> to vector<64x64xf32>
    %cst_71 = arith.constant dense<0.000000e+00> : vector<16x64xf32>
    %106 = tpu.matmul %99, %105, %cst_71 {dimension_numbers = #tpu.dot_dimension_numbers<[1], [0], [0], [1], [0, 0, 1, 1], [], []>} : vector<16x64xf32>, vector<64x64xf32>, vector<16x64xf32> -> vector<16x64xf32>
    %cst_72 = arith.constant dense<0.000000e+00> : vector<16x64xf32>
    %107 = tpu.matmul %100, %99, %cst_72 {dimension_numbers = #tpu.dot_dimension_numbers<[1], [0], [0], [1], [0, 0, 1, 1], [], []>} : vector<16x16xf32>, vector<16x64xf32>, vector<16x64xf32> -> vector<16x64xf32>
    %c1_73 = arith.constant 1 : index
    %c0_74 = arith.constant 0 : index
    %c0_75 = arith.constant 0 : index
    %108 = vector.load %arg8[%c1_73, %c0_74, %c0_75] : memref<3x64x64xf32, #tpu.memory_space<vmem>>, vector<1x64x64xf32>
    %109 = vector.shape_cast %108 : vector<1x64x64xf32> to vector<64x64xf32>
    %cst_76 = arith.constant dense<0.000000e+00> : vector<16x64xf32>
    %110 = tpu.matmul %107, %109, %cst_76 {dimension_numbers = #tpu.dot_dimension_numbers<[1], [0], [0], [1], [0, 0, 1, 1], [], []>} : vector<16x64xf32>, vector<64x64xf32>, vector<16x64xf32> -> vector<16x64xf32>
    %111 = arith.addf %106, %110 : vector<16x64xf32>
    %c2_77 = arith.constant 2 : index
    %c0_78 = arith.constant 0 : index
    %c0_79 = arith.constant 0 : index
    %112 = vector.load %arg8[%c2_77, %c0_78, %c0_79] : memref<3x64x64xf32, #tpu.memory_space<vmem>>, vector<1x64x64xf32>
    %113 = vector.shape_cast %112 : vector<1x64x64xf32> to vector<64x64xf32>
    %cst_80 = arith.constant 0.000000e+00 : f32
    %114 = vector.broadcast %cst_80 : f32 to vector<2x64xf32>
    %115 = vector.extract_strided_slice %111 {offsets = [0, 0], sizes = [2, 64], strides = [1, 1]} : vector<16x64xf32> to vector<2x64xf32>
    %cst_81 = arith.constant dense<0.000000e+00> : vector<2x64xf32>
    %116 = tpu.matmul %114, %113, %cst_81 {dimension_numbers = #tpu.dot_dimension_numbers<[1], [0], [0], [1], [0, 0, 1, 1], [], []>} : vector<2x64xf32>, vector<64x64xf32>, vector<2x64xf32> -> vector<2x64xf32>
    %117 = arith.addf %115, %116 : vector<2x64xf32>
    %118 = math.tanh %117 : vector<2x64xf32>
    %c0_82 = arith.constant 0 : index
    %c0_83 = arith.constant 0 : index
    %119 = vector.load %arg11[%c0_82, %c0_83] : memref<16x64xf32, #tpu.memory_space<vmem>>, vector<2x64xf32>
    tpu.vector_store %arg11[%c0_82, %c0_83], %118 {strides = array<i32>} : memref<16x64xf32, #tpu.memory_space<vmem>>, vector<2x64xf32>,
    %120 = vector.extract_strided_slice %111 {offsets = [2, 0], sizes = [2, 64], strides = [1, 1]} : vector<16x64xf32> to vector<2x64xf32>
    %cst_84 = arith.constant dense<0.000000e+00> : vector<2x64xf32>
    %121 = tpu.matmul %118, %113, %cst_84 {dimension_numbers = #tpu.dot_dimension_numbers<[1], [0], [0], [1], [0, 0, 1, 1], [], []>} : vector<2x64xf32>, vector<64x64xf32>, vector<2x64xf32> -> vector<2x64xf32>
    %122 = arith.addf %120, %121 : vector<2x64xf32>
    %123 = math.tanh %122 : vector<2x64xf32>
    %c2_85 = arith.constant 2 : index
    %c0_86 = arith.constant 0 : index
    %124 = vector.load %arg11[%c2_85, %c0_86] : memref<16x64xf32, #tpu.memory_space<vmem>>, vector<2x64xf32>
    tpu.vector_store %arg11[%c2_85, %c0_86], %123 {strides = array<i32>} : memref<16x64xf32, #tpu.memory_space<vmem>>, vector<2x64xf32>,
    %125 = vector.extract_strided_slice %111 {offsets = [4, 0], sizes = [2, 64], strides = [1, 1]} : vector<16x64xf32> to vector<2x64xf32>
    %cst_87 = arith.constant dense<0.000000e+00> : vector<2x64xf32>
    %126 = tpu.matmul %123, %113, %cst_87 {dimension_numbers = #tpu.dot_dimension_numbers<[1], [0], [0], [1], [0, 0, 1, 1], [], []>} : vector<2x64xf32>, vector<64x64xf32>, vector<2x64xf32> -> vector<2x64xf32>
    %127 = arith.addf %125, %126 : vector<2x64xf32>
    %128 = math.tanh %127 : vector<2x64xf32>
    %c4 = arith.constant 4 : index
    %c0_88 = arith.constant 0 : index
    %129 = vector.load %arg11[%c4, %c0_88] : memref<16x64xf32, #tpu.memory_space<vmem>>, vector<2x64xf32>
    tpu.vector_store %arg11[%c4, %c0_88], %128 {strides = array<i32>} : memref<16x64xf32, #tpu.memory_space<vmem>>, vector<2x64xf32>,
    %130 = vector.extract_strided_slice %111 {offsets = [6, 0], sizes = [2, 64], strides = [1, 1]} : vector<16x64xf32> to vector<2x64xf32>
    %cst_89 = arith.constant dense<0.000000e+00> : vector<2x64xf32>
    %131 = tpu.matmul %128, %113, %cst_89 {dimension_numbers = #tpu.dot_dimension_numbers<[1], [0], [0], [1], [0, 0, 1, 1], [], []>} : vector<2x64xf32>, vector<64x64xf32>, vector<2x64xf32> -> vector<2x64xf32>
    %132 = arith.addf %130, %131 : vector<2x64xf32>
    %133 = math.tanh %132 : vector<2x64xf32>
    %c6 = arith.constant 6 : index
    %c0_90 = arith.constant 0 : index
    %134 = vector.load %arg11[%c6, %c0_90] : memref<16x64xf32, #tpu.memory_space<vmem>>, vector<2x64xf32>
    tpu.vector_store %arg11[%c6, %c0_90], %133 {strides = array<i32>} : memref<16x64xf32, #tpu.memory_space<vmem>>, vector<2x64xf32>,
    %135 = vector.extract_strided_slice %111 {offsets = [8, 0], sizes = [2, 64], strides = [1, 1]} : vector<16x64xf32> to vector<2x64xf32>
    %cst_91 = arith.constant dense<0.000000e+00> : vector<2x64xf32>
    %136 = tpu.matmul %133, %113, %cst_91 {dimension_numbers = #tpu.dot_dimension_numbers<[1], [0], [0], [1], [0, 0, 1, 1], [], []>} : vector<2x64xf32>, vector<64x64xf32>, vector<2x64xf32> -> vector<2x64xf32>
    %137 = arith.addf %135, %136 : vector<2x64xf32>
    %138 = math.tanh %137 : vector<2x64xf32>
    %c8 = arith.constant 8 : index
    %c0_92 = arith.constant 0 : index
    %139 = vector.load %arg11[%c8, %c0_92] : memref<16x64xf32, #tpu.memory_space<vmem>>, vector<2x64xf32>
    tpu.vector_store %arg11[%c8, %c0_92], %138 {strides = array<i32>} : memref<16x64xf32, #tpu.memory_space<vmem>>, vector<2x64xf32>,
    %140 = vector.extract_strided_slice %111 {offsets = [10, 0], sizes = [2, 64], strides = [1, 1]} : vector<16x64xf32> to vector<2x64xf32>
    %cst_93 = arith.constant dense<0.000000e+00> : vector<2x64xf32>
    %141 = tpu.matmul %138, %113, %cst_93 {dimension_numbers = #tpu.dot_dimension_numbers<[1], [0], [0], [1], [0, 0, 1, 1], [], []>} : vector<2x64xf32>, vector<64x64xf32>, vector<2x64xf32> -> vector<2x64xf32>
    %142 = arith.addf %140, %141 : vector<2x64xf32>
    %143 = math.tanh %142 : vector<2x64xf32>
    %c10 = arith.constant 10 : index
    %c0_94 = arith.constant 0 : index
    %144 = vector.load %arg11[%c10, %c0_94] : memref<16x64xf32, #tpu.memory_space<vmem>>, vector<2x64xf32>
    tpu.vector_store %arg11[%c10, %c0_94], %143 {strides = array<i32>} : memref<16x64xf32, #tpu.memory_space<vmem>>, vector<2x64xf32>,
    %145 = vector.extract_strided_slice %111 {offsets = [12, 0], sizes = [2, 64], strides = [1, 1]} : vector<16x64xf32> to vector<2x64xf32>
    %cst_95 = arith.constant dense<0.000000e+00> : vector<2x64xf32>
    %146 = tpu.matmul %143, %113, %cst_95 {dimension_numbers = #tpu.dot_dimension_numbers<[1], [0], [0], [1], [0, 0, 1, 1], [], []>} : vector<2x64xf32>, vector<64x64xf32>, vector<2x64xf32> -> vector<2x64xf32>
    %147 = arith.addf %145, %146 : vector<2x64xf32>
    %148 = math.tanh %147 : vector<2x64xf32>
    %c12 = arith.constant 12 : index
    %c0_96 = arith.constant 0 : index
    %149 = vector.load %arg11[%c12, %c0_96] : memref<16x64xf32, #tpu.memory_space<vmem>>, vector<2x64xf32>
    tpu.vector_store %arg11[%c12, %c0_96], %148 {strides = array<i32>} : memref<16x64xf32, #tpu.memory_space<vmem>>, vector<2x64xf32>,
    %150 = vector.extract_strided_slice %111 {offsets = [14, 0], sizes = [2, 64], strides = [1, 1]} : vector<16x64xf32> to vector<2x64xf32>
    %cst_97 = arith.constant dense<0.000000e+00> : vector<2x64xf32>
    %151 = tpu.matmul %148, %113, %cst_97 {dimension_numbers = #tpu.dot_dimension_numbers<[1], [0], [0], [1], [0, 0, 1, 1], [], []>} : vector<2x64xf32>, vector<64x64xf32>, vector<2x64xf32> -> vector<2x64xf32>
    %152 = arith.addf %150, %151 : vector<2x64xf32>
    %153 = math.tanh %152 : vector<2x64xf32>
    %c14 = arith.constant 14 : index
    %c0_98 = arith.constant 0 : index
    %154 = vector.load %arg11[%c14, %c0_98] : memref<16x64xf32, #tpu.memory_space<vmem>>, vector<2x64xf32>
    tpu.vector_store %arg11[%c14, %c0_98], %153 {strides = array<i32>} : memref<16x64xf32, #tpu.memory_space<vmem>>, vector<2x64xf32>,
    %c0_99 = arith.constant 0 : index
    %c0_100 = arith.constant 0 : index
    %155 = vector.load %arg11[%c0_99, %c0_100] : memref<16x64xf32, #tpu.memory_space<vmem>>, vector<16x64xf32>
    %cst_101 = arith.constant dense<0.000000e+00> : vector<16x64xf32>
    %156 = tpu.matmul %100, %155, %cst_101 {dimension_numbers = #tpu.dot_dimension_numbers<[1], [0], [0], [1], [0, 0, 1, 1], [], []>} : vector<16x16xf32>, vector<16x64xf32>, vector<16x64xf32> -> vector<16x64xf32>
    %157 = arith.select %103, %155, %156 : vector<16x64xi1>, vector<16x64xf32>
    %cst_102 = arith.constant dense<0.000000e+00> : vector<64xf32>
    %158 = vector.multi_reduction <add>, %157, %cst_102 [0] : vector<16x64xf32> to vector<64xf32>
    %159 = vector.shape_cast %158 : vector<64xf32> to vector<1x64xf32>
    %cst_103 = arith.constant 6.250000e-02 : f32
    %160 = vector.broadcast %cst_103 : f32 to vector<1x64xf32>
    %161 = arith.mulf %159, %160 : vector<1x64xf32>
    %162 = vector.broadcast %161 : vector<1x64xf32> to vector<16x64xf32>
    %163 = arith.subf %157, %162 : vector<16x64xf32>
    %164 = arith.mulf %163, %163 : vector<16x64xf32>
    %cst_104 = arith.constant dense<0.000000e+00> : vector<64xf32>
    %165 = vector.multi_reduction <add>, %164, %cst_104 [0] : vector<16x64xf32> to vector<64xf32>
    %166 = vector.shape_cast %165 : vector<64xf32> to vector<1x64xf32>
    %cst_105 = arith.constant 6.250000e-02 : f32
    %167 = vector.broadcast %cst_105 : f32 to vector<1x64xf32>
    %168 = arith.mulf %166, %167 : vector<1x64xf32>
    %cst_106 = arith.constant 9.99999974E-6 : f32
    %169 = vector.broadcast %cst_106 : f32 to vector<1x64xf32>
    %170 = arith.addf %168, %169 : vector<1x64xf32>
    %171 = math.rsqrt %170 : vector<1x64xf32>
    %172 = vector.broadcast %171 : vector<1x64xf32> to vector<16x64xf32>
    %173 = arith.mulf %163, %172 : vector<16x64xf32>
    %174 = vector.extract_strided_slice %0 {offsets = [6, 0], sizes = [1, 64], strides = [1, 1]} : vector<8x64xf32> to vector<1x64xf32>
    %175 = vector.broadcast %174 : vector<1x64xf32> to vector<16x64xf32>
    %176 = arith.mulf %173, %175 : vector<16x64xf32>
    %177 = vector.extract_strided_slice %0 {offsets = [7, 0], sizes = [1, 64], strides = [1, 1]} : vector<8x64xf32> to vector<1x64xf32>
    %178 = vector.broadcast %177 : vector<1x64xf32> to vector<16x64xf32>
    %179 = arith.addf %176, %178 : vector<16x64xf32>
    %c0_107 = arith.constant 0 : index
    %c0_108 = arith.constant 0 : index
    %c0_109 = arith.constant 0 : index
    %180 = vector.load %arg9[%c0_107, %c0_108, %c0_109] : memref<3x64x64xf32, #tpu.memory_space<vmem>>, vector<1x64x64xf32>
    %181 = vector.shape_cast %180 : vector<1x64x64xf32> to vector<64x64xf32>
    %cst_110 = arith.constant dense<0.000000e+00> : vector<16x64xf32>
    %182 = tpu.matmul %179, %181, %cst_110 {dimension_numbers = #tpu.dot_dimension_numbers<[1], [0], [0], [1], [0, 0, 1, 1], [], []>} : vector<16x64xf32>, vector<64x64xf32>, vector<16x64xf32> -> vector<16x64xf32>
    %cst_111 = arith.constant dense<0.000000e+00> : vector<16x64xf32>
    %183 = tpu.matmul %100, %179, %cst_111 {dimension_numbers = #tpu.dot_dimension_numbers<[1], [0], [0], [1], [0, 0, 1, 1], [], []>} : vector<16x16xf32>, vector<16x64xf32>, vector<16x64xf32> -> vector<16x64xf32>
    %c1_112 = arith.constant 1 : index
    %c0_113 = arith.constant 0 : index
    %c0_114 = arith.constant 0 : index
    %184 = vector.load %arg9[%c1_112, %c0_113, %c0_114] : memref<3x64x64xf32, #tpu.memory_space<vmem>>, vector<1x64x64xf32>
    %185 = vector.shape_cast %184 : vector<1x64x64xf32> to vector<64x64xf32>
    %cst_115 = arith.constant dense<0.000000e+00> : vector<16x64xf32>
    %186 = tpu.matmul %183, %185, %cst_115 {dimension_numbers = #tpu.dot_dimension_numbers<[1], [0], [0], [1], [0, 0, 1, 1], [], []>} : vector<16x64xf32>, vector<64x64xf32>, vector<16x64xf32> -> vector<16x64xf32>
    %187 = arith.addf %182, %186 : vector<16x64xf32>
    %c2_116 = arith.constant 2 : index
    %c0_117 = arith.constant 0 : index
    %c0_118 = arith.constant 0 : index
    %188 = vector.load %arg9[%c2_116, %c0_117, %c0_118] : memref<3x64x64xf32, #tpu.memory_space<vmem>>, vector<1x64x64xf32>
    %189 = vector.shape_cast %188 : vector<1x64x64xf32> to vector<64x64xf32>
    %cst_119 = arith.constant 0.000000e+00 : f32
    %190 = vector.broadcast %cst_119 : f32 to vector<2x64xf32>
    %191 = vector.extract_strided_slice %187 {offsets = [0, 0], sizes = [2, 64], strides = [1, 1]} : vector<16x64xf32> to vector<2x64xf32>
    %cst_120 = arith.constant dense<0.000000e+00> : vector<2x64xf32>
    %192 = tpu.matmul %190, %189, %cst_120 {dimension_numbers = #tpu.dot_dimension_numbers<[1], [0], [0], [1], [0, 0, 1, 1], [], []>} : vector<2x64xf32>, vector<64x64xf32>, vector<2x64xf32> -> vector<2x64xf32>
    %193 = arith.addf %191, %192 : vector<2x64xf32>
    %194 = math.tanh %193 : vector<2x64xf32>
    %c0_121 = arith.constant 0 : index
    %c0_122 = arith.constant 0 : index
    %195 = vector.load %arg11[%c0_121, %c0_122] : memref<16x64xf32, #tpu.memory_space<vmem>>, vector<2x64xf32>
    tpu.vector_store %arg11[%c0_121, %c0_122], %194 {strides = array<i32>} : memref<16x64xf32, #tpu.memory_space<vmem>>, vector<2x64xf32>,
    %196 = vector.extract_strided_slice %187 {offsets = [2, 0], sizes = [2, 64], strides = [1, 1]} : vector<16x64xf32> to vector<2x64xf32>
    %cst_123 = arith.constant dense<0.000000e+00> : vector<2x64xf32>
    %197 = tpu.matmul %194, %189, %cst_123 {dimension_numbers = #tpu.dot_dimension_numbers<[1], [0], [0], [1], [0, 0, 1, 1], [], []>} : vector<2x64xf32>, vector<64x64xf32>, vector<2x64xf32> -> vector<2x64xf32>
    %198 = arith.addf %196, %197 : vector<2x64xf32>
    %199 = math.tanh %198 : vector<2x64xf32>
    %c2_124 = arith.constant 2 : index
    %c0_125 = arith.constant 0 : index
    %200 = vector.load %arg11[%c2_124, %c0_125] : memref<16x64xf32, #tpu.memory_space<vmem>>, vector<2x64xf32>
    tpu.vector_store %arg11[%c2_124, %c0_125], %199 {strides = array<i32>} : memref<16x64xf32, #tpu.memory_space<vmem>>, vector<2x64xf32>,
    %201 = vector.extract_strided_slice %187 {offsets = [4, 0], sizes = [2, 64], strides = [1, 1]} : vector<16x64xf32> to vector<2x64xf32>
    %cst_126 = arith.constant dense<0.000000e+00> : vector<2x64xf32>
    %202 = tpu.matmul %199, %189, %cst_126 {dimension_numbers = #tpu.dot_dimension_numbers<[1], [0], [0], [1], [0, 0, 1, 1], [], []>} : vector<2x64xf32>, vector<64x64xf32>, vector<2x64xf32> -> vector<2x64xf32>
    %203 = arith.addf %201, %202 : vector<2x64xf32>
    %204 = math.tanh %203 : vector<2x64xf32>
    %c4_127 = arith.constant 4 : index
    %c0_128 = arith.constant 0 : index
    %205 = vector.load %arg11[%c4_127, %c0_128] : memref<16x64xf32, #tpu.memory_space<vmem>>, vector<2x64xf32>
    tpu.vector_store %arg11[%c4_127, %c0_128], %204 {strides = array<i32>} : memref<16x64xf32, #tpu.memory_space<vmem>>, vector<2x64xf32>,
    %206 = vector.extract_strided_slice %187 {offsets = [6, 0], sizes = [2, 64], strides = [1, 1]} : vector<16x64xf32> to vector<2x64xf32>
    %cst_129 = arith.constant dense<0.000000e+00> : vector<2x64xf32>
    %207 = tpu.matmul %204, %189, %cst_129 {dimension_numbers = #tpu.dot_dimension_numbers<[1], [0], [0], [1], [0, 0, 1, 1], [], []>} : vector<2x64xf32>, vector<64x64xf32>, vector<2x64xf32> -> vector<2x64xf32>
    %208 = arith.addf %206, %207 : vector<2x64xf32>
    %209 = math.tanh %208 : vector<2x64xf32>
    %c6_130 = arith.constant 6 : index
    %c0_131 = arith.constant 0 : index
    %210 = vector.load %arg11[%c6_130, %c0_131] : memref<16x64xf32, #tpu.memory_space<vmem>>, vector<2x64xf32>
    tpu.vector_store %arg11[%c6_130, %c0_131], %209 {strides = array<i32>} : memref<16x64xf32, #tpu.memory_space<vmem>>, vector<2x64xf32>,
    %211 = vector.extract_strided_slice %187 {offsets = [8, 0], sizes = [2, 64], strides = [1, 1]} : vector<16x64xf32> to vector<2x64xf32>
    %cst_132 = arith.constant dense<0.000000e+00> : vector<2x64xf32>
    %212 = tpu.matmul %209, %189, %cst_132 {dimension_numbers = #tpu.dot_dimension_numbers<[1], [0], [0], [1], [0, 0, 1, 1], [], []>} : vector<2x64xf32>, vector<64x64xf32>, vector<2x64xf32> -> vector<2x64xf32>
    %213 = arith.addf %211, %212 : vector<2x64xf32>
    %214 = math.tanh %213 : vector<2x64xf32>
    %c8_133 = arith.constant 8 : index
    %c0_134 = arith.constant 0 : index
    %215 = vector.load %arg11[%c8_133, %c0_134] : memref<16x64xf32, #tpu.memory_space<vmem>>, vector<2x64xf32>
    tpu.vector_store %arg11[%c8_133, %c0_134], %214 {strides = array<i32>} : memref<16x64xf32, #tpu.memory_space<vmem>>, vector<2x64xf32>,
    %216 = vector.extract_strided_slice %187 {offsets = [10, 0], sizes = [2, 64], strides = [1, 1]} : vector<16x64xf32> to vector<2x64xf32>
    %cst_135 = arith.constant dense<0.000000e+00> : vector<2x64xf32>
    %217 = tpu.matmul %214, %189, %cst_135 {dimension_numbers = #tpu.dot_dimension_numbers<[1], [0], [0], [1], [0, 0, 1, 1], [], []>} : vector<2x64xf32>, vector<64x64xf32>, vector<2x64xf32> -> vector<2x64xf32>
    %218 = arith.addf %216, %217 : vector<2x64xf32>
    %219 = math.tanh %218 : vector<2x64xf32>
    %c10_136 = arith.constant 10 : index
    %c0_137 = arith.constant 0 : index
    %220 = vector.load %arg11[%c10_136, %c0_137] : memref<16x64xf32, #tpu.memory_space<vmem>>, vector<2x64xf32>
    tpu.vector_store %arg11[%c10_136, %c0_137], %219 {strides = array<i32>} : memref<16x64xf32, #tpu.memory_space<vmem>>, vector<2x64xf32>,
    %221 = vector.extract_strided_slice %187 {offsets = [12, 0], sizes = [2, 64], strides = [1, 1]} : vector<16x64xf32> to vector<2x64xf32>
    %cst_138 = arith.constant dense<0.000000e+00> : vector<2x64xf32>
    %222 = tpu.matmul %219, %189, %cst_138 {dimension_numbers = #tpu.dot_dimension_numbers<[1], [0], [0], [1], [0, 0, 1, 1], [], []>} : vector<2x64xf32>, vector<64x64xf32>, vector<2x64xf32> -> vector<2x64xf32>
    %223 = arith.addf %221, %222 : vector<2x64xf32>
    %224 = math.tanh %223 : vector<2x64xf32>
    %c12_139 = arith.constant 12 : index
    %c0_140 = arith.constant 0 : index
    %225 = vector.load %arg11[%c12_139, %c0_140] : memref<16x64xf32, #tpu.memory_space<vmem>>, vector<2x64xf32>
    tpu.vector_store %arg11[%c12_139, %c0_140], %224 {strides = array<i32>} : memref<16x64xf32, #tpu.memory_space<vmem>>, vector<2x64xf32>,
    %226 = vector.extract_strided_slice %187 {offsets = [14, 0], sizes = [2, 64], strides = [1, 1]} : vector<16x64xf32> to vector<2x64xf32>
    %cst_141 = arith.constant dense<0.000000e+00> : vector<2x64xf32>
    %227 = tpu.matmul %224, %189, %cst_141 {dimension_numbers = #tpu.dot_dimension_numbers<[1], [0], [0], [1], [0, 0, 1, 1], [], []>} : vector<2x64xf32>, vector<64x64xf32>, vector<2x64xf32> -> vector<2x64xf32>
    %228 = arith.addf %226, %227 : vector<2x64xf32>
    %229 = math.tanh %228 : vector<2x64xf32>
    %c14_142 = arith.constant 14 : index
    %c0_143 = arith.constant 0 : index
    %230 = vector.load %arg11[%c14_142, %c0_143] : memref<16x64xf32, #tpu.memory_space<vmem>>, vector<2x64xf32>
    tpu.vector_store %arg11[%c14_142, %c0_143], %229 {strides = array<i32>} : memref<16x64xf32, #tpu.memory_space<vmem>>, vector<2x64xf32>,
    %c0_144 = arith.constant 0 : index
    %c0_145 = arith.constant 0 : index
    %231 = vector.load %arg11[%c0_144, %c0_145] : memref<16x64xf32, #tpu.memory_space<vmem>>, vector<16x64xf32>
    %cst_146 = arith.constant dense<0.000000e+00> : vector<16x64xf32>
    %232 = tpu.matmul %100, %231, %cst_146 {dimension_numbers = #tpu.dot_dimension_numbers<[1], [0], [0], [1], [0, 0, 1, 1], [], []>} : vector<16x16xf32>, vector<16x64xf32>, vector<16x64xf32> -> vector<16x64xf32>
    %233 = arith.select %103, %231, %232 : vector<16x64xi1>, vector<16x64xf32>
    %c0_147 = arith.constant 0 : index
    %c0_148 = arith.constant 0 : index
    %234 = vector.load %arg10[%c0_147, %c0_148] : memref<16x64xf32, #tpu.memory_space<vmem>>, vector<16x64xf32>
    tpu.vector_store %arg10[%c0_147, %c0_148], %233 {strides = array<i32>} : memref<16x64xf32, #tpu.memory_space<vmem>>, vector<16x64xf32>,
    return
  }
}

</mosaic_0001>

<llo_original>
// kernel: encoder_forward.1
$region0: #{encoder_forward.1}
  #allocation0 [shape = 'u32[]', space=smem, size = 0x4, offset = 0x4, fixed_abs, tag = 'smem constant byte address 0x4 - core index']
  #allocation1 [shape = 'u32[144,128]{1,0:T(1,128)}', space=vmem, size = 0x12000, scoped, tag = 'internal scratch']
  #allocation2 [shape = 'f32[16,64]{1,0:T(8,128)}', space=vmem, size = 0x2000, scoped, tag = 'scratch operand']
  %s0 = inlined_call_operand.hbm [shape: f32[32,16], index: 0, kind: input, shape index: {}]
  %s1 = inlined_call_operand.hbm [shape: f32[3,16,32], index: 1, kind: input, shape index: {}]
  %s2 = inlined_call_operand.hbm [shape: f32[3,16,64], index: 2, kind: input, shape index: {}]
  %s3 = inlined_call_operand.hbm [shape: f32[3,16,16], index: 3, kind: input, shape index: {}]
  %s4 = inlined_call_operand.hbm [shape: f32[3,64,64], index: 4, kind: input, shape index: {}]
  %s5 = inlined_call_operand.hbm [shape: f32[2,64,64], index: 5, kind: input, shape index: {}]
  %s6 = inlined_call_operand.vmem [shape: f32[8,64], index: 6, kind: input, shape index: {}]
  %s7 = inlined_call_operand.vmem [shape: f32[16,16], index: 7, kind: input, shape index: {}]
  %s8 = inlined_call_operand.hbm [shape: f32[3,64,64], index: 8, kind: input, shape index: {}]
  %s9 = inlined_call_operand.hbm [shape: f32[3,64,64], index: 9, kind: input, shape index: {}]
  %s10 = inlined_call_operand.hbm [shape: f32[16,64], index: 10, kind: output, shape index: {}]
  %s11 = sld [smem:[#allocation0]]
  $region82: #{encoder_forward.1} parent=0
    _
  %s13 = ssub.s32 1, %s11
  %s14 = scalar_select 0, %s13, %s11
  $region1: #{encoder_forward.1} parent=0
    #allocation3 [shape = 'u8[16384]{0}', space=vmem, size = 0x4000, scoped, tag = 'input window, operand 0, single buffered']
    #allocation4 [shape = 's32[1]{0}', space=sflag, size = 0x4, scoped, tag = 'scoped memory for encoder_forward.1']
    #allocation5 [shape = 's32[1]{0}', space=sflag, size = 0x4, scoped, tag = 'scoped memory for encoder_forward.1']
    #allocation6 [shape = 'u8[24576]{0}', space=vmem, size = 0x6000, scoped, tag = 'input window, operand 1, single buffered']
    #allocation7 [shape = 's32[1]{0}', space=sflag, size = 0x4, scoped, tag = 'scoped memory for encoder_forward.1']
    #allocation8 [shape = 'u8[24576]{0}', space=vmem, size = 0x6000, scoped, tag = 'input window, operand 2, single buffered']
    #allocation9 [shape = 'u8[24576]{0}', space=vmem, size = 0x6000, scoped, tag = 'input window, operand 3, single buffered']
    #allocation10 [shape = 's32[1]{0}', space=sflag, size = 0x4, scoped, tag = 'scoped memory for encoder_forward.1']
    #allocation11 [shape = 'u8[98304]{0}', space=vmem, size = 0x18000, scoped, tag = 'input window, operand 4, single buffered']
    #allocation12 [shape = 'u8[65536]{0}', space=vmem, size = 0x10000, scoped, tag = 'input window, operand 5, single buffered']
    #allocation13 [shape = 's32[1]{0}', space=sflag, size = 0x4, scoped, tag = 'scoped memory for encoder_forward.1']
    #allocation14 [shape = 'u8[98304]{0}', space=vmem, size = 0x18000, scoped, tag = 'input window, operand 8, single buffered']
    #allocation15 [shape = 'u8[98304]{0}', space=vmem, size = 0x18000, scoped, tag = 'input window, operand 9, single buffered']
    #allocation16 [shape = 's32[1]{0}', space=sflag, size = 0x4, scoped, tag = 'scoped memory for encoder_forward.1']
    #allocation17 [shape = 'u8[8192]{0}', space=vmem, size = 0x2000, scoped, tag = 'output window, operand 0, single buffered']
    %15 = vsyncpa [#allocation4], 0
    %16 = vsyncpa [#allocation7], 0
    %17 = vsyncpa [#allocation10], 0
    %18 = vsyncpa [#allocation13], 0
    %19 = vsyncpa [#allocation16], 0
    %20 = vsyncpa [#allocation5], 0
    // Predicated region
    $region2: #{encoder_forward.1} parent=1 // pred_check
      _
    $region3: #{encoder_forward.1} parent=1 // pred_check_branch
      %22 = sbr.rel (0) target = $region5
    $region4: #{encoder_forward.1} parent=1 // pred_region
      %s24 = ssub.s32 512, 512
      %25 = vsyncadd [#allocation4], %s24
      %s26 = sshll.u32 [#allocation3], 4
      %s27 = int_to_ptr.vmem [resolvable:$true] %s26
      %32 = dma.hbm_to_vmem [thread:$0]  %s0, 512, %s27, [#allocation4], 128, 128, 8
    $region5: #{encoder_forward.1} parent=1 // pred_fallthru
      _
    // Predicated region
    $region6: #{encoder_forward.1} parent=1 // pred_check
      _
    $region7: #{encoder_forward.1} parent=1 // pred_check_branch
      %34 = sbr.rel (0) target = $region9
    $region8: #{encoder_forward.1} parent=1 // pred_region
      %s36 = ssub.s32 768, 768
      %37 = vsyncadd [#allocation7], %s36
      %s38 = sshll.u32 [#allocation6], 4
      %s39 = int_to_ptr.vmem [resolvable:$true] %s38
      %44 = dma.hbm_to_vmem [thread:$0]  %s1, 768, %s39, [#allocation7], 128, 128, 8
    $region9: #{encoder_forward.1} parent=1 // pred_fallthru
      _
    // Predicated region
    $region10: #{encoder_forward.1} parent=1 // pred_check
      _
    $region11: #{encoder_forward.1} parent=1 // pred_check_branch
      %46 = sbr.rel (0) target = $region13
    $region12: #{encoder_forward.1} parent=1 // pred_region
      %s48 = ssub.s32 768, 768
      %49 = vsyncadd [#allocation7], %s48
      %s50 = sshll.u32 [#allocation8], 4
      %s51 = int_to_ptr.vmem [resolvable:$true] %s50
      %56 = dma.hbm_to_vmem [thread:$0]  %s2, 768, %s51, [#allocation7], 128, 128, 8
    $region13: #{encoder_forward.1} parent=1 // pred_fallthru
      _
    // Predicated region
    $region14: #{encoder_forward.1} parent=1 // pred_check
      _
    $region15: #{encoder_forward.1} parent=1 // pred_check_branch
      %58 = sbr.rel (0) target = $region17
    $region16: #{encoder_forward.1} parent=1 // pred_region
      %s60 = ssub.s32 768, 768
      %61 = vsyncadd [#allocation10], %s60
      %s62 = sshll.u32 [#allocation9], 4
      %s63 = int_to_ptr.vmem [resolvable:$true] %s62
      %68 = dma.hbm_to_vmem [thread:$0]  %s3, 768, %s63, [#allocation10], 128, 128, 8
    $region17: #{encoder_forward.1} parent=1 // pred_fallthru
      _
    // Predicated region
    $region18: #{encoder_forward.1} parent=1 // pred_check
      _
    $region19: #{encoder_forward.1} parent=1 // pred_check_branch
      %70 = sbr.rel (0) target = $region21
    $region20: #{encoder_forward.1} parent=1 // pred_region
      %s72 = ssub.s32 3072, 3072
      %73 = vsyncadd [#allocation10], %s72
      %s74 = sshll.u32 [#allocation11], 4
      %s75 = int_to_ptr.vmem [resolvable:$true] %s74
      %80 = dma.hbm_to_vmem [thread:$0]  %s4, 3072, %s75, [#allocation10], 128, 128, 8
    $region21: #{encoder_forward.1} parent=1 // pred_fallthru
      _
    // Predicated region
    $region22: #{encoder_forward.1} parent=1 // pred_check
      _
    $region23: #{encoder_forward.1} parent=1 // pred_check_branch
      %82 = sbr.rel (0) target = $region25
    $region24: #{encoder_forward.1} parent=1 // pred_region
      %s84 = ssub.s32 2048, 2048
      %85 = vsyncadd [#allocation13], %s84
      %s86 = sshll.u32 [#allocation12], 4
      %s87 = int_to_ptr.vmem [resolvable:$true] %s86
      %92 = dma.hbm_to_vmem [thread:$0]  %s5, 2048, %s87, [#allocation13], 128, 128, 8
    $region25: #{encoder_forward.1} parent=1 // pred_fallthru
      _
    // Predicated region
    $region26: #{encoder_forward.1} parent=1 // pred_check
      _
    $region27: #{encoder_forward.1} parent=1 // pred_check_branch
      %94 = sbr.rel (0) target = $region29
    $region28: #{encoder_forward.1} parent=1 // pred_region
      _
    $region29: #{encoder_forward.1} parent=1 // pred_fallthru
      _
    // Predicated region
    $region30: #{encoder_forward.1} parent=1 // pred_check
      _
    $region31: #{encoder_forward.1} parent=1 // pred_check_branch
      %96 = sbr.rel (0) target = $region33
    $region32: #{encoder_forward.1} parent=1 // pred_region
      _
    $region33: #{encoder_forward.1} parent=1 // pred_fallthru
      _
    // Predicated region
    $region34: #{encoder_forward.1} parent=1 // pred_check
      _
    $region35: #{encoder_forward.1} parent=1 // pred_check_branch
      %98 = sbr.rel (0) target = $region37
    $region36: #{encoder_forward.1} parent=1 // pred_region
      %s100 = ssub.s32 3072, 3072
      %101 = vsyncadd [#allocation13], %s100
      %s102 = sshll.u32 [#allocation14], 4
      %s103 = int_to_ptr.vmem [resolvable:$true] %s102
      %108 = dma.hbm_to_vmem [thread:$0]  %s8, 3072, %s103, [#allocation13], 128, 128, 8
    $region37: #{encoder_forward.1} parent=1 // pred_fallthru
      _
    // Predicated region
    $region38: #{encoder_forward.1} parent=1 // pred_check
      _
    $region39: #{encoder_forward.1} parent=1 // pred_check_branch
      %110 = sbr.rel (0) target = $region41
    $region40: #{encoder_forward.1} parent=1 // pred_region
      %s112 = ssub.s32 3072, 3072
      %113 = vsyncadd [#allocation16], %s112
      %s114 = sshll.u32 [#allocation15], 4
      %s115 = int_to_ptr.vmem [resolvable:$true] %s114
      %120 = dma.hbm_to_vmem [thread:$0]  %s9, 3072, %s115, [#allocation16], 128, 128, 8
    $region41: #{encoder_forward.1} parent=1 // pred_fallthru
      _
    // Predicated region
    $region42: #{encoder_forward.1} parent=1 // pred_check
      _
    $region43: #{encoder_forward.1} parent=1 // pred_check_branch
      %122 = sbr.rel (0) target = $region45
    $region44: #{encoder_forward.1} parent=1 // pred_region
      %123 = dma.done [#allocation4], 512
    $region45: #{encoder_forward.1} parent=1 // pred_fallthru
      _
    // Predicated region
    $region46: #{encoder_forward.1} parent=1 // pred_check
      _
    $region47: #{encoder_forward.1} parent=1 // pred_check_branch
      %125 = sbr.rel (0) target = $region49
    $region48: #{encoder_forward.1} parent=1 // pred_region
      %126 = dma.done [#allocation7], 768
    $region49: #{encoder_forward.1} parent=1 // pred_fallthru
      _
    // Predicated region
    $region50: #{encoder_forward.1} parent=1 // pred_check
      _
    $region51: #{encoder_forward.1} parent=1 // pred_check_branch
      %128 = sbr.rel (0) target = $region53
    $region52: #{encoder_forward.1} parent=1 // pred_region
      %129 = dma.done [#allocation7], 768
    $region53: #{encoder_forward.1} parent=1 // pred_fallthru
      _
    // Predicated region
    $region54: #{encoder_forward.1} parent=1 // pred_check
      _
    $region55: #{encoder_forward.1} parent=1 // pred_check_branch
      %131 = sbr.rel (0) target = $region57
    $region56: #{encoder_forward.1} parent=1 // pred_region
      %132 = dma.done [#allocation10], 768
    $region57: #{encoder_forward.1} parent=1 // pred_fallthru
      _
    // Predicated region
    $region58: #{encoder_forward.1} parent=1 // pred_check
      _
    $region59: #{encoder_forward.1} parent=1 // pred_check_branch
      %134 = sbr.rel (0) target = $region61
    $region60: #{encoder_forward.1} parent=1 // pred_region
      %135 = dma.done [#allocation10], 3072
    $region61: #{encoder_forward.1} parent=1 // pred_fallthru
      _
    // Predicated region
    $region62: #{encoder_forward.1} parent=1 // pred_check
      _
    $region63: #{encoder_forward.1} parent=1 // pred_check_branch
      %137 = sbr.rel (0) target = $region65
    $region64: #{encoder_forward.1} parent=1 // pred_region
      %138 = dma.done [#allocation13], 2048
    $region65: #{encoder_forward.1} parent=1 // pred_fallthru
      _
    // Predicated region
    $region66: #{encoder_forward.1} parent=1 // pred_check
      _
    $region67: #{encoder_forward.1} parent=1 // pred_check_branch
      %140 = sbr.rel (0) target = $region69
    $region68: #{encoder_forward.1} parent=1 // pred_region
      %141 = dma.done [#allocation13], 3072
    $region69: #{encoder_forward.1} parent=1 // pred_fallthru
      _
    // Predicated region
    $region70: #{encoder_forward.1} parent=1 // pred_check
      _
    $region71: #{encoder_forward.1} parent=1 // pred_check_branch
      %143 = sbr.rel (0) target = $region73
    $region72: #{encoder_forward.1} parent=1 // pred_region
      %144 = dma.done [#allocation16], 3072
    $region73: #{encoder_forward.1} parent=1 // pred_fallthru
      _
    %v145 = vld [vmem:[%s6] sm:$0xff]
    %v146 = vld [vmem:[#allocation3] sm:$0xff]
    %v147 = vld [vmem:[#allocation3 + $0x8] sm:$0xff]
    %v148 = vld [vmem:[#allocation3 + $0x10] sm:$0xff]
    %v149 = vld [vmem:[#allocation3 + $0x18] sm:$0xff]
    %v150 = vld [vmem:[#allocation12] sm:$0xff]
    %v151 = vld [vmem:[#allocation12 + $0x8] sm:$0xff]
    %v152 = vld [vmem:[#allocation12 + $0x10] sm:$0xff]
    %v153 = vld [vmem:[#allocation12 + $0x18] sm:$0xff]
    %v154 = vld [vmem:[#allocation12 + $0x20] sm:$0xff]
    %v155 = vld [vmem:[#allocation12 + $0x28] sm:$0xff]
    %v156 = vld [vmem:[#allocation12 + $0x30] sm:$0xff]
    %v157 = vld [vmem:[#allocation12 + $0x38] sm:$0xff]
    %v158 = vld [vmem:[#allocation6] sm:$0xff]
    %v159 = vld [vmem:[#allocation6 + $0x8] sm:$0xff]
    %vm160 = vcmask 261120
    %v162 = vsel %vm160, %v158, 0
    %v165 = vsel %vm160, %v159, 0
    %167 = vmatprep.subr.mxu0 0.0
    %168 = vmatpush1.msra.mxu0 %v146
    %169 = vmatprep.subr.mxu0 0.0
    %170 = vmatpush1.msra.mxu0 %v147
    %171 = vmatprep.subr.mxu0 0.0
    %172 = vmatpush1.msra.mxu0 %v148
    %173 = vmatprep.subr.mxu0 0.0
    %174 = vmatpush1.msra.mxu0 %v149
    %175 = vmatprep.subr.mxu0 0.0
    %176 = vmatpush1.msra.mxu0 0.0
    %177 = vmatprep.subr.mxu0 0.0
    %178 = vmatpush1.msra.mxu0 0.0
    %179 = vmatprep.subr.mxu0 0.0
    %180 = vmatpush1.msra.mxu0 0.0
    %181 = vmatprep.subr.mxu0 0.0
    %182 = vmatpush1.msra.mxu0 0.0
    %183 = vmatprep.subr.mxu0 0.0
    %184 = vmatpush1.msra.mxu0 0.0
    %185 = vmatprep.subr.mxu0 0.0
    %186 = vmatpush1.msra.mxu0 0.0
    %187 = vmatprep.subr.mxu0 0.0
    %188 = vmatpush1.msra.mxu0 0.0
    %189 = vmatprep.subr.mxu0 0.0
    %190 = vmatpush1.msra.mxu0 0.0
    %191 = vmatprep.subr.mxu0 0.0
    %192 = vmatpush1.msra.mxu0 0.0
    %193 = vmatprep.subr.mxu0 0.0
    %194 = vmatpush1.msra.mxu0 0.0
    %195 = vmatprep.subr.mxu0 0.0
    %196 = vmatpush1.msra.mxu0 0.0
    %197 = vmatprep.subr.mxu0 0.0
    %198 = vmatpush1.msra.mxu0 0.0
    %199 = vmatprep.subr.mxu0 0.0
    %200 = vmatpush1.msra.mxu0 0.0
    %201 = vmatprep.subr.mxu0 0.0
    %202 = vmatpush1.msra.mxu0 0.0
    %203 = vmatprep.subr.mxu0 0.0
    %204 = vmatpush1.msra.mxu0 0.0
    %205 = vmatprep.subr.mxu0 0.0
    %206 = vmatpush1.msra.mxu0 0.0
    %207 = vmatprep.subr.mxu0 0.0
    %208 = vmatpush1.msra.mxu0 0.0
    %209 = vmatprep.subr.mxu0 0.0
    %210 = vmatpush1.msra.mxu0 0.0
    %211 = vmatprep.subr.mxu0 0.0
    %212 = vmatpush1.msra.mxu0 0.0
    %213 = vmatprep.subr.mxu0 0.0
    %214 = vmatpush1.msra.mxu0 0.0
    %215 = vmatprep.subr.mxu0 0.0
    %216 = vmatpush1.msra.mxu0 0.0
    %217 = vmatprep.subr.mxu0 0.0
    %218 = vmatpush1.msra.mxu0 0.0
    %219 = vmatprep.subr.mxu0 0.0
    %220 = vmatpush1.msra.mxu0 0.0
    %221 = vmatprep.subr.mxu0 0.0
    %222 = vmatpush1.msra.mxu0 0.0
    %223 = vmatprep.subr.mxu0 0.0
    %224 = vmatpush1.msra.mxu0 0.0
    %225 = vmatprep.subr.mxu0 0.0
    %226 = vmatpush1.msra.mxu0 0.0
    %227 = vmatprep.subr.mxu0 0.0
    %228 = vmatpush1.msra.mxu0 0.0
    %229 = vmatprep.subr.mxu0 0.0
    %230 = vmatpush1.msra.mxu0 0.0
    %231 = vmatprep.mubr.f32.mxu0 0.0
    %232 = vmatmul.mubr.f32.gmra.mrb[0].mxu0 %v162
    %v233 = vpop.f32.mrb[0].mxu0
    %v234 = vadd.f32 0.0, %v233
    %v235 = vpop.f32.mrb[0].mxu0
    %236 = vmatprep.mubr.f32.mxu0 0.0
    %237 = vmatmul.mubr.f32.gmra.mrb[0].mxu0 %v165
    %v238 = vpop.f32.mrb[0].mxu0
    %v239 = vadd.f32 0.0, %v238
    %v240 = vpop.f32.mrb[0].mxu0
    %241 = vdwg.mxu0
    %v242 = vld [vmem:[#allocation8] sm:$0xff]
    %v243 = vld [vmem:[#allocation8 + $0x8] sm:$0xff]
    %s244 = scalar_lea.vmem [#allocation6], 16
    %v245 = vld [vmem:[%s244] sm:$0xff]
    %v246 = vld [vmem:[%s244 + $0x8] sm:$0xff]
    %v248 = vsel %vm160, %v245, 0
    %v251 = vsel %vm160, %v246, 0
    %253 = vmatprep.subr.mxu0 0.0
    %254 = vmatpush1.msra.mxu0 %v146
    %255 = vmatprep.subr.mxu0 0.0
    %256 = vmatpush1.msra.mxu0 %v147
    %257 = vmatprep.subr.mxu0 0.0
    %258 = vmatpush1.msra.mxu0 %v148
    %259 = vmatprep.subr.mxu0 0.0
    %260 = vmatpush1.msra.mxu0 %v149
    %261 = vmatprep.subr.mxu0 0.0
    %262 = vmatpush1.msra.mxu0 0.0
    %263 = vmatprep.subr.mxu0 0.0
    %264 = vmatpush1.msra.mxu0 0.0
    %265 = vmatprep.subr.mxu0 0.0
    %266 = vmatpush1.msra.mxu0 0.0
    %267 = vmatprep.subr.mxu0 0.0
    %268 = vmatpush1.msra.mxu0 0.0
    %269 = vmatprep.subr.mxu0 0.0
    %270 = vmatpush1.msra.mxu0 0.0
    %271 = vmatprep.subr.mxu0 0.0
    %272 = vmatpush1.msra.mxu0 0.0
    %273 = vmatprep.subr.mxu0 0.0
    %274 = vmatpush1.msra.mxu0 0.0
    %275 = vmatprep.subr.mxu0 0.0
    %276 = vmatpush1.msra.mxu0 0.0
    %277 = vmatprep.subr.mxu0 0.0
    %278 = vmatpush1.msra.mxu0 0.0
    %279 = vmatprep.subr.mxu0 0.0
    %280 = vmatpush1.msra.mxu0 0.0
    %281 = vmatprep.subr.mxu0 0.0
    %282 = vmatpush1.msra.mxu0 0.0
    %283 = vmatprep.subr.mxu0 0.0
    %284 = vmatpush1.msra.mxu0 0.0
    %285 = vmatprep.subr.mxu0 0.0
    %286 = vmatpush1.msra.mxu0 0.0
    %287 = vmatprep.subr.mxu0 0.0
    %288 = vmatpush1.msra.mxu0 0.0
    %289 = vmatprep.subr.mxu0 0.0
    %290 = vmatpush1.msra.mxu0 0.0
    %291 = vmatprep.subr.mxu0 0.0
    %292 = vmatpush1.msra.mxu0 0.0
    %293 = vmatprep.subr.mxu0 0.0
    %294 = vmatpush1.msra.mxu0 0.0
    %295 = vmatprep.subr.mxu0 0.0
    %296 = vmatpush1.msra.mxu0 0.0
    %297 = vmatprep.subr.mxu0 0.0
    %298 = vmatpush1.msra.mxu0 0.0
    %299 = vmatprep.subr.mxu0 0.0
    %300 = vmatpush1.msra.mxu0 0.0
    %301 = vmatprep.subr.mxu0 0.0
    %302 = vmatpush1.msra.mxu0 0.0
    %303 = vmatprep.subr.mxu0 0.0
    %304 = vmatpush1.msra.mxu0 0.0
    %305 = vmatprep.subr.mxu0 0.0
    %306 = vmatpush1.msra.mxu0 0.0
    %307 = vmatprep.subr.mxu0 0.0
    %308 = vmatpush1.msra.mxu0 0.0
    %309 = vmatprep.subr.mxu0 0.0
    %310 = vmatpush1.msra.mxu0 0.0
    %311 = vmatprep.subr.mxu0 0.0
    %312 = vmatpush1.msra.mxu0 0.0
    %313 = vmatprep.subr.mxu0 0.0
    %314 = vmatpush1.msra.mxu0 0.0
    %315 = vmatprep.subr.mxu0 0.0
    %316 = vmatpush1.msra.mxu0 0.0
    %317 = vmatprep.mubr.f32.mxu0 0.0
    %318 = vmatmul.mubr.f32.gmra.mrb[0].mxu0 %v248
    %v319 = vpop.f32.mrb[0].mxu0
    %v320 = vadd.f32 0.0, %v319
    %v321 = vpop.f32.mrb[0].mxu0
    %322 = vmatprep.mubr.f32.mxu0 0.0
    %323 = vmatmul.mubr.f32.gmra.mrb[0].mxu0 %v251
    %v324 = vpop.f32.mrb[0].mxu0
    %v325 = vadd.f32 0.0, %v324
    %v326 = vpop.f32.mrb[0].mxu0
    %327 = vdwg.mxu0
    %s328 = scalar_lea.vmem [#allocation8], 16
    %v329 = vld [vmem:[%s328] sm:$0xff]
    %v330 = vld [vmem:[%s328 + $0x8] sm:$0xff]
    %vm331 = vcmask 130048
    %v333 = vsel %vm331, %v320, 0
    %v336 = vsel %vm331, %v325, 0
    %338 = vmatprep.subr.mxu0 0.0
    %339 = vmatpush1.msra.mxu0 %v329
    %340 = vmatprep.subr.mxu0 0.0
    %341 = vmatpush1.msra.mxu0 %v330
    %342 = vmatprep.subr.mxu0 0.0
    %343 = vmatpush1.msra.mxu0 0.0
    %344 = vmatprep.subr.mxu0 0.0
    %345 = vmatpush1.msra.mxu0 0.0
    %346 = vmatprep.subr.mxu0 0.0
    %347 = vmatpush1.msra.mxu0 0.0
    %348 = vmatprep.subr.mxu0 0.0
    %349 = vmatpush1.msra.mxu0 0.0
    %350 = vmatprep.subr.mxu0 0.0
    %351 = vmatpush1.msra.mxu0 0.0
    %352 = vmatprep.subr.mxu0 0.0
    %353 = vmatpush1.msra.mxu0 0.0
    %354 = vmatprep.subr.mxu0 0.0
    %355 = vmatpush1.msra.mxu0 0.0
    %356 = vmatprep.subr.mxu0 0.0
    %357 = vmatpush1.msra.mxu0 0.0
    %358 = vmatprep.subr.mxu0 0.0
    %359 = vmatpush1.msra.mxu0 0.0
    %360 = vmatprep.subr.mxu0 0.0
    %361 = vmatpush1.msra.mxu0 0.0
    %362 = vmatprep.subr.mxu0 0.0
    %363 = vmatpush1.msra.mxu0 0.0
    %364 = vmatprep.subr.mxu0 0.0
    %365 = vmatpush1.msra.mxu0 0.0
    %366 = vmatprep.subr.mxu0 0.0
    %367 = vmatpush1.msra.mxu0 0.0
    %368 = vmatprep.subr.mxu0 0.0
    %369 = vmatpush1.msra.mxu0 0.0
    %370 = vmatprep.subr.mxu0 0.0
    %371 = vmatpush1.msra.mxu0 0.0
    %372 = vmatprep.subr.mxu0 0.0
    %373 = vmatpush1.msra.mxu0 0.0
    %374 = vmatprep.subr.mxu0 0.0
    %375 = vmatpush1.msra.mxu0 0.0
    %376 = vmatprep.subr.mxu0 0.0
    %377 = vmatpush1.msra.mxu0 0.0
    %378 = vmatprep.subr.mxu0 0.0
    %379 = vmatpush1.msra.mxu0 0.0
    %380 = vmatprep.subr.mxu0 0.0
    %381 = vmatpush1.msra.mxu0 0.0
    %382 = vmatprep.subr.mxu0 0.0
    %383 = vmatpush1.msra.mxu0 0.0
    %384 = vmatprep.subr.mxu0 0.0
    %385 = vmatpush1.msra.mxu0 0.0
    %386 = vmatprep.subr.mxu0 0.0
    %387 = vmatpush1.msra.mxu0 0.0
    %388 = vmatprep.subr.mxu0 0.0
    %389 = vmatpush1.msra.mxu0 0.0
    %390 = vmatprep.subr.mxu0 0.0
    %391 = vmatpush1.msra.mxu0 0.0
    %392 = vmatprep.subr.mxu0 0.0
    %393 = vmatpush1.msra.mxu0 0.0
    %394 = vmatprep.subr.mxu0 0.0
    %395 = vmatpush1.msra.mxu0 0.0
    %396 = vmatprep.subr.mxu0 0.0
    %397 = vmatpush1.msra.mxu0 0.0
    %398 = vmatprep.subr.mxu0 0.0
    %399 = vmatpush1.msra.mxu0 0.0
    %400 = vmatprep.subr.mxu0 0.0
    %401 = vmatpush1.msra.mxu0 0.0
    %402 = vmatprep.mubr.f32.mxu0 0.0
    %403 = vmatmul.mubr.f32.gmra.mrb[0].mxu0 %v333
    %v404 = vpop.f32.mrb[0].mxu0
    %v405 = vadd.f32 0.0, %v404
    %v406 = vpop.f32.mrb[0].mxu0
    %407 = vmatprep.mubr.f32.mxu0 0.0
    %408 = vmatmul.mubr.f32.gmra.mrb[0].mxu0 %v336
    %v409 = vpop.f32.mrb[0].mxu0
    %v410 = vadd.f32 0.0, %v409
    %v411 = vpop.f32.mrb[0].mxu0
    %412 = vdwg.mxu0
    %v414 = vsel %vm331, %v234, 0
    %v417 = vsel %vm331, %v239, 0
    %419 = vmatprep.subr.mxu0 0.0
    %420 = vmatpush1.msra.mxu0 %v242
    %421 = vmatprep.subr.mxu0 0.0
    %422 = vmatpush1.msra.mxu0 %v243
    %423 = vmatprep.subr.mxu0 0.0
    %424 = vmatpush1.msra.mxu0 0.0
    %425 = vmatprep.subr.mxu0 0.0
    %426 = vmatpush1.msra.mxu0 0.0
    %427 = vmatprep.subr.mxu0 0.0
    %428 = vmatpush1.msra.mxu0 0.0
    %429 = vmatprep.subr.mxu0 0.0
    %430 = vmatpush1.msra.mxu0 0.0
    %431 = vmatprep.subr.mxu0 0.0
    %432 = vmatpush1.msra.mxu0 0.0
    %433 = vmatprep.subr.mxu0 0.0
    %434 = vmatpush1.msra.mxu0 0.0
    %435 = vmatprep.subr.mxu0 0.0
    %436 = vmatpush1.msra.mxu0 0.0
    %437 = vmatprep.subr.mxu0 0.0
    %438 = vmatpush1.msra.mxu0 0.0
    %439 = vmatprep.subr.mxu0 0.0
    %440 = vmatpush1.msra.mxu0 0.0
    %441 = vmatprep.subr.mxu0 0.0
    %442 = vmatpush1.msra.mxu0 0.0
    %443 = vmatprep.subr.mxu0 0.0
    %444 = vmatpush1.msra.mxu0 0.0
    %445 = vmatprep.subr.mxu0 0.0
    %446 = vmatpush1.msra.mxu0 0.0
    %447 = vmatprep.subr.mxu0 0.0
    %448 = vmatpush1.msra.mxu0 0.0
    %449 = vmatprep.subr.mxu0 0.0
    %450 = vmatpush1.msra.mxu0 0.0
    %451 = vmatprep.subr.mxu0 0.0
    %452 = vmatpush1.msra.mxu0 0.0
    %453 = vmatprep.subr.mxu0 0.0
    %454 = vmatpush1.msra.mxu0 0.0
    %455 = vmatprep.subr.mxu0 0.0
    %456 = vmatpush1.msra.mxu0 0.0
    %457 = vmatprep.subr.mxu0 0.0
    %458 = vmatpush1.msra.mxu0 0.0
    %459 = vmatprep.subr.mxu0 0.0
    %460 = vmatpush1.msra.mxu0 0.0
    %461 = vmatprep.subr.mxu0 0.0
    %462 = vmatpush1.msra.mxu0 0.0
    %463 = vmatprep.subr.mxu0 0.0
    %464 = vmatpush1.msra.mxu0 0.0
    %465 = vmatprep.subr.mxu0 0.0
    %466 = vmatpush1.msra.mxu0 0.0
    %467 = vmatprep.subr.mxu0 0.0
    %468 = vmatpush1.msra.mxu0 0.0
    %469 = vmatprep.subr.mxu0 0.0
    %470 = vmatpush1.msra.mxu0 0.0
    %471 = vmatprep.subr.mxu0 0.0
    %472 = vmatpush1.msra.mxu0 0.0
    %473 = vmatprep.subr.mxu0 0.0
    %474 = vmatpush1.msra.mxu0 0.0
    %475 = vmatprep.subr.mxu0 0.0
    %476 = vmatpush1.msra.mxu0 0.0
    %477 = vmatprep.subr.mxu0 0.0
    %478 = vmatpush1.msra.mxu0 0.0
    %479 = vmatprep.subr.mxu0 0.0
    %480 = vmatpush1.msra.mxu0 0.0
    %481 = vmatprep.subr.mxu0 0.0
    %482 = vmatpush1.msra.mxu0 0.0
    %483 = vmatprep.mubr.f32.mxu0 0.0
    %484 = vmatmul.mubr.f32.gmra.mrb[0].mxu0 %v414
    %v485 = vpop.f32.mrb[0].mxu0
    %v486 = vadd.f32 %v405, %v485
    %v487 = vpop.f32.mrb[0].mxu0
    %488 = vmatprep.mubr.f32.mxu0 0.0
    %489 = vmatmul.mubr.f32.gmra.mrb[0].mxu0 %v417
    %v490 = vpop.f32.mrb[0].mxu0
    %v491 = vadd.f32 %v410, %v490
    %v492 = vpop.f32.mrb[0].mxu0
    %493 = vdwg.mxu0
    %s494 = scalar_lea.vmem [#allocation6], 32
    %v495 = vld [vmem:[%s494] sm:$0xff]
    %v496 = vld [vmem:[%s494 + $0x8] sm:$0xff]
    %v498 = vsel %vm160, %v495, 0
    %v501 = vsel %vm160, %v496, 0
    %503 = vmatprep.subr.mxu0 0.0
    %504 = vmatpush1.msra.mxu0 %v146
    %505 = vmatprep.subr.mxu0 0.0
    %506 = vmatpush1.msra.mxu0 %v147
    %507 = vmatprep.subr.mxu0 0.0
    %508 = vmatpush1.msra.mxu0 %v148
    %509 = vmatprep.subr.mxu0 0.0
    %510 = vmatpush1.msra.mxu0 %v149
    %511 = vmatprep.subr.mxu0 0.0
    %512 = vmatpush1.msra.mxu0 0.0
    %513 = vmatprep.subr.mxu0 0.0
    %514 = vmatpush1.msra.mxu0 0.0
    %515 = vmatprep.subr.mxu0 0.0
    %516 = vmatpush1.msra.mxu0 0.0
    %517 = vmatprep.subr.mxu0 0.0
    %518 = vmatpush1.msra.mxu0 0.0
    %519 = vmatprep.subr.mxu0 0.0
    %520 = vmatpush1.msra.mxu0 0.0
    %521 = vmatprep.subr.mxu0 0.0
    %522 = vmatpush1.msra.mxu0 0.0
    %523 = vmatprep.subr.mxu0 0.0
    %524 = vmatpush1.msra.mxu0 0.0
    %525 = vmatprep.subr.mxu0 0.0
    %526 = vmatpush1.msra.mxu0 0.0
    %527 = vmatprep.subr.mxu0 0.0
    %528 = vmatpush1.msra.mxu0 0.0
    %529 = vmatprep.subr.mxu0 0.0
    %530 = vmatpush1.msra.mxu0 0.0
    %531 = vmatprep.subr.mxu0 0.0
    %532 = vmatpush1.msra.mxu0 0.0
    %533 = vmatprep.subr.mxu0 0.0
    %534 = vmatpush1.msra.mxu0 0.0
    %535 = vmatprep.subr.mxu0 0.0
    %536 = vmatpush1.msra.mxu0 0.0
    %537 = vmatprep.subr.mxu0 0.0
    %538 = vmatpush1.msra.mxu0 0.0
    %539 = vmatprep.subr.mxu0 0.0
    %540 = vmatpush1.msra.mxu0 0.0
    %541 = vmatprep.subr.mxu0 0.0
    %542 = vmatpush1.msra.mxu0 0.0
    %543 = vmatprep.subr.mxu0 0.0
    %544 = vmatpush1.msra.mxu0 0.0
    %545 = vmatprep.subr.mxu0 0.0
    %546 = vmatpush1.msra.mxu0 0.0
    %547 = vmatprep.subr.mxu0 0.0
    %548 = vmatpush1.msra.mxu0 0.0
    %549 = vmatprep.subr.mxu0 0.0
    %550 = vmatpush1.msra.mxu0 0.0
    %551 = vmatprep.subr.mxu0 0.0
    %552 = vmatpush1.msra.mxu0 0.0
    %553 = vmatprep.subr.mxu0 0.0
    %554 = vmatpush1.msra.mxu0 0.0
    %555 = vmatprep.subr.mxu0 0.0
    %556 = vmatpush1.msra.mxu0 0.0
    %557 = vmatprep.subr.mxu0 0.0
    %558 = vmatpush1.msra.mxu0 0.0
    %559 = vmatprep.subr.mxu0 0.0
    %560 = vmatpush1.msra.mxu0 0.0
    %561 = vmatprep.subr.mxu0 0.0
    %562 = vmatpush1.msra.mxu0 0.0
    %563 = vmatprep.subr.mxu0 0.0
    %564 = vmatpush1.msra.mxu0 0.0
    %565 = vmatprep.subr.mxu0 0.0
    %566 = vmatpush1.msra.mxu0 0.0
    %567 = vmatprep.mubr.f32.mxu0 0.0
    %568 = vmatmul.mubr.f32.gmra.mrb[0].mxu0 %v498
    %v569 = vpop.f32.mrb[0].mxu0
    %v570 = vadd.f32 0.0, %v569
    %v571 = vpop.f32.mrb[0].mxu0
    %572 = vmatprep.mubr.f32.mxu0 0.0
    %573 = vmatmul.mubr.f32.gmra.mrb[0].mxu0 %v501
    %v574 = vpop.f32.mrb[0].mxu0
    %v575 = vadd.f32 0.0, %v574
    %v576 = vpop.f32.mrb[0].mxu0
    %577 = vdwg.mxu0
    %s578 = scalar_lea.vmem [#allocation8], 32
    %v579 = vld [vmem:[%s578] sm:$0xff]
    %v580 = vld [vmem:[%s578 + $0x8] sm:$0xff]
    %v582 = vsel %vm331, %v570, 0
    %v585 = vsel %vm331, %v575, 0
    %587 = vmatprep.subr.mxu0 0.0
    %588 = vmatpush1.msra.mxu0 %v579
    %589 = vmatprep.subr.mxu0 0.0
    %590 = vmatpush1.msra.mxu0 %v580
    %591 = vmatprep.subr.mxu0 0.0
    %592 = vmatpush1.msra.mxu0 0.0
    %593 = vmatprep.subr.mxu0 0.0
    %594 = vmatpush1.msra.mxu0 0.0
    %595 = vmatprep.subr.mxu0 0.0
    %596 = vmatpush1.msra.mxu0 0.0
    %597 = vmatprep.subr.mxu0 0.0
    %598 = vmatpush1.msra.mxu0 0.0
    %599 = vmatprep.subr.mxu0 0.0
    %600 = vmatpush1.msra.mxu0 0.0
    %601 = vmatprep.subr.mxu0 0.0
    %602 = vmatpush1.msra.mxu0 0.0
    %603 = vmatprep.subr.mxu0 0.0
    %604 = vmatpush1.msra.mxu0 0.0
    %605 = vmatprep.subr.mxu0 0.0
    %606 = vmatpush1.msra.mxu0 0.0
    %607 = vmatprep.subr.mxu0 0.0
    %608 = vmatpush1.msra.mxu0 0.0
    %609 = vmatprep.subr.mxu0 0.0
    %610 = vmatpush1.msra.mxu0 0.0
    %611 = vmatprep.subr.mxu0 0.0
    %612 = vmatpush1.msra.mxu0 0.0
    %613 = vmatprep.subr.mxu0 0.0
    %614 = vmatpush1.msra.mxu0 0.0
    %615 = vmatprep.subr.mxu0 0.0
    %616 = vmatpush1.msra.mxu0 0.0
    %617 = vmatprep.subr.mxu0 0.0
    %618 = vmatpush1.msra.mxu0 0.0
    %619 = vmatprep.subr.mxu0 0.0
    %620 = vmatpush1.msra.mxu0 0.0
    %621 = vmatprep.subr.mxu0 0.0
    %622 = vmatpush1.msra.mxu0 0.0
    %623 = vmatprep.subr.mxu0 0.0
    %624 = vmatpush1.msra.mxu0 0.0
    %625 = vmatprep.subr.mxu0 0.0
    %626 = vmatpush1.msra.mxu0 0.0
    %627 = vmatprep.subr.mxu0 0.0
    %628 = vmatpush1.msra.mxu0 0.0
    %629 = vmatprep.subr.mxu0 0.0
    %630 = vmatpush1.msra.mxu0 0.0
    %631 = vmatprep.subr.mxu0 0.0
    %632 = vmatpush1.msra.mxu0 0.0
    %633 = vmatprep.subr.mxu0 0.0
    %634 = vmatpush1.msra.mxu0 0.0
    %635 = vmatprep.subr.mxu0 0.0
    %636 = vmatpush1.msra.mxu0 0.0
    %637 = vmatprep.subr.mxu0 0.0
    %638 = vmatpush1.msra.mxu0 0.0
    %639 = vmatprep.subr.mxu0 0.0
    %640 = vmatpush1.msra.mxu0 0.0
    %641 = vmatprep.subr.mxu0 0.0
    %642 = vmatpush1.msra.mxu0 0.0
    %643 = vmatprep.subr.mxu0 0.0
    %644 = vmatpush1.msra.mxu0 0.0
    %645 = vmatprep.subr.mxu0 0.0
    %646 = vmatpush1.msra.mxu0 0.0
    %647 = vmatprep.subr.mxu0 0.0
    %648 = vmatpush1.msra.mxu0 0.0
    %649 = vmatprep.subr.mxu0 0.0
    %650 = vmatpush1.msra.mxu0 0.0
    %651 = vmatprep.mubr.f32.mxu0 0.0
    %652 = vmatmul.mubr.f32.gmra.mrb[0].mxu0 %v582
    %v653 = vpop.f32.mrb[0].mxu0
    %v654 = vadd.f32 0.0, %v653
    %v655 = vpop.f32.mrb[0].mxu0
    %656 = vmatprep.mubr.f32.mxu0 0.0
    %657 = vmatmul.mubr.f32.gmra.mrb[0].mxu0 %v585
    %v658 = vpop.f32.mrb[0].mxu0
    %v659 = vadd.f32 0.0, %v658
    %v660 = vpop.f32.mrb[0].mxu0
    %661 = vdwg.mxu0
    %v662 = vadd.f32 %v486, %v654
    %v663 = vadd.f32 %v491, %v659
    %v664 = vlaneseq
    %v665 = vshrl.u32 %v664, 7
    %v666 = vsub.s32 0, %v665
    %v667 = vrot.slane %v145, %v666
    %v668 = vadd.f32 %v662, %v667
    %v669 = vadd.f32 %v663, %v667
    %vm670 = vcmask 523264
    %v671 = vsel %vm670, %v668, 0.0
    %v672 = vsel %vm670, %v669, 0.0
    %v673 = vadd.f32 %v671, %v672
    %v674 = vrot.slane %v673, 4
    %v675 = vadd.f32 %v673, %v674
    %v676 = vrot.slane %v675, 2
    %v677 = vadd.f32 %v675, %v676
    %v678 = vrot.slane %v677, 1
    %v679 = vadd.f32 %v677, %v678
    %v681 = vsel %vm670, %v679, 0
    %683 = vmatprep.subr.mxu0 0.0
    %684 = vmatpush1.msra.mxu0 %v150
    %685 = vmatprep.subr.mxu0 0.0
    %686 = vmatpush1.msra.mxu0 %v151
    %687 = vmatprep.subr.mxu0 0.0
    %688 = vmatpush1.msra.mxu0 %v152
    %689 = vmatprep.subr.mxu0 0.0
    %690 = vmatpush1.msra.mxu0 %v153
    %691 = vmatprep.subr.mxu0 0.0
    %692 = vmatpush1.msra.mxu0 %v154
    %693 = vmatprep.subr.mxu0 0.0
    %694 = vmatpush1.msra.mxu0 %v155
    %695 = vmatprep.subr.mxu0 0.0
    %696 = vmatpush1.msra.mxu0 %v156
    %697 = vmatprep.subr.mxu0 0.0
    %698 = vmatpush1.msra.mxu0 %v157
    %699 = vmatprep.subr.mxu0 0.0
    %700 = vmatpush1.msra.mxu0 0.0
    %701 = vmatprep.subr.mxu0 0.0
    %702 = vmatpush1.msra.mxu0 0.0
    %703 = vmatprep.subr.mxu0 0.0
    %704 = vmatpush1.msra.mxu0 0.0
    %705 = vmatprep.subr.mxu0 0.0
    %706 = vmatpush1.msra.mxu0 0.0
    %707 = vmatprep.subr.mxu0 0.0
    %708 = vmatpush1.msra.mxu0 0.0
    %709 = vmatprep.subr.mxu0 0.0
    %710 = vmatpush1.msra.mxu0 0.0
    %711 = vmatprep.subr.mxu0 0.0
    %712 = vmatpush1.msra.mxu0 0.0
    %713 = vmatprep.subr.mxu0 0.0
    %714 = vmatpush1.msra.mxu0 0.0
    %715 = vmatprep.subr.mxu0 0.0
    %716 = vmatpush1.msra.mxu0 0.0
    %717 = vmatprep.subr.mxu0 0.0
    %718 = vmatpush1.msra.mxu0 0.0
    %719 = vmatprep.subr.mxu0 0.0
    %720 = vmatpush1.msra.mxu0 0.0
    %721 = vmatprep.subr.mxu0 0.0
    %722 = vmatpush1.msra.mxu0 0.0
    %723 = vmatprep.subr.mxu0 0.0
    %724 = vmatpush1.msra.mxu0 0.0
    %725 = vmatprep.subr.mxu0 0.0
    %726 = vmatpush1.msra.mxu0 0.0
    %727 = vmatprep.subr.mxu0 0.0
    %728 = vmatpush1.msra.mxu0 0.0
    %729 = vmatprep.subr.mxu0 0.0
    %730 = vmatpush1.msra.mxu0 0.0
    %731 = vmatprep.subr.mxu0 0.0
    %732 = vmatpush1.msra.mxu0 0.0
    %733 = vmatprep.subr.mxu0 0.0
    %734 = vmatpush1.msra.mxu0 0.0
    %735 = vmatprep.subr.mxu0 0.0
    %736 = vmatpush1.msra.mxu0 0.0
    %737 = vmatprep.subr.mxu0 0.0
    %738 = vmatpush1.msra.mxu0 0.0
    %739 = vmatprep.subr.mxu0 0.0
    %740 = vmatpush1.msra.mxu0 0.0
    %741 = vmatprep.subr.mxu0 0.0
    %742 = vmatpush1.msra.mxu0 0.0
    %743 = vmatprep.subr.mxu0 0.0
    %744 = vmatpush1.msra.mxu0 0.0
    %745 = vmatprep.subr.mxu0 0.0
    %746 = vmatpush1.msra.mxu0 0.0
    %747 = vmatprep.mubr.f32.mxu0 0.0
    %748 = vmatmul.mubr.f32.gmra.mrb[0].mxu0 %v681
    %v749 = vpop.f32.mrb[0].mxu0
    %v750 = vadd.f32 0.0, %v749
    %v751 = vpop.f32.mrb[0].mxu0
    %752 = vdwg.mxu0
    %v753 = vmul.f32 %v668, %v668
    %v754 = vmul.f32 %v669, %v669
    %v755 = vsel %vm670, %v753, 0.0
    %v756 = vsel %vm670, %v754, 0.0
    %v757 = vadd.f32 %v755, %v756
    %v758 = vrot.slane %v757, 4
    %v759 = vadd.f32 %v757, %v758
    %v760 = vrot.slane %v759, 2
    %v761 = vadd.f32 %v759, %v760
    %v762 = vrot.slane %v761, 1
    %v763 = vadd.f32 %v761, %v762
    %v765 = vsel %vm670, %v763, 0
    %767 = vmatprep.subr.mxu0 0.0
    %768 = vmatpush1.msra.mxu0 %v150
    %769 = vmatprep.subr.mxu0 0.0
    %770 = vmatpush1.msra.mxu0 %v151
    %771 = vmatprep.subr.mxu0 0.0
    %772 = vmatpush1.msra.mxu0 %v152
    %773 = vmatprep.subr.mxu0 0.0
    %774 = vmatpush1.msra.mxu0 %v153
    %775 = vmatprep.subr.mxu0 0.0
    %776 = vmatpush1.msra.mxu0 %v154
    %777 = vmatprep.subr.mxu0 0.0
    %778 = vmatpush1.msra.mxu0 %v155
    %779 = vmatprep.subr.mxu0 0.0
    %780 = vmatpush1.msra.mxu0 %v156
    %781 = vmatprep.subr.mxu0 0.0
    %782 = vmatpush1.msra.mxu0 %v157
    %783 = vmatprep.subr.mxu0 0.0
    %784 = vmatpush1.msra.mxu0 0.0
    %785 = vmatprep.subr.mxu0 0.0
    %786 = vmatpush1.msra.mxu0 0.0
    %787 = vmatprep.subr.mxu0 0.0
    %788 = vmatpush1.msra.mxu0 0.0
    %789 = vmatprep.subr.mxu0 0.0
    %790 = vmatpush1.msra.mxu0 0.0
    %791 = vmatprep.subr.mxu0 0.0
    %792 = vmatpush1.msra.mxu0 0.0
    %793 = vmatprep.subr.mxu0 0.0
    %794 = vmatpush1.msra.mxu0 0.0
    %795 = vmatprep.subr.mxu0 0.0
    %796 = vmatpush1.msra.mxu0 0.0
    %797 = vmatprep.subr.mxu0 0.0
    %798 = vmatpush1.msra.mxu0 0.0
    %799 = vmatprep.subr.mxu0 0.0
    %800 = vmatpush1.msra.mxu0 0.0
    %801 = vmatprep.subr.mxu0 0.0
    %802 = vmatpush1.msra.mxu0 0.0
    %803 = vmatprep.subr.mxu0 0.0
    %804 = vmatpush1.msra.mxu0 0.0
    %805 = vmatprep.subr.mxu0 0.0
    %806 = vmatpush1.msra.mxu0 0.0
    %807 = vmatprep.subr.mxu0 0.0
    %808 = vmatpush1.msra.mxu0 0.0
    %809 = vmatprep.subr.mxu0 0.0
    %810 = vmatpush1.msra.mxu0 0.0
    %811 = vmatprep.subr.mxu0 0.0
    %812 = vmatpush1.msra.mxu0 0.0
    %813 = vmatprep.subr.mxu0 0.0
    %814 = vmatpush1.msra.mxu0 0.0
    %815 = vmatprep.subr.mxu0 0.0
    %816 = vmatpush1.msra.mxu0 0.0
    %817 = vmatprep.subr.mxu0 0.0
    %818 = vmatpush1.msra.mxu0 0.0
    %819 = vmatprep.subr.mxu0 0.0
    %820 = vmatpush1.msra.mxu0 0.0
    %821 = vmatprep.subr.mxu0 0.0
    %822 = vmatpush1.msra.mxu0 0.0
    %823 = vmatprep.subr.mxu0 0.0
    %824 = vmatpush1.msra.mxu0 0.0
    %825 = vmatprep.subr.mxu0 0.0
    %826 = vmatpush1.msra.mxu0 0.0
    %827 = vmatprep.subr.mxu0 0.0
    %828 = vmatpush1.msra.mxu0 0.0
    %829 = vmatprep.subr.mxu0 0.0
    %830 = vmatpush1.msra.mxu0 0.0
    %831 = vmatprep.mubr.f32.mxu0 0.0
    %832 = vmatmul.mubr.f32.gmra.mrb[0].mxu0 %v765
    %v833 = vpop.f32.mrb[0].mxu0
    %v834 = vadd.f32 0.0, %v833
    %v835 = vpop.f32.mrb[0].mxu0
    %836 = vdwg.mxu0
    %v837 = vmul.f32 %v750, %v750
    %v838 = vsub.f32 %v834, %v837
    %v839 = vadd.f32 %v838, 1e-05
    %v840 = vrsqrt.pop %v839
    %v841 = vlaneseq
    %v842 = vshrl.u32 %v841, 7
    %v843 = vsub.s32 0, %v842
    %v844 = vrot.slane %v750, %v843
    %v845 = vsub.f32 %v668, %v844
    %v846 = vsub.f32 %v669, %v844
    %v847 = vlaneseq
    %v848 = vshrl.u32 %v847, 7
    %v849 = vsub.s32 0, %v848
    %v850 = vrot.slane %v840, %v849
    %v851 = vmul.f32 %v845, %v850
    %v852 = vmul.f32 %v846, %v850
    %v853 = vlaneseq
    %v854 = vshrl.u32 %v853, 7
    %v855 = vsub.s32 1, %v854
    %v856 = vrot.slane %v145, %v855
    %v857 = vmul.f32 %v851, %v856
    %v858 = vmul.f32 %v852, %v856
    %v859 = vlaneseq
    %v860 = vshrl.u32 %v859, 7
    %v861 = vsub.s32 2, %v860
    %v862 = vrot.slane %v145, %v861
    %v863 = vadd.f32 %v857, %v862
    %v864 = vadd.f32 %v858, %v862
    %v865 = vmax.f32 %v863, 0.0
    %v866 = vmax.f32 %v864, 0.0
    %s867 = scalar_lea.vmem [#allocation12], 64
    %v868 = vld [vmem:[%s867] sm:$0xff]
    %v869 = vld [vmem:[%s867 + $0x8] sm:$0xff]
    %v870 = vld [vmem:[%s867 + $0x10] sm:$0xff]
    %v871 = vld [vmem:[%s867 + $0x18] sm:$0xff]
    %v872 = vld [vmem:[%s867 + $0x20] sm:$0xff]
    %v873 = vld [vmem:[%s867 + $0x28] sm:$0xff]
    %v874 = vld [vmem:[%s867 + $0x30] sm:$0xff]
    %v875 = vld [vmem:[%s867 + $0x38] sm:$0xff]
    %v876 = vld [vmem:[#allocation9] sm:$0xff]
    %v877 = vld [vmem:[#allocation9 + $0x8] sm:$0xff]
    %v879 = vsel %vm331, %v876, 0
    %v882 = vsel %vm331, %v877, 0
    %884 = vmatprep.subr.mxu0 0.0
    %885 = vmatpush1.msra.mxu0 %v865
    %886 = vmatprep.subr.mxu0 0.0
    %887 = vmatpush1.msra.mxu0 %v866
    %888 = vmatprep.subr.mxu0 0.0
    %889 = vmatpush1.msra.mxu0 0.0
    %890 = vmatprep.subr.mxu0 0.0
    %891 = vmatpush1.msra.mxu0 0.0
    %892 = vmatprep.subr.mxu0 0.0
    %893 = vmatpush1.msra.mxu0 0.0
    %894 = vmatprep.subr.mxu0 0.0
    %895 = vmatpush1.msra.mxu0 0.0
    %896 = vmatprep.subr.mxu0 0.0
    %897 = vmatpush1.msra.mxu0 0.0
    %898 = vmatprep.subr.mxu0 0.0
    %899 = vmatpush1.msra.mxu0 0.0
    %900 = vmatprep.subr.mxu0 0.0
    %901 = vmatpush1.msra.mxu0 0.0
    %902 = vmatprep.subr.mxu0 0.0
    %903 = vmatpush1.msra.mxu0 0.0
    %904 = vmatprep.subr.mxu0 0.0
    %905 = vmatpush1.msra.mxu0 0.0
    %906 = vmatprep.subr.mxu0 0.0
    %907 = vmatpush1.msra.mxu0 0.0
    %908 = vmatprep.subr.mxu0 0.0
    %909 = vmatpush1.msra.mxu0 0.0
    %910 = vmatprep.subr.mxu0 0.0
    %911 = vmatpush1.msra.mxu0 0.0
    %912 = vmatprep.subr.mxu0 0.0
    %913 = vmatpush1.msra.mxu0 0.0
    %914 = vmatprep.subr.mxu0 0.0
    %915 = vmatpush1.msra.mxu0 0.0
    %916 = vmatprep.subr.mxu0 0.0
    %917 = vmatpush1.msra.mxu0 0.0
    %918 = vmatprep.subr.mxu0 0.0
    %919 = vmatpush1.msra.mxu0 0.0
    %920 = vmatprep.subr.mxu0 0.0
    %921 = vmatpush1.msra.mxu0 0.0
    %922 = vmatprep.subr.mxu0 0.0
    %923 = vmatpush1.msra.mxu0 0.0
    %924 = vmatprep.subr.mxu0 0.0
    %925 = vmatpush1.msra.mxu0 0.0
    %926 = vmatprep.subr.mxu0 0.0
    %927 = vmatpush1.msra.mxu0 0.0
    %928 = vmatprep.subr.mxu0 0.0
    %929 = vmatpush1.msra.mxu0 0.0
    %930 = vmatprep.subr.mxu0 0.0
    %931 = vmatpush1.msra.mxu0 0.0
    %932 = vmatprep.subr.mxu0 0.0
    %933 = vmatpush1.msra.mxu0 0.0
    %934 = vmatprep.subr.mxu0 0.0
    %935 = vmatpush1.msra.mxu0 0.0
    %936 = vmatprep.subr.mxu0 0.0
    %937 = vmatpush1.msra.mxu0 0.0
    %938 = vmatprep.subr.mxu0 0.0
    %939 = vmatpush1.msra.mxu0 0.0
    %940 = vmatprep.subr.mxu0 0.0
    %941 = vmatpush1.msra.mxu0 0.0
    %942 = vmatprep.subr.mxu0 0.0
    %943 = vmatpush1.msra.mxu0 0.0
    %944 = vmatprep.subr.mxu0 0.0
    %945 = vmatpush1.msra.mxu0 0.0
    %946 = vmatprep.subr.mxu0 0.0
    %947 = vmatpush1.msra.mxu0 0.0
    %948 = vmatprep.mubr.f32.mxu0 0.0
    %949 = vmatmul.mubr.f32.gmra.mrb[0].mxu0 %v879
    %v950 = vpop.f32.mrb[0].mxu0
    %v951 = vadd.f32 0.0, %v950
    %v952 = vpop.f32.mrb[0].mxu0
    %953 = vmatprep.mubr.f32.mxu0 0.0
    %954 = vmatmul.mubr.f32.gmra.mrb[0].mxu0 %v882
    %v955 = vpop.f32.mrb[0].mxu0
    %v956 = vadd.f32 0.0, %v955
    %v957 = vpop.f32.mrb[0].mxu0
    %958 = vdwg.mxu0
    %v959 = vld [vmem:[#allocation11] sm:$0xff]
    %v960 = vld [vmem:[#allocation11 + $0x8] sm:$0xff]
    %v961 = vld [vmem:[#allocation11 + $0x10] sm:$0xff]
    %v962 = vld [vmem:[#allocation11 + $0x18] sm:$0xff]
    %v963 = vld [vmem:[#allocation11 + $0x20] sm:$0xff]
    %v964 = vld [vmem:[#allocation11 + $0x28] sm:$0xff]
    %v965 = vld [vmem:[#allocation11 + $0x30] sm:$0xff]
    %v966 = vld [vmem:[#allocation11 + $0x38] sm:$0xff]
    %s967 = scalar_lea.vmem [#allocation9], 16
    %v968 = vld [vmem:[%s967] sm:$0xff]
    %v969 = vld [vmem:[%s967 + $0x8] sm:$0xff]
    %v971 = vsel %vm331, %v968, 0
    %v974 = vsel %vm331, %v969, 0
    %976 = vmatprep.subr.mxu0 0.0
    %977 = vmatpush1.msra.mxu0 %v865
    %978 = vmatprep.subr.mxu0 0.0
    %979 = vmatpush1.msra.mxu0 %v866
    %980 = vmatprep.subr.mxu0 0.0
    %981 = vmatpush1.msra.mxu0 0.0
    %982 = vmatprep.subr.mxu0 0.0
    %983 = vmatpush1.msra.mxu0 0.0
    %984 = vmatprep.subr.mxu0 0.0
    %985 = vmatpush1.msra.mxu0 0.0
    %986 = vmatprep.subr.mxu0 0.0
    %987 = vmatpush1.msra.mxu0 0.0
    %988 = vmatprep.subr.mxu0 0.0
    %989 = vmatpush1.msra.mxu0 0.0
    %990 = vmatprep.subr.mxu0 0.0
    %991 = vmatpush1.msra.mxu0 0.0
    %992 = vmatprep.subr.mxu0 0.0
    %993 = vmatpush1.msra.mxu0 0.0
    %994 = vmatprep.subr.mxu0 0.0
    %995 = vmatpush1.msra.mxu0 0.0
    %996 = vmatprep.subr.mxu0 0.0
    %997 = vmatpush1.msra.mxu0 0.0
    %998 = vmatprep.subr.mxu0 0.0
    %999 = vmatpush1.msra.mxu0 0.0
    %1000 = vmatprep.subr.mxu0 0.0
    %1001 = vmatpush1.msra.mxu0 0.0
    %1002 = vmatprep.subr.mxu0 0.0
    %1003 = vmatpush1.msra.mxu0 0.0
    %1004 = vmatprep.subr.mxu0 0.0
    %1005 = vmatpush1.msra.mxu0 0.0
    %1006 = vmatprep.subr.mxu0 0.0
    %1007 = vmatpush1.msra.mxu0 0.0
    %1008 = vmatprep.subr.mxu0 0.0
    %1009 = vmatpush1.msra.mxu0 0.0
    %1010 = vmatprep.subr.mxu0 0.0
    %1011 = vmatpush1.msra.mxu0 0.0
    %1012 = vmatprep.subr.mxu0 0.0
    %1013 = vmatpush1.msra.mxu0 0.0
    %1014 = vmatprep.subr.mxu0 0.0
    %1015 = vmatpush1.msra.mxu0 0.0
    %1016 = vmatprep.subr.mxu0 0.0
    %1017 = vmatpush1.msra.mxu0 0.0
    %1018 = vmatprep.subr.mxu0 0.0
    %1019 = vmatpush1.msra.mxu0 0.0
    %1020 = vmatprep.subr.mxu0 0.0
    %1021 = vmatpush1.msra.mxu0 0.0
    %1022 = vmatprep.subr.mxu0 0.0
    %1023 = vmatpush1.msra.mxu0 0.0
    %1024 = vmatprep.subr.mxu0 0.0
    %1025 = vmatpush1.msra.mxu0 0.0
    %1026 = vmatprep.subr.mxu0 0.0
    %1027 = vmatpush1.msra.mxu0 0.0
    %1028 = vmatprep.subr.mxu0 0.0
    %1029 = vmatpush1.msra.mxu0 0.0
    %1030 = vmatprep.subr.mxu0 0.0
    %1031 = vmatpush1.msra.mxu0 0.0
    %1032 = vmatprep.subr.mxu0 0.0
    %1033 = vmatpush1.msra.mxu0 0.0
    %1034 = vmatprep.subr.mxu0 0.0
    %1035 = vmatpush1.msra.mxu0 0.0
    %1036 = vmatprep.subr.mxu0 0.0
    %1037 = vmatpush1.msra.mxu0 0.0
    %1038 = vmatprep.subr.mxu0 0.0
    %1039 = vmatpush1.msra.mxu0 0.0
    %1040 = vmatprep.mubr.f32.mxu0 0.0
    %1041 = vmatmul.mubr.f32.gmra.mrb[0].mxu0 %v971
    %v1042 = vpop.f32.mrb[0].mxu0
    %v1043 = vadd.f32 0.0, %v1042
    %v1044 = vpop.f32.mrb[0].mxu0
    %1045 = vmatprep.mubr.f32.mxu0 0.0
    %1046 = vmatmul.mubr.f32.gmra.mrb[0].mxu0 %v974
    %v1047 = vpop.f32.mrb[0].mxu0
    %v1048 = vadd.f32 0.0, %v1047
    %v1049 = vpop.f32.mrb[0].mxu0
    %1050 = vdwg.mxu0
    %s1051 = scalar_lea.vmem [#allocation11], 64
    %v1052 = vld [vmem:[%s1051] sm:$0xff]
    %v1053 = vld [vmem:[%s1051 + $0x8] sm:$0xff]
    %v1054 = vld [vmem:[%s1051 + $0x10] sm:$0xff]
    %v1055 = vld [vmem:[%s1051 + $0x18] sm:$0xff]
    %v1056 = vld [vmem:[%s1051 + $0x20] sm:$0xff]
    %v1057 = vld [vmem:[%s1051 + $0x28] sm:$0xff]
    %v1058 = vld [vmem:[%s1051 + $0x30] sm:$0xff]
    %v1059 = vld [vmem:[%s1051 + $0x38] sm:$0xff]
    %v1061 = vsel %vm670, %v1043, 0
    %v1064 = vsel %vm670, %v1048, 0
    %1066 = vmatprep.subr.mxu0 0.0
    %1067 = vmatpush1.msra.mxu0 %v1052
    %1068 = vmatprep.subr.mxu0 0.0
    %1069 = vmatpush1.msra.mxu0 %v1053
    %1070 = vmatprep.subr.mxu0 0.0
    %1071 = vmatpush1.msra.mxu0 %v1054
    %1072 = vmatprep.subr.mxu0 0.0
    %1073 = vmatpush1.msra.mxu0 %v1055
    %1074 = vmatprep.subr.mxu0 0.0
    %1075 = vmatpush1.msra.mxu0 %v1056
    %1076 = vmatprep.subr.mxu0 0.0
    %1077 = vmatpush1.msra.mxu0 %v1057
    %1078 = vmatprep.subr.mxu0 0.0
    %1079 = vmatpush1.msra.mxu0 %v1058
    %1080 = vmatprep.subr.mxu0 0.0
    %1081 = vmatpush1.msra.mxu0 %v1059
    %1082 = vmatprep.subr.mxu0 0.0
    %1083 = vmatpush1.msra.mxu0 0.0
    %1084 = vmatprep.subr.mxu0 0.0
    %1085 = vmatpush1.msra.mxu0 0.0
    %1086 = vmatprep.subr.mxu0 0.0
    %1087 = vmatpush1.msra.mxu0 0.0
    %1088 = vmatprep.subr.mxu0 0.0
    %1089 = vmatpush1.msra.mxu0 0.0
    %1090 = vmatprep.subr.mxu0 0.0
    %1091 = vmatpush1.msra.mxu0 0.0
    %1092 = vmatprep.subr.mxu0 0.0
    %1093 = vmatpush1.msra.mxu0 0.0
    %1094 = vmatprep.subr.mxu0 0.0
    %1095 = vmatpush1.msra.mxu0 0.0
    %1096 = vmatprep.subr.mxu0 0.0
    %1097 = vmatpush1.msra.mxu0 0.0
    %1098 = vmatprep.subr.mxu0 0.0
    %1099 = vmatpush1.msra.mxu0 0.0
    %1100 = vmatprep.subr.mxu0 0.0
    %1101 = vmatpush1.msra.mxu0 0.0
    %1102 = vmatprep.subr.mxu0 0.0
    %1103 = vmatpush1.msra.mxu0 0.0
    %1104 = vmatprep.subr.mxu0 0.0
    %1105 = vmatpush1.msra.mxu0 0.0
    %1106 = vmatprep.subr.mxu0 0.0
    %1107 = vmatpush1.msra.mxu0 0.0
    %1108 = vmatprep.subr.mxu0 0.0
    %1109 = vmatpush1.msra.mxu0 0.0
    %1110 = vmatprep.subr.mxu0 0.0
    %1111 = vmatpush1.msra.mxu0 0.0
    %1112 = vmatprep.subr.mxu0 0.0
    %1113 = vmatpush1.msra.mxu0 0.0
    %1114 = vmatprep.subr.mxu0 0.0
    %1115 = vmatpush1.msra.mxu0 0.0
    %1116 = vmatprep.subr.mxu0 0.0
    %1117 = vmatpush1.msra.mxu0 0.0
    %1118 = vmatprep.subr.mxu0 0.0
    %1119 = vmatpush1.msra.mxu0 0.0
    %1120 = vmatprep.subr.mxu0 0.0
    %1121 = vmatpush1.msra.mxu0 0.0
    %1122 = vmatprep.subr.mxu0 0.0
    %1123 = vmatpush1.msra.mxu0 0.0
    %1124 = vmatprep.subr.mxu0 0.0
    %1125 = vmatpush1.msra.mxu0 0.0
    %1126 = vmatprep.subr.mxu0 0.0
    %1127 = vmatpush1.msra.mxu0 0.0
    %1128 = vmatprep.subr.mxu0 0.0
    %1129 = vmatpush1.msra.mxu0 0.0
    %1130 = vmatprep.mubr.f32.mxu0 0.0
    %1131 = vmatmul.mubr.f32.gmra.mrb[0].mxu0 %v1061
    %v1132 = vpop.f32.mrb[0].mxu0
    %v1133 = vadd.f32 0.0, %v1132
    %v1134 = vpop.f32.mrb[0].mxu0
    %1135 = vmatprep.mubr.f32.mxu0 0.0
    %1136 = vmatmul.mubr.f32.gmra.mrb[0].mxu0 %v1064
    %v1137 = vpop.f32.mrb[0].mxu0
    %v1138 = vadd.f32 0.0, %v1137
    %v1139 = vpop.f32.mrb[0].mxu0
    %1140 = vdwg.mxu0
    %v1142 = vsel %vm670, %v951, 0
    %v1145 = vsel %vm670, %v956, 0
    %1147 = vmatprep.subr.mxu0 0.0
    %1148 = vmatpush1.msra.mxu0 %v959
    %1149 = vmatprep.subr.mxu0 0.0
    %1150 = vmatpush1.msra.mxu0 %v960
    %1151 = vmatprep.subr.mxu0 0.0
    %1152 = vmatpush1.msra.mxu0 %v961
    %1153 = vmatprep.subr.mxu0 0.0
    %1154 = vmatpush1.msra.mxu0 %v962
    %1155 = vmatprep.subr.mxu0 0.0
    %1156 = vmatpush1.msra.mxu0 %v963
    %1157 = vmatprep.subr.mxu0 0.0
    %1158 = vmatpush1.msra.mxu0 %v964
    %1159 = vmatprep.subr.mxu0 0.0
    %1160 = vmatpush1.msra.mxu0 %v965
    %1161 = vmatprep.subr.mxu0 0.0
    %1162 = vmatpush1.msra.mxu0 %v966
    %1163 = vmatprep.subr.mxu0 0.0
    %1164 = vmatpush1.msra.mxu0 0.0
    %1165 = vmatprep.subr.mxu0 0.0
    %1166 = vmatpush1.msra.mxu0 0.0
    %1167 = vmatprep.subr.mxu0 0.0
    %1168 = vmatpush1.msra.mxu0 0.0
    %1169 = vmatprep.subr.mxu0 0.0
    %1170 = vmatpush1.msra.mxu0 0.0
    %1171 = vmatprep.subr.mxu0 0.0
    %1172 = vmatpush1.msra.mxu0 0.0
    %1173 = vmatprep.subr.mxu0 0.0
    %1174 = vmatpush1.msra.mxu0 0.0
    %1175 = vmatprep.subr.mxu0 0.0
    %1176 = vmatpush1.msra.mxu0 0.0
    %1177 = vmatprep.subr.mxu0 0.0
    %1178 = vmatpush1.msra.mxu0 0.0
    %1179 = vmatprep.subr.mxu0 0.0
    %1180 = vmatpush1.msra.mxu0 0.0
    %1181 = vmatprep.subr.mxu0 0.0
    %1182 = vmatpush1.msra.mxu0 0.0
    %1183 = vmatprep.subr.mxu0 0.0
    %1184 = vmatpush1.msra.mxu0 0.0
    %1185 = vmatprep.subr.mxu0 0.0
    %1186 = vmatpush1.msra.mxu0 0.0
    %1187 = vmatprep.subr.mxu0 0.0
    %1188 = vmatpush1.msra.mxu0 0.0
    %1189 = vmatprep.subr.mxu0 0.0
    %1190 = vmatpush1.msra.mxu0 0.0
    %1191 = vmatprep.subr.mxu0 0.0
    %1192 = vmatpush1.msra.mxu0 0.0
    %1193 = vmatprep.subr.mxu0 0.0
    %1194 = vmatpush1.msra.mxu0 0.0
    %1195 = vmatprep.subr.mxu0 0.0
    %1196 = vmatpush1.msra.mxu0 0.0
    %1197 = vmatprep.subr.mxu0 0.0
    %1198 = vmatpush1.msra.mxu0 0.0
    %1199 = vmatprep.subr.mxu0 0.0
    %1200 = vmatpush1.msra.mxu0 0.0
    %1201 = vmatprep.subr.mxu0 0.0
    %1202 = vmatpush1.msra.mxu0 0.0
    %1203 = vmatprep.subr.mxu0 0.0
    %1204 = vmatpush1.msra.mxu0 0.0
    %1205 = vmatprep.subr.mxu0 0.0
    %1206 = vmatpush1.msra.mxu0 0.0
    %1207 = vmatprep.subr.mxu0 0.0
    %1208 = vmatpush1.msra.mxu0 0.0
    %1209 = vmatprep.subr.mxu0 0.0
    %1210 = vmatpush1.msra.mxu0 0.0
    %1211 = vmatprep.mubr.f32.mxu0 0.0
    %1212 = vmatmul.mubr.f32.gmra.mrb[0].mxu0 %v1142
    %v1213 = vpop.f32.mrb[0].mxu0
    %v1214 = vadd.f32 %v1133, %v1213
    %v1215 = vpop.f32.mrb[0].mxu0
    %1216 = vmatprep.mubr.f32.mxu0 0.0
    %1217 = vmatmul.mubr.f32.gmra.mrb[0].mxu0 %v1145
    %v1218 = vpop.f32.mrb[0].mxu0
    %v1219 = vadd.f32 %v1138, %v1218
    %v1220 = vpop.f32.mrb[0].mxu0
    %1221 = vdwg.mxu0
    %s1222 = scalar_lea.vmem [#allocation9], 32
    %v1223 = vld [vmem:[%s1222] sm:$0xff]
    %v1224 = vld [vmem:[%s1222 + $0x8] sm:$0xff]
    %v1226 = vsel %vm331, %v1223, 0
    %v1229 = vsel %vm331, %v1224, 0
    %1231 = vmatprep.subr.mxu0 0.0
    %1232 = vmatpush1.msra.mxu0 %v865
    %1233 = vmatprep.subr.mxu0 0.0
    %1234 = vmatpush1.msra.mxu0 %v866
    %1235 = vmatprep.subr.mxu0 0.0
    %1236 = vmatpush1.msra.mxu0 0.0
    %1237 = vmatprep.subr.mxu0 0.0
    %1238 = vmatpush1.msra.mxu0 0.0
    %1239 = vmatprep.subr.mxu0 0.0
    %1240 = vmatpush1.msra.mxu0 0.0
    %1241 = vmatprep.subr.mxu0 0.0
    %1242 = vmatpush1.msra.mxu0 0.0
    %1243 = vmatprep.subr.mxu0 0.0
    %1244 = vmatpush1.msra.mxu0 0.0
    %1245 = vmatprep.subr.mxu0 0.0
    %1246 = vmatpush1.msra.mxu0 0.0
    %1247 = vmatprep.subr.mxu0 0.0
    %1248 = vmatpush1.msra.mxu0 0.0
    %1249 = vmatprep.subr.mxu0 0.0
    %1250 = vmatpush1.msra.mxu0 0.0
    %1251 = vmatprep.subr.mxu0 0.0
    %1252 = vmatpush1.msra.mxu0 0.0
    %1253 = vmatprep.subr.mxu0 0.0
    %1254 = vmatpush1.msra.mxu0 0.0
    %1255 = vmatprep.subr.mxu0 0.0
    %1256 = vmatpush1.msra.mxu0 0.0
    %1257 = vmatprep.subr.mxu0 0.0
    %1258 = vmatpush1.msra.mxu0 0.0
    %1259 = vmatprep.subr.mxu0 0.0
    %1260 = vmatpush1.msra.mxu0 0.0
    %1261 = vmatprep.subr.mxu0 0.0
    %1262 = vmatpush1.msra.mxu0 0.0
    %1263 = vmatprep.subr.mxu0 0.0
    %1264 = vmatpush1.msra.mxu0 0.0
    %1265 = vmatprep.subr.mxu0 0.0
    %1266 = vmatpush1.msra.mxu0 0.0
    %1267 = vmatprep.subr.mxu0 0.0
    %1268 = vmatpush1.msra.mxu0 0.0
    %1269 = vmatprep.subr.mxu0 0.0
    %1270 = vmatpush1.msra.mxu0 0.0
    %1271 = vmatprep.subr.mxu0 0.0
    %1272 = vmatpush1.msra.mxu0 0.0
    %1273 = vmatprep.subr.mxu0 0.0
    %1274 = vmatpush1.msra.mxu0 0.0
    %1275 = vmatprep.subr.mxu0 0.0
    %1276 = vmatpush1.msra.mxu0 0.0
    %1277 = vmatprep.subr.mxu0 0.0
    %1278 = vmatpush1.msra.mxu0 0.0
    %1279 = vmatprep.subr.mxu0 0.0
    %1280 = vmatpush1.msra.mxu0 0.0
    %1281 = vmatprep.subr.mxu0 0.0
    %1282 = vmatpush1.msra.mxu0 0.0
    %1283 = vmatprep.subr.mxu0 0.0
    %1284 = vmatpush1.msra.mxu0 0.0
    %1285 = vmatprep.subr.mxu0 0.0
    %1286 = vmatpush1.msra.mxu0 0.0
    %1287 = vmatprep.subr.mxu0 0.0
    %1288 = vmatpush1.msra.mxu0 0.0
    %1289 = vmatprep.subr.mxu0 0.0
    %1290 = vmatpush1.msra.mxu0 0.0
    %1291 = vmatprep.subr.mxu0 0.0
    %1292 = vmatpush1.msra.mxu0 0.0
    %1293 = vmatprep.subr.mxu0 0.0
    %1294 = vmatpush1.msra.mxu0 0.0
    %1295 = vmatprep.mubr.f32.mxu0 0.0
    %1296 = vmatmul.mubr.f32.gmra.mrb[0].mxu0 %v1226
    %v1297 = vpop.f32.mrb[0].mxu0
    %v1298 = vadd.f32 0.0, %v1297
    %v1299 = vpop.f32.mrb[0].mxu0
    %1300 = vmatprep.mubr.f32.mxu0 0.0
    %1301 = vmatmul.mubr.f32.gmra.mrb[0].mxu0 %v1229
    %v1302 = vpop.f32.mrb[0].mxu0
    %v1303 = vadd.f32 0.0, %v1302
    %v1304 = vpop.f32.mrb[0].mxu0
    %1305 = vdwg.mxu0
    %s1306 = scalar_lea.vmem [#allocation11], 128
    %v1307 = vld [vmem:[%s1306] sm:$0xff]
    %v1308 = vld [vmem:[%s1306 + $0x8] sm:$0xff]
    %v1309 = vld [vmem:[%s1306 + $0x10] sm:$0xff]
    %v1310 = vld [vmem:[%s1306 + $0x18] sm:$0xff]
    %v1311 = vld [vmem:[%s1306 + $0x20] sm:$0xff]
    %v1312 = vld [vmem:[%s1306 + $0x28] sm:$0xff]
    %v1313 = vld [vmem:[%s1306 + $0x30] sm:$0xff]
    %v1314 = vld [vmem:[%s1306 + $0x38] sm:$0xff]
    %v1316 = vsel %vm670, %v1298, 0
    %v1319 = vsel %vm670, %v1303, 0
    %1321 = vmatprep.subr.mxu0 0.0
    %1322 = vmatpush1.msra.mxu0 %v1307
    %1323 = vmatprep.subr.mxu0 0.0
    %1324 = vmatpush1.msra.mxu0 %v1308
    %1325 = vmatprep.subr.mxu0 0.0
    %1326 = vmatpush1.msra.mxu0 %v1309
    %1327 = vmatprep.subr.mxu0 0.0
    %1328 = vmatpush1.msra.mxu0 %v1310
    %1329 = vmatprep.subr.mxu0 0.0
    %1330 = vmatpush1.msra.mxu0 %v1311
    %1331 = vmatprep.subr.mxu0 0.0
    %1332 = vmatpush1.msra.mxu0 %v1312
    %1333 = vmatprep.subr.mxu0 0.0
    %1334 = vmatpush1.msra.mxu0 %v1313
    %1335 = vmatprep.subr.mxu0 0.0
    %1336 = vmatpush1.msra.mxu0 %v1314
    %1337 = vmatprep.subr.mxu0 0.0
    %1338 = vmatpush1.msra.mxu0 0.0
    %1339 = vmatprep.subr.mxu0 0.0
    %1340 = vmatpush1.msra.mxu0 0.0
    %1341 = vmatprep.subr.mxu0 0.0
    %1342 = vmatpush1.msra.mxu0 0.0
    %1343 = vmatprep.subr.mxu0 0.0
    %1344 = vmatpush1.msra.mxu0 0.0
    %1345 = vmatprep.subr.mxu0 0.0
    %1346 = vmatpush1.msra.mxu0 0.0
    %1347 = vmatprep.subr.mxu0 0.0
    %1348 = vmatpush1.msra.mxu0 0.0
    %1349 = vmatprep.subr.mxu0 0.0
    %1350 = vmatpush1.msra.mxu0 0.0
    %1351 = vmatprep.subr.mxu0 0.0
    %1352 = vmatpush1.msra.mxu0 0.0
    %1353 = vmatprep.subr.mxu0 0.0
    %1354 = vmatpush1.msra.mxu0 0.0
    %1355 = vmatprep.subr.mxu0 0.0
    %1356 = vmatpush1.msra.mxu0 0.0
    %1357 = vmatprep.subr.mxu0 0.0
    %1358 = vmatpush1.msra.mxu0 0.0
    %1359 = vmatprep.subr.mxu0 0.0
    %1360 = vmatpush1.msra.mxu0 0.0
    %1361 = vmatprep.subr.mxu0 0.0
    %1362 = vmatpush1.msra.mxu0 0.0
    %1363 = vmatprep.subr.mxu0 0.0
    %1364 = vmatpush1.msra.mxu0 0.0
    %1365 = vmatprep.subr.mxu0 0.0
    %1366 = vmatpush1.msra.mxu0 0.0
    %1367 = vmatprep.subr.mxu0 0.0
    %1368 = vmatpush1.msra.mxu0 0.0
    %1369 = vmatprep.subr.mxu0 0.0
    %1370 = vmatpush1.msra.mxu0 0.0
    %1371 = vmatprep.subr.mxu0 0.0
    %1372 = vmatpush1.msra.mxu0 0.0
    %1373 = vmatprep.subr.mxu0 0.0
    %1374 = vmatpush1.msra.mxu0 0.0
    %1375 = vmatprep.subr.mxu0 0.0
    %1376 = vmatpush1.msra.mxu0 0.0
    %1377 = vmatprep.subr.mxu0 0.0
    %1378 = vmatpush1.msra.mxu0 0.0
    %1379 = vmatprep.subr.mxu0 0.0
    %1380 = vmatpush1.msra.mxu0 0.0
    %1381 = vmatprep.subr.mxu0 0.0
    %1382 = vmatpush1.msra.mxu0 0.0
    %1383 = vmatprep.subr.mxu0 0.0
    %1384 = vmatpush1.msra.mxu0 0.0
    %1385 = vmatprep.mubr.f32.mxu0 0.0
    %1386 = vmatmul.mubr.f32.gmra.mrb[0].mxu0 %v1316
    %v1387 = vpop.f32.mrb[0].mxu0
    %v1388 = vadd.f32 0.0, %v1387
    %v1389 = vpop.f32.mrb[0].mxu0
    %1390 = vmatprep.mubr.f32.mxu0 0.0
    %1391 = vmatmul.mubr.f32.gmra.mrb[0].mxu0 %v1319
    %v1392 = vpop.f32.mrb[0].mxu0
    %v1393 = vadd.f32 0.0, %v1392
    %v1394 = vpop.f32.mrb[0].mxu0
    %1395 = vdwg.mxu0
    %v1396 = vadd.f32 %v1214, %v1388
    %v1397 = vadd.f32 %v1219, %v1393
    %v1398 = vlaneseq
    %v1399 = vshrl.u32 %v1398, 7
    %v1400 = vsub.s32 3, %v1399
    %v1401 = vrot.slane %v145, %v1400
    %v1402 = vadd.f32 %v1396, %v1401
    %v1403 = vadd.f32 %v1397, %v1401
    %v1404 = vsel %vm670, %v1402, 0.0
    %v1405 = vsel %vm670, %v1403, 0.0
    %v1406 = vadd.f32 %v1404, %v1405
    %v1407 = vrot.slane %v1406, 4
    %v1408 = vadd.f32 %v1406, %v1407
    %v1409 = vrot.slane %v1408, 2
    %v1410 = vadd.f32 %v1408, %v1409
    %v1411 = vrot.slane %v1410, 1
    %v1412 = vadd.f32 %v1410, %v1411
    %v1414 = vsel %vm670, %v1412, 0
    %1416 = vmatprep.subr.mxu0 0.0
    %1417 = vmatpush1.msra.mxu0 %v868
    %1418 = vmatprep.subr.mxu0 0.0
    %1419 = vmatpush1.msra.mxu0 %v869
    %1420 = vmatprep.subr.mxu0 0.0
    %1421 = vmatpush1.msra.mxu0 %v870
    %1422 = vmatprep.subr.mxu0 0.0
    %1423 = vmatpush1.msra.mxu0 %v871
    %1424 = vmatprep.subr.mxu0 0.0
    %1425 = vmatpush1.msra.mxu0 %v872
    %1426 = vmatprep.subr.mxu0 0.0
    %1427 = vmatpush1.msra.mxu0 %v873
    %1428 = vmatprep.subr.mxu0 0.0
    %1429 = vmatpush1.msra.mxu0 %v874
    %1430 = vmatprep.subr.mxu0 0.0
    %1431 = vmatpush1.msra.mxu0 %v875
    %1432 = vmatprep.subr.mxu0 0.0
    %1433 = vmatpush1.msra.mxu0 0.0
    %1434 = vmatprep.subr.mxu0 0.0
    %1435 = vmatpush1.msra.mxu0 0.0
    %1436 = vmatprep.subr.mxu0 0.0
    %1437 = vmatpush1.msra.mxu0 0.0
    %1438 = vmatprep.subr.mxu0 0.0
    %1439 = vmatpush1.msra.mxu0 0.0
    %1440 = vmatprep.subr.mxu0 0.0
    %1441 = vmatpush1.msra.mxu0 0.0
    %1442 = vmatprep.subr.mxu0 0.0
    %1443 = vmatpush1.msra.mxu0 0.0
    %1444 = vmatprep.subr.mxu0 0.0
    %1445 = vmatpush1.msra.mxu0 0.0
    %1446 = vmatprep.subr.mxu0 0.0
    %1447 = vmatpush1.msra.mxu0 0.0
    %1448 = vmatprep.subr.mxu0 0.0
    %1449 = vmatpush1.msra.mxu0 0.0
    %1450 = vmatprep.subr.mxu0 0.0
    %1451 = vmatpush1.msra.mxu0 0.0
    %1452 = vmatprep.subr.mxu0 0.0
    %1453 = vmatpush1.msra.mxu0 0.0
    %1454 = vmatprep.subr.mxu0 0.0
    %1455 = vmatpush1.msra.mxu0 0.0
    %1456 = vmatprep.subr.mxu0 0.0
    %1457 = vmatpush1.msra.mxu0 0.0
    %1458 = vmatprep.subr.mxu0 0.0
    %1459 = vmatpush1.msra.mxu0 0.0
    %1460 = vmatprep.subr.mxu0 0.0
    %1461 = vmatpush1.msra.mxu0 0.0
    %1462 = vmatprep.subr.mxu0 0.0
    %1463 = vmatpush1.msra.mxu0 0.0
    %1464 = vmatprep.subr.mxu0 0.0
    %1465 = vmatpush1.msra.mxu0 0.0
    %1466 = vmatprep.subr.mxu0 0.0
    %1467 = vmatpush1.msra.mxu0 0.0
    %1468 = vmatprep.subr.mxu0 0.0
    %1469 = vmatpush1.msra.mxu0 0.0
    %1470 = vmatprep.subr.mxu0 0.0
    %1471 = vmatpush1.msra.mxu0 0.0
    %1472 = vmatprep.subr.mxu0 0.0
    %1473 = vmatpush1.msra.mxu0 0.0
    %1474 = vmatprep.subr.mxu0 0.0
    %1475 = vmatpush1.msra.mxu0 0.0
    %1476 = vmatprep.subr.mxu0 0.0
    %1477 = vmatpush1.msra.mxu0 0.0
    %1478 = vmatprep.subr.mxu0 0.0
    %1479 = vmatpush1.msra.mxu0 0.0
    %1480 = vmatprep.mubr.f32.mxu0 0.0
    %1481 = vmatmul.mubr.f32.gmra.mrb[0].mxu0 %v1414
    %v1482 = vpop.f32.mrb[0].mxu0
    %v1483 = vadd.f32 0.0, %v1482
    %v1484 = vpop.f32.mrb[0].mxu0
    %1485 = vdwg.mxu0
    %v1486 = vmul.f32 %v1402, %v1402
    %v1487 = vmul.f32 %v1403, %v1403
    %v1488 = vsel %vm670, %v1486, 0.0
    %v1489 = vsel %vm670, %v1487, 0.0
    %v1490 = vadd.f32 %v1488, %v1489
    %v1491 = vrot.slane %v1490, 4
    %v1492 = vadd.f32 %v1490, %v1491
    %v1493 = vrot.slane %v1492, 2
    %v1494 = vadd.f32 %v1492, %v1493
    %v1495 = vrot.slane %v1494, 1
    %v1496 = vadd.f32 %v1494, %v1495
    %v1498 = vsel %vm670, %v1496, 0
    %1500 = vmatprep.subr.mxu0 0.0
    %1501 = vmatpush1.msra.mxu0 %v868
    %1502 = vmatprep.subr.mxu0 0.0
    %1503 = vmatpush1.msra.mxu0 %v869
    %1504 = vmatprep.subr.mxu0 0.0
    %1505 = vmatpush1.msra.mxu0 %v870
    %1506 = vmatprep.subr.mxu0 0.0
    %1507 = vmatpush1.msra.mxu0 %v871
    %1508 = vmatprep.subr.mxu0 0.0
    %1509 = vmatpush1.msra.mxu0 %v872
    %1510 = vmatprep.subr.mxu0 0.0
    %1511 = vmatpush1.msra.mxu0 %v873
    %1512 = vmatprep.subr.mxu0 0.0
    %1513 = vmatpush1.msra.mxu0 %v874
    %1514 = vmatprep.subr.mxu0 0.0
    %1515 = vmatpush1.msra.mxu0 %v875
    %1516 = vmatprep.subr.mxu0 0.0
    %1517 = vmatpush1.msra.mxu0 0.0
    %1518 = vmatprep.subr.mxu0 0.0
    %1519 = vmatpush1.msra.mxu0 0.0
    %1520 = vmatprep.subr.mxu0 0.0
    %1521 = vmatpush1.msra.mxu0 0.0
    %1522 = vmatprep.subr.mxu0 0.0
    %1523 = vmatpush1.msra.mxu0 0.0
    %1524 = vmatprep.subr.mxu0 0.0
    %1525 = vmatpush1.msra.mxu0 0.0
    %1526 = vmatprep.subr.mxu0 0.0
    %1527 = vmatpush1.msra.mxu0 0.0
    %1528 = vmatprep.subr.mxu0 0.0
    %1529 = vmatpush1.msra.mxu0 0.0
    %1530 = vmatprep.subr.mxu0 0.0
    %1531 = vmatpush1.msra.mxu0 0.0
    %1532 = vmatprep.subr.mxu0 0.0
    %1533 = vmatpush1.msra.mxu0 0.0
    %1534 = vmatprep.subr.mxu0 0.0
    %1535 = vmatpush1.msra.mxu0 0.0
    %1536 = vmatprep.subr.mxu0 0.0
    %1537 = vmatpush1.msra.mxu0 0.0
    %1538 = vmatprep.subr.mxu0 0.0
    %1539 = vmatpush1.msra.mxu0 0.0
    %1540 = vmatprep.subr.mxu0 0.0
    %1541 = vmatpush1.msra.mxu0 0.0
    %1542 = vmatprep.subr.mxu0 0.0
    %1543 = vmatpush1.msra.mxu0 0.0
    %1544 = vmatprep.subr.mxu0 0.0
    %1545 = vmatpush1.msra.mxu0 0.0
    %1546 = vmatprep.subr.mxu0 0.0
    %1547 = vmatpush1.msra.mxu0 0.0
    %1548 = vmatprep.subr.mxu0 0.0
    %1549 = vmatpush1.msra.mxu0 0.0
    %1550 = vmatprep.subr.mxu0 0.0
    %1551 = vmatpush1.msra.mxu0 0.0
    %1552 = vmatprep.subr.mxu0 0.0
    %1553 = vmatpush1.msra.mxu0 0.0
    %1554 = vmatprep.subr.mxu0 0.0
    %1555 = vmatpush1.msra.mxu0 0.0
    %1556 = vmatprep.subr.mxu0 0.0
    %1557 = vmatpush1.msra.mxu0 0.0
    %1558 = vmatprep.subr.mxu0 0.0
    %1559 = vmatpush1.msra.mxu0 0.0
    %1560 = vmatprep.subr.mxu0 0.0
    %1561 = vmatpush1.msra.mxu0 0.0
    %1562 = vmatprep.subr.mxu0 0.0
    %1563 = vmatpush1.msra.mxu0 0.0
    %1564 = vmatprep.mubr.f32.mxu0 0.0
    %1565 = vmatmul.mubr.f32.gmra.mrb[0].mxu0 %v1498
    %v1566 = vpop.f32.mrb[0].mxu0
    %v1567 = vadd.f32 0.0, %v1566
    %v1568 = vpop.f32.mrb[0].mxu0
    %1569 = vdwg.mxu0
    %v1570 = vmul.f32 %v1483, %v1483
    %v1571 = vsub.f32 %v1567, %v1570
    %v1572 = vadd.f32 %v1571, 1e-05
    %v1573 = vrsqrt.pop %v1572
    %v1574 = vlaneseq
    %v1575 = vshrl.u32 %v1574, 7
    %v1576 = vsub.s32 0, %v1575
    %v1577 = vrot.slane %v1483, %v1576
    %v1578 = vsub.f32 %v1402, %v1577
    %v1579 = vsub.f32 %v1403, %v1577
    %v1580 = vlaneseq
    %v1581 = vshrl.u32 %v1580, 7
    %v1582 = vsub.s32 0, %v1581
    %v1583 = vrot.slane %v1573, %v1582
    %v1584 = vmul.f32 %v1578, %v1583
    %v1585 = vmul.f32 %v1579, %v1583
    %v1586 = vlaneseq
    %v1587 = vshrl.u32 %v1586, 7
    %v1588 = vsub.s32 4, %v1587
    %v1589 = vrot.slane %v145, %v1588
    %v1590 = vmul.f32 %v1584, %v1589
    %v1591 = vmul.f32 %v1585, %v1589
    %v1592 = vlaneseq
    %v1593 = vshrl.u32 %v1592, 7
    %v1594 = vsub.s32 5, %v1593
    %v1595 = vrot.slane %v145, %v1594
    %v1596 = vadd.f32 %v1590, %v1595
    %v1597 = vadd.f32 %v1591, %v1595
    %v1598 = vmax.f32 %v1596, 0.0
    %v1599 = vmax.f32 %v1597, 0.0
    %v1600 = vld [vmem:[%s7] sm:$0xff]
    %v1601 = vld [vmem:[%s7 + $0x8] sm:$0xff]
    %v1602 = vlaneseq
    %v1603 = vand.u32 %v1602, 127
    %vm1604 = vcmp.lt.s32.totalorder %v1603, 32
    %v1605 = vld [vmem:[#allocation14] sm:$0xff]
    %v1606 = vld [vmem:[#allocation14 + $0x8] sm:$0xff]
    %v1607 = vld [vmem:[#allocation14 + $0x10] sm:$0xff]
    %v1608 = vld [vmem:[#allocation14 + $0x18] sm:$0xff]
    %v1609 = vld [vmem:[#allocation14 + $0x20] sm:$0xff]
    %v1610 = vld [vmem:[#allocation14 + $0x28] sm:$0xff]
    %v1611 = vld [vmem:[#allocation14 + $0x30] sm:$0xff]
    %v1612 = vld [vmem:[#allocation14 + $0x38] sm:$0xff]
    %v1614 = vsel %vm331, %v1600, 0
    %v1617 = vsel %vm331, %v1601, 0
    %1619 = vmatprep.subr.mxu0 0.0
    %1620 = vmatpush1.msra.mxu0 %v1598
    %1621 = vmatprep.subr.mxu0 0.0
    %1622 = vmatpush1.msra.mxu0 %v1599
    %1623 = vmatprep.subr.mxu0 0.0
    %1624 = vmatpush1.msra.mxu0 0.0
    %1625 = vmatprep.subr.mxu0 0.0
    %1626 = vmatpush1.msra.mxu0 0.0
    %1627 = vmatprep.subr.mxu0 0.0
    %1628 = vmatpush1.msra.mxu0 0.0
    %1629 = vmatprep.subr.mxu0 0.0
    %1630 = vmatpush1.msra.mxu0 0.0
    %1631 = vmatprep.subr.mxu0 0.0
    %1632 = vmatpush1.msra.mxu0 0.0
    %1633 = vmatprep.subr.mxu0 0.0
    %1634 = vmatpush1.msra.mxu0 0.0
    %1635 = vmatprep.subr.mxu0 0.0
    %1636 = vmatpush1.msra.mxu0 0.0
    %1637 = vmatprep.subr.mxu0 0.0
    %1638 = vmatpush1.msra.mxu0 0.0
    %1639 = vmatprep.subr.mxu0 0.0
    %1640 = vmatpush1.msra.mxu0 0.0
    %1641 = vmatprep.subr.mxu0 0.0
    %1642 = vmatpush1.msra.mxu0 0.0
    %1643 = vmatprep.subr.mxu0 0.0
    %1644 = vmatpush1.msra.mxu0 0.0
    %1645 = vmatprep.subr.mxu0 0.0
    %1646 = vmatpush1.msra.mxu0 0.0
    %1647 = vmatprep.subr.mxu0 0.0
    %1648 = vmatpush1.msra.mxu0 0.0
    %1649 = vmatprep.subr.mxu0 0.0
    %1650 = vmatpush1.msra.mxu0 0.0
    %1651 = vmatprep.subr.mxu0 0.0
    %1652 = vmatpush1.msra.mxu0 0.0
    %1653 = vmatprep.subr.mxu0 0.0
    %1654 = vmatpush1.msra.mxu0 0.0
    %1655 = vmatprep.subr.mxu0 0.0
    %1656 = vmatpush1.msra.mxu0 0.0
    %1657 = vmatprep.subr.mxu0 0.0
    %1658 = vmatpush1.msra.mxu0 0.0
    %1659 = vmatprep.subr.mxu0 0.0
    %1660 = vmatpush1.msra.mxu0 0.0
    %1661 = vmatprep.subr.mxu0 0.0
    %1662 = vmatpush1.msra.mxu0 0.0
    %1663 = vmatprep.subr.mxu0 0.0
    %1664 = vmatpush1.msra.mxu0 0.0
    %1665 = vmatprep.subr.mxu0 0.0
    %1666 = vmatpush1.msra.mxu0 0.0
    %1667 = vmatprep.subr.mxu0 0.0
    %1668 = vmatpush1.msra.mxu0 0.0
    %1669 = vmatprep.subr.mxu0 0.0
    %1670 = vmatpush1.msra.mxu0 0.0
    %1671 = vmatprep.subr.mxu0 0.0
    %1672 = vmatpush1.msra.mxu0 0.0
    %1673 = vmatprep.subr.mxu0 0.0
    %1674 = vmatpush1.msra.mxu0 0.0
    %1675 = vmatprep.subr.mxu0 0.0
    %1676 = vmatpush1.msra.mxu0 0.0
    %1677 = vmatprep.subr.mxu0 0.0
    %1678 = vmatpush1.msra.mxu0 0.0
    %1679 = vmatprep.subr.mxu0 0.0
    %1680 = vmatpush1.msra.mxu0 0.0
    %1681 = vmatprep.subr.mxu0 0.0
    %1682 = vmatpush1.msra.mxu0 0.0
    %1683 = vmatprep.mubr.f32.mxu0 0.0
    %1684 = vmatmul.mubr.f32.gmra.mrb[0].mxu0 %v1614
    %v1685 = vpop.f32.mrb[0].mxu0
    %v1686 = vadd.f32 0.0, %v1685
    %v1687 = vpop.f32.mrb[0].mxu0
    %1688 = vmatprep.mubr.f32.mxu0 0.0
    %1689 = vmatmul.mubr.f32.gmra.mrb[0].mxu0 %v1617
    %v1690 = vpop.f32.mrb[0].mxu0
    %v1691 = vadd.f32 0.0, %v1690
    %v1692 = vpop.f32.mrb[0].mxu0
    %1693 = vdwg.mxu0
    %s1694 = scalar_lea.vmem [#allocation14], 64
    %v1695 = vld [vmem:[%s1694] sm:$0xff]
    %v1696 = vld [vmem:[%s1694 + $0x8] sm:$0xff]
    %v1697 = vld [vmem:[%s1694 + $0x10] sm:$0xff]
    %v1698 = vld [vmem:[%s1694 + $0x18] sm:$0xff]
    %v1699 = vld [vmem:[%s1694 + $0x20] sm:$0xff]
    %v1700 = vld [vmem:[%s1694 + $0x28] sm:$0xff]
    %v1701 = vld [vmem:[%s1694 + $0x30] sm:$0xff]
    %v1702 = vld [vmem:[%s1694 + $0x38] sm:$0xff]
    %v1704 = vsel %vm670, %v1686, 0
    %v1707 = vsel %vm670, %v1691, 0
    %1709 = vmatprep.subr.mxu0 0.0
    %1710 = vmatpush1.msra.mxu0 %v1695
    %1711 = vmatprep.subr.mxu0 0.0
    %1712 = vmatpush1.msra.mxu0 %v1696
    %1713 = vmatprep.subr.mxu0 0.0
    %1714 = vmatpush1.msra.mxu0 %v1697
    %1715 = vmatprep.subr.mxu0 0.0
    %1716 = vmatpush1.msra.mxu0 %v1698
    %1717 = vmatprep.subr.mxu0 0.0
    %1718 = vmatpush1.msra.mxu0 %v1699
    %1719 = vmatprep.subr.mxu0 0.0
    %1720 = vmatpush1.msra.mxu0 %v1700
    %1721 = vmatprep.subr.mxu0 0.0
    %1722 = vmatpush1.msra.mxu0 %v1701
    %1723 = vmatprep.subr.mxu0 0.0
    %1724 = vmatpush1.msra.mxu0 %v1702
    %1725 = vmatprep.subr.mxu0 0.0
    %1726 = vmatpush1.msra.mxu0 0.0
    %1727 = vmatprep.subr.mxu0 0.0
    %1728 = vmatpush1.msra.mxu0 0.0
    %1729 = vmatprep.subr.mxu0 0.0
    %1730 = vmatpush1.msra.mxu0 0.0
    %1731 = vmatprep.subr.mxu0 0.0
    %1732 = vmatpush1.msra.mxu0 0.0
    %1733 = vmatprep.subr.mxu0 0.0
    %1734 = vmatpush1.msra.mxu0 0.0
    %1735 = vmatprep.subr.mxu0 0.0
    %1736 = vmatpush1.msra.mxu0 0.0
    %1737 = vmatprep.subr.mxu0 0.0
    %1738 = vmatpush1.msra.mxu0 0.0
    %1739 = vmatprep.subr.mxu0 0.0
    %1740 = vmatpush1.msra.mxu0 0.0
    %1741 = vmatprep.subr.mxu0 0.0
    %1742 = vmatpush1.msra.mxu0 0.0
    %1743 = vmatprep.subr.mxu0 0.0
    %1744 = vmatpush1.msra.mxu0 0.0
    %1745 = vmatprep.subr.mxu0 0.0
    %1746 = vmatpush1.msra.mxu0 0.0
    %1747 = vmatprep.subr.mxu0 0.0
    %1748 = vmatpush1.msra.mxu0 0.0
    %1749 = vmatprep.subr.mxu0 0.0
    %1750 = vmatpush1.msra.mxu0 0.0
    %1751 = vmatprep.subr.mxu0 0.0
    %1752 = vmatpush1.msra.mxu0 0.0
    %1753 = vmatprep.subr.mxu0 0.0
    %1754 = vmatpush1.msra.mxu0 0.0
    %1755 = vmatprep.subr.mxu0 0.0
    %1756 = vmatpush1.msra.mxu0 0.0
    %1757 = vmatprep.subr.mxu0 0.0
    %1758 = vmatpush1.msra.mxu0 0.0
    %1759 = vmatprep.subr.mxu0 0.0
    %1760 = vmatpush1.msra.mxu0 0.0
    %1761 = vmatprep.subr.mxu0 0.0
    %1762 = vmatpush1.msra.mxu0 0.0
    %1763 = vmatprep.subr.mxu0 0.0
    %1764 = vmatpush1.msra.mxu0 0.0
    %1765 = vmatprep.subr.mxu0 0.0
    %1766 = vmatpush1.msra.mxu0 0.0
    %1767 = vmatprep.subr.mxu0 0.0
    %1768 = vmatpush1.msra.mxu0 0.0
    %1769 = vmatprep.subr.mxu0 0.0
    %1770 = vmatpush1.msra.mxu0 0.0
    %1771 = vmatprep.subr.mxu0 0.0
    %1772 = vmatpush1.msra.mxu0 0.0
    %1773 = vmatprep.mubr.f32.mxu0 0.0
    %1774 = vmatmul.mubr.f32.gmra.mrb[0].mxu0 %v1704
    %v1775 = vpop.f32.mrb[0].mxu0
    %v1776 = vadd.f32 0.0, %v1775
    %v1777 = vpop.f32.mrb[0].mxu0
    %1778 = vmatprep.mubr.f32.mxu0 0.0
    %1779 = vmatmul.mubr.f32.gmra.mrb[0].mxu0 %v1707
    %v1780 = vpop.f32.mrb[0].mxu0
    %v1781 = vadd.f32 0.0, %v1780
    %v1782 = vpop.f32.mrb[0].mxu0
    %1783 = vdwg.mxu0
    %v1785 = vsel %vm670, %v1598, 0
    %v1788 = vsel %vm670, %v1599, 0
    %1790 = vmatprep.subr.mxu0 0.0
    %1791 = vmatpush1.msra.mxu0 %v1605
    %1792 = vmatprep.subr.mxu0 0.0
    %1793 = vmatpush1.msra.mxu0 %v1606
    %1794 = vmatprep.subr.mxu0 0.0
    %1795 = vmatpush1.msra.mxu0 %v1607
    %1796 = vmatprep.subr.mxu0 0.0
    %1797 = vmatpush1.msra.mxu0 %v1608
    %1798 = vmatprep.subr.mxu0 0.0
    %1799 = vmatpush1.msra.mxu0 %v1609
    %1800 = vmatprep.subr.mxu0 0.0
    %1801 = vmatpush1.msra.mxu0 %v1610
    %1802 = vmatprep.subr.mxu0 0.0
    %1803 = vmatpush1.msra.mxu0 %v1611
    %1804 = vmatprep.subr.mxu0 0.0
    %1805 = vmatpush1.msra.mxu0 %v1612
    %1806 = vmatprep.subr.mxu0 0.0
    %1807 = vmatpush1.msra.mxu0 0.0
    %1808 = vmatprep.subr.mxu0 0.0
    %1809 = vmatpush1.msra.mxu0 0.0
    %1810 = vmatprep.subr.mxu0 0.0
    %1811 = vmatpush1.msra.mxu0 0.0
    %1812 = vmatprep.subr.mxu0 0.0
    %1813 = vmatpush1.msra.mxu0 0.0
    %1814 = vmatprep.subr.mxu0 0.0
    %1815 = vmatpush1.msra.mxu0 0.0
    %1816 = vmatprep.subr.mxu0 0.0
    %1817 = vmatpush1.msra.mxu0 0.0
    %1818 = vmatprep.subr.mxu0 0.0
    %1819 = vmatpush1.msra.mxu0 0.0
    %1820 = vmatprep.subr.mxu0 0.0
    %1821 = vmatpush1.msra.mxu0 0.0
    %1822 = vmatprep.subr.mxu0 0.0
    %1823 = vmatpush1.msra.mxu0 0.0
    %1824 = vmatprep.subr.mxu0 0.0
    %1825 = vmatpush1.msra.mxu0 0.0
    %1826 = vmatprep.subr.mxu0 0.0
    %1827 = vmatpush1.msra.mxu0 0.0
    %1828 = vmatprep.subr.mxu0 0.0
    %1829 = vmatpush1.msra.mxu0 0.0
    %1830 = vmatprep.subr.mxu0 0.0
    %1831 = vmatpush1.msra.mxu0 0.0
    %1832 = vmatprep.subr.mxu0 0.0
    %1833 = vmatpush1.msra.mxu0 0.0
    %1834 = vmatprep.subr.mxu0 0.0
    %1835 = vmatpush1.msra.mxu0 0.0
    %1836 = vmatprep.subr.mxu0 0.0
    %1837 = vmatpush1.msra.mxu0 0.0
    %1838 = vmatprep.subr.mxu0 0.0
    %1839 = vmatpush1.msra.mxu0 0.0
    %1840 = vmatprep.subr.mxu0 0.0
    %1841 = vmatpush1.msra.mxu0 0.0
    %1842 = vmatprep.subr.mxu0 0.0
    %1843 = vmatpush1.msra.mxu0 0.0
    %1844 = vmatprep.subr.mxu0 0.0
    %1845 = vmatpush1.msra.mxu0 0.0
    %1846 = vmatprep.subr.mxu0 0.0
    %1847 = vmatpush1.msra.mxu0 0.0
    %1848 = vmatprep.subr.mxu0 0.0
    %1849 = vmatpush1.msra.mxu0 0.0
    %1850 = vmatprep.subr.mxu0 0.0
    %1851 = vmatpush1.msra.mxu0 0.0
    %1852 = vmatprep.subr.mxu0 0.0
    %1853 = vmatpush1.msra.mxu0 0.0
    %1854 = vmatprep.mubr.f32.mxu0 0.0
    %1855 = vmatmul.mubr.f32.gmra.mrb[0].mxu0 %v1785
    %v1856 = vpop.f32.mrb[0].mxu0
    %v1857 = vadd.f32 %v1776, %v1856
    %v1858 = vpop.f32.mrb[0].mxu0
    %1859 = vmatprep.mubr.f32.mxu0 0.0
    %1860 = vmatmul.mubr.f32.gmra.mrb[0].mxu0 %v1788
    %v1861 = vpop.f32.mrb[0].mxu0
    %v1862 = vadd.f32 %v1781, %v1861
    %v1863 = vpop.f32.mrb[0].mxu0
    %1864 = vdwg.mxu0
    %s1865 = scalar_lea.vmem [#allocation14], 128
    %v1866 = vld [vmem:[%s1865] sm:$0xff]
    %v1867 = vld [vmem:[%s1865 + $0x8] sm:$0xff]
    %v1868 = vld [vmem:[%s1865 + $0x10] sm:$0xff]
    %v1869 = vld [vmem:[%s1865 + $0x18] sm:$0xff]
    %v1870 = vld [vmem:[%s1865 + $0x20] sm:$0xff]
    %v1871 = vld [vmem:[%s1865 + $0x28] sm:$0xff]
    %v1872 = vld [vmem:[%s1865 + $0x30] sm:$0xff]
    %v1873 = vld [vmem:[%s1865 + $0x38] sm:$0xff]
    %v1875 = vsel %vm670, 0.0, 0
    %1877 = vmatprep.subr.mxu0 0.0
    %1878 = vmatpush1.msra.mxu0 %v1866
    %1879 = vmatprep.subr.mxu0 0.0
    %1880 = vmatpush1.msra.mxu0 %v1867
    %1881 = vmatprep.subr.mxu0 0.0
    %1882 = vmatpush1.msra.mxu0 %v1868
    %1883 = vmatprep.subr.mxu0 0.0
    %1884 = vmatpush1.msra.mxu0 %v1869
    %1885 = vmatprep.subr.mxu0 0.0
    %1886 = vmatpush1.msra.mxu0 %v1870
    %1887 = vmatprep.subr.mxu0 0.0
    %1888 = vmatpush1.msra.mxu0 %v1871
    %1889 = vmatprep.subr.mxu0 0.0
    %1890 = vmatpush1.msra.mxu0 %v1872
    %1891 = vmatprep.subr.mxu0 0.0
    %1892 = vmatpush1.msra.mxu0 %v1873
    %1893 = vmatprep.subr.mxu0 0.0
    %1894 = vmatpush1.msra.mxu0 0.0
    %1895 = vmatprep.subr.mxu0 0.0
    %1896 = vmatpush1.msra.mxu0 0.0
    %1897 = vmatprep.subr.mxu0 0.0
    %1898 = vmatpush1.msra.mxu0 0.0
    %1899 = vmatprep.subr.mxu0 0.0
    %1900 = vmatpush1.msra.mxu0 0.0
    %1901 = vmatprep.subr.mxu0 0.0
    %1902 = vmatpush1.msra.mxu0 0.0
    %1903 = vmatprep.subr.mxu0 0.0
    %1904 = vmatpush1.msra.mxu0 0.0
    %1905 = vmatprep.subr.mxu0 0.0
    %1906 = vmatpush1.msra.mxu0 0.0
    %1907 = vmatprep.subr.mxu0 0.0
    %1908 = vmatpush1.msra.mxu0 0.0
    %1909 = vmatprep.subr.mxu0 0.0
    %1910 = vmatpush1.msra.mxu0 0.0
    %1911 = vmatprep.subr.mxu0 0.0
    %1912 = vmatpush1.msra.mxu0 0.0
    %1913 = vmatprep.subr.mxu0 0.0
    %1914 = vmatpush1.msra.mxu0 0.0
    %1915 = vmatprep.subr.mxu0 0.0
    %1916 = vmatpush1.msra.mxu0 0.0
    %1917 = vmatprep.subr.mxu0 0.0
    %1918 = vmatpush1.msra.mxu0 0.0
    %1919 = vmatprep.subr.mxu0 0.0
    %1920 = vmatpush1.msra.mxu0 0.0
    %1921 = vmatprep.subr.mxu0 0.0
    %1922 = vmatpush1.msra.mxu0 0.0
    %1923 = vmatprep.subr.mxu0 0.0
    %1924 = vmatpush1.msra.mxu0 0.0
    %1925 = vmatprep.subr.mxu0 0.0
    %1926 = vmatpush1.msra.mxu0 0.0
    %1927 = vmatprep.subr.mxu0 0.0
    %1928 = vmatpush1.msra.mxu0 0.0
    %1929 = vmatprep.subr.mxu0 0.0
    %1930 = vmatpush1.msra.mxu0 0.0
    %1931 = vmatprep.subr.mxu0 0.0
    %1932 = vmatpush1.msra.mxu0 0.0
    %1933 = vmatprep.subr.mxu0 0.0
    %1934 = vmatpush1.msra.mxu0 0.0
    %1935 = vmatprep.subr.mxu0 0.0
    %1936 = vmatpush1.msra.mxu0 0.0
    %1937 = vmatprep.subr.mxu0 0.0
    %1938 = vmatpush1.msra.mxu0 0.0
    %1939 = vmatprep.subr.mxu0 0.0
    %1940 = vmatpush1.msra.mxu0 0.0
    %1941 = vmatprep.mubr.f32.mxu0 0.0
    %1942 = vmatmul.mubr.f32.gmra.mrb[0].mxu0 %v1875
    %v1943 = vpop.f32.mrb[0].mxu0
    %v1944 = vadd.f32 0.0, %v1943
    %v1945 = vpop.f32.mrb[0].mxu0
    %1946 = vdwg.mxu0
    %v1947 = vadd.f32 %v1857, %v1944
    %v1948 = vtanh.pop %v1947
    %vm1949 = vcmask 517120
    %1950 = vst.msk [vmem:[#allocation2] sm:$0x3] %vm1949, %v1948
    %v1952 = vsel %vm670, %v1948, 0
    %1954 = vmatprep.subr.mxu0 0.0
    %1955 = vmatpush1.msra.mxu0 %v1866
    %1956 = vmatprep.subr.mxu0 0.0
    %1957 = vmatpush1.msra.mxu0 %v1867
    %1958 = vmatprep.subr.mxu0 0.0
    %1959 = vmatpush1.msra.mxu0 %v1868
    %1960 = vmatprep.subr.mxu0 0.0
    %1961 = vmatpush1.msra.mxu0 %v1869
    %1962 = vmatprep.subr.mxu0 0.0
    %1963 = vmatpush1.msra.mxu0 %v1870
    %1964 = vmatprep.subr.mxu0 0.0
    %1965 = vmatpush1.msra.mxu0 %v1871
    %1966 = vmatprep.subr.mxu0 0.0
    %1967 = vmatpush1.msra.mxu0 %v1872
    %1968 = vmatprep.subr.mxu0 0.0
    %1969 = vmatpush1.msra.mxu0 %v1873
    %1970 = vmatprep.subr.mxu0 0.0
    %1971 = vmatpush1.msra.mxu0 0.0
    %1972 = vmatprep.subr.mxu0 0.0
    %1973 = vmatpush1.msra.mxu0 0.0
    %1974 = vmatprep.subr.mxu0 0.0
    %1975 = vmatpush1.msra.mxu0 0.0
    %1976 = vmatprep.subr.mxu0 0.0
    %1977 = vmatpush1.msra.mxu0 0.0
    %1978 = vmatprep.subr.mxu0 0.0
    %1979 = vmatpush1.msra.mxu0 0.0
    %1980 = vmatprep.subr.mxu0 0.0
    %1981 = vmatpush1.msra.mxu0 0.0
    %1982 = vmatprep.subr.mxu0 0.0
    %1983 = vmatpush1.msra.mxu0 0.0
    %1984 = vmatprep.subr.mxu0 0.0
    %1985 = vmatpush1.msra.mxu0 0.0
    %1986 = vmatprep.subr.mxu0 0.0
    %1987 = vmatpush1.msra.mxu0 0.0
    %1988 = vmatprep.subr.mxu0 0.0
    %1989 = vmatpush1.msra.mxu0 0.0
    %1990 = vmatprep.subr.mxu0 0.0
    %1991 = vmatpush1.msra.mxu0 0.0
    %1992 = vmatprep.subr.mxu0 0.0
    %1993 = vmatpush1.msra.mxu0 0.0
    %1994 = vmatprep.subr.mxu0 0.0
    %1995 = vmatpush1.msra.mxu0 0.0
    %1996 = vmatprep.subr.mxu0 0.0
    %1997 = vmatpush1.msra.mxu0 0.0
    %1998 = vmatprep.subr.mxu0 0.0
    %1999 = vmatpush1.msra.mxu0 0.0
    %2000 = vmatprep.subr.mxu0 0.0
    %2001 = vmatpush1.msra.mxu0 0.0
    %2002 = vmatprep.subr.mxu0 0.0
    %2003 = vmatpush1.msra.mxu0 0.0
    %2004 = vmatprep.subr.mxu0 0.0
    %2005 = vmatpush1.msra.mxu0 0.0
    %2006 = vmatprep.subr.mxu0 0.0
    %2007 = vmatpush1.msra.mxu0 0.0
    %2008 = vmatprep.subr.mxu0 0.0
    %2009 = vmatpush1.msra.mxu0 0.0
    %2010 = vmatprep.subr.mxu0 0.0
    %2011 = vmatpush1.msra.mxu0 0.0
    %2012 = vmatprep.subr.mxu0 0.0
    %2013 = vmatpush1.msra.mxu0 0.0
    %2014 = vmatprep.subr.mxu0 0.0
    %2015 = vmatpush1.msra.mxu0 0.0
    %2016 = vmatprep.subr.mxu0 0.0
    %2017 = vmatpush1.msra.mxu0 0.0
    %2018 = vmatprep.mubr.f32.mxu0 0.0
    %2019 = vmatmul.mubr.f32.gmra.mrb[0].mxu0 %v1952
    %v2020 = vpop.f32.mrb[0].mxu0
    %v2021 = vadd.f32 0.0, %v2020
    %v2022 = vpop.f32.mrb[0].mxu0
    %2023 = vdwg.mxu0
    %v2025 = vrot.slane %v2021, 6
    %v2027 = vadd.f32 %v1857, %v2025
    %v2028 = vtanh.pop %v2027
    %vm2029 = vcmask 519170
    %2030 = vst.msk [vmem:[#allocation2] sm:$0xc] %vm2029, %v2028
    %v2032 = vrot.slane %v2028, 2
    %v2033 = vsel %vm670, %v2032, 0
    %2035 = vmatprep.subr.mxu0 0.0
    %2036 = vmatpush1.msra.mxu0 %v1866
    %2037 = vmatprep.subr.mxu0 0.0
    %2038 = vmatpush1.msra.mxu0 %v1867
    %2039 = vmatprep.subr.mxu0 0.0
    %2040 = vmatpush1.msra.mxu0 %v1868
    %2041 = vmatprep.subr.mxu0 0.0
    %2042 = vmatpush1.msra.mxu0 %v1869
    %2043 = vmatprep.subr.mxu0 0.0
    %2044 = vmatpush1.msra.mxu0 %v1870
    %2045 = vmatprep.subr.mxu0 0.0
    %2046 = vmatpush1.msra.mxu0 %v1871
    %2047 = vmatprep.subr.mxu0 0.0
    %2048 = vmatpush1.msra.mxu0 %v1872
    %2049 = vmatprep.subr.mxu0 0.0
    %2050 = vmatpush1.msra.mxu0 %v1873
    %2051 = vmatprep.subr.mxu0 0.0
    %2052 = vmatpush1.msra.mxu0 0.0
    %2053 = vmatprep.subr.mxu0 0.0
    %2054 = vmatpush1.msra.mxu0 0.0
    %2055 = vmatprep.subr.mxu0 0.0
    %2056 = vmatpush1.msra.mxu0 0.0
    %2057 = vmatprep.subr.mxu0 0.0
    %2058 = vmatpush1.msra.mxu0 0.0
    %2059 = vmatprep.subr.mxu0 0.0
    %2060 = vmatpush1.msra.mxu0 0.0
    %2061 = vmatprep.subr.mxu0 0.0
    %2062 = vmatpush1.msra.mxu0 0.0
    %2063 = vmatprep.subr.mxu0 0.0
    %2064 = vmatpush1.msra.mxu0 0.0
    %2065 = vmatprep.subr.mxu0 0.0
    %2066 = vmatpush1.msra.mxu0 0.0
    %2067 = vmatprep.subr.mxu0 0.0
    %2068 = vmatpush1.msra.mxu0 0.0
    %2069 = vmatprep.subr.mxu0 0.0
    %2070 = vmatpush1.msra.mxu0 0.0
    %2071 = vmatprep.subr.mxu0 0.0
    %2072 = vmatpush1.msra.mxu0 0.0
    %2073 = vmatprep.subr.mxu0 0.0
    %2074 = vmatpush1.msra.mxu0 0.0
    %2075 = vmatprep.subr.mxu0 0.0
    %2076 = vmatpush1.msra.mxu0 0.0
    %2077 = vmatprep.subr.mxu0 0.0
    %2078 = vmatpush1.msra.mxu0 0.0
    %2079 = vmatprep.subr.mxu0 0.0
    %2080 = vmatpush1.msra.mxu0 0.0
    %2081 = vmatprep.subr.mxu0 0.0
    %2082 = vmatpush1.msra.mxu0 0.0
    %2083 = vmatprep.subr.mxu0 0.0
    %2084 = vmatpush1.msra.mxu0 0.0
    %2085 = vmatprep.subr.mxu0 0.0
    %2086 = vmatpush1.msra.mxu0 0.0
    %2087 = vmatprep.subr.mxu0 0.0
    %2088 = vmatpush1.msra.mxu0 0.0
    %2089 = vmatprep.subr.mxu0 0.0
    %2090 = vmatpush1.msra.mxu0 0.0
    %2091 = vmatprep.subr.mxu0 0.0
    %2092 = vmatpush1.msra.mxu0 0.0
    %2093 = vmatprep.subr.mxu0 0.0
    %2094 = vmatpush1.msra.mxu0 0.0
    %2095 = vmatprep.subr.mxu0 0.0
    %2096 = vmatpush1.msra.mxu0 0.0
    %2097 = vmatprep.subr.mxu0 0.0
    %2098 = vmatpush1.msra.mxu0 0.0
    %2099 = vmatprep.mubr.f32.mxu0 0.0
    %2100 = vmatmul.mubr.f32.gmra.mrb[0].mxu0 %v2033
    %v2101 = vpop.f32.mrb[0].mxu0
    %v2102 = vadd.f32 0.0, %v2101
    %v2103 = vpop.f32.mrb[0].mxu0
    %2104 = vdwg.mxu0
    %v2106 = vrot.slane %v2102, 4
    %v2108 = vadd.f32 %v1857, %v2106
    %v2109 = vtanh.pop %v2108
    %vm2110 = vcmask 521220
    %2111 = vst.msk [vmem:[#allocation2] sm:$0x30] %vm2110, %v2109
    %v2113 = vrot.slane %v2109, 4
    %v2114 = vsel %vm670, %v2113, 0
    %2116 = vmatprep.subr.mxu0 0.0
    %2117 = vmatpush1.msra.mxu0 %v1866
    %2118 = vmatprep.subr.mxu0 0.0
    %2119 = vmatpush1.msra.mxu0 %v1867
    %2120 = vmatprep.subr.mxu0 0.0
    %2121 = vmatpush1.msra.mxu0 %v1868
    %2122 = vmatprep.subr.mxu0 0.0
    %2123 = vmatpush1.msra.mxu0 %v1869
    %2124 = vmatprep.subr.mxu0 0.0
    %2125 = vmatpush1.msra.mxu0 %v1870
    %2126 = vmatprep.subr.mxu0 0.0
    %2127 = vmatpush1.msra.mxu0 %v1871
    %2128 = vmatprep.subr.mxu0 0.0
    %2129 = vmatpush1.msra.mxu0 %v1872
    %2130 = vmatprep.subr.mxu0 0.0
    %2131 = vmatpush1.msra.mxu0 %v1873
    %2132 = vmatprep.subr.mxu0 0.0
    %2133 = vmatpush1.msra.mxu0 0.0
    %2134 = vmatprep.subr.mxu0 0.0
    %2135 = vmatpush1.msra.mxu0 0.0
    %2136 = vmatprep.subr.mxu0 0.0
    %2137 = vmatpush1.msra.mxu0 0.0
    %2138 = vmatprep.subr.mxu0 0.0
    %2139 = vmatpush1.msra.mxu0 0.0
    %2140 = vmatprep.subr.mxu0 0.0
    %2141 = vmatpush1.msra.mxu0 0.0
    %2142 = vmatprep.subr.mxu0 0.0
    %2143 = vmatpush1.msra.mxu0 0.0
    %2144 = vmatprep.subr.mxu0 0.0
    %2145 = vmatpush1.msra.mxu0 0.0
    %2146 = vmatprep.subr.mxu0 0.0
    %2147 = vmatpush1.msra.mxu0 0.0
    %2148 = vmatprep.subr.mxu0 0.0
    %2149 = vmatpush1.msra.mxu0 0.0
    %2150 = vmatprep.subr.mxu0 0.0
    %2151 = vmatpush1.msra.mxu0 0.0
    %2152 = vmatprep.subr.mxu0 0.0
    %2153 = vmatpush1.msra.mxu0 0.0
    %2154 = vmatprep.subr.mxu0 0.0
    %2155 = vmatpush1.msra.mxu0 0.0
    %2156 = vmatprep.subr.mxu0 0.0
    %2157 = vmatpush1.msra.mxu0 0.0
    %2158 = vmatprep.subr.mxu0 0.0
    %2159 = vmatpush1.msra.mxu0 0.0
    %2160 = vmatprep.subr.mxu0 0.0
    %2161 = vmatpush1.msra.mxu0 0.0
    %2162 = vmatprep.subr.mxu0 0.0
    %2163 = vmatpush1.msra.mxu0 0.0
    %2164 = vmatprep.subr.mxu0 0.0
    %2165 = vmatpush1.msra.mxu0 0.0
    %2166 = vmatprep.subr.mxu0 0.0
    %2167 = vmatpush1.msra.mxu0 0.0
    %2168 = vmatprep.subr.mxu0 0.0
    %2169 = vmatpush1.msra.mxu0 0.0
    %2170 = vmatprep.subr.mxu0 0.0
    %2171 = vmatpush1.msra.mxu0 0.0
    %2172 = vmatprep.subr.mxu0 0.0
    %2173 = vmatpush1.msra.mxu0 0.0
    %2174 = vmatprep.subr.mxu0 0.0
    %2175 = vmatpush1.msra.mxu0 0.0
    %2176 = vmatprep.subr.mxu0 0.0
    %2177 = vmatpush1.msra.mxu0 0.0
    %2178 = vmatprep.subr.mxu0 0.0
    %2179 = vmatpush1.msra.mxu0 0.0
    %2180 = vmatprep.mubr.f32.mxu0 0.0
    %2181 = vmatmul.mubr.f32.gmra.mrb[0].mxu0 %v2114
    %v2182 = vpop.f32.mrb[0].mxu0
    %v2183 = vadd.f32 0.0, %v2182
    %v2184 = vpop.f32.mrb[0].mxu0
    %2185 = vdwg.mxu0
    %v2187 = vrot.slane %v2183, 2
    %v2189 = vadd.f32 %v1857, %v2187
    %v2190 = vtanh.pop %v2189
    %vm2191 = vcmask 523270
    %2192 = vst.msk [vmem:[#allocation2] sm:$0xc0] %vm2191, %v2190
    %v2194 = vrot.slane %v2190, 6
    %v2195 = vsel %vm670, %v2194, 0
    %2197 = vmatprep.subr.mxu0 0.0
    %2198 = vmatpush1.msra.mxu0 %v1866
    %2199 = vmatprep.subr.mxu0 0.0
    %2200 = vmatpush1.msra.mxu0 %v1867
    %2201 = vmatprep.subr.mxu0 0.0
    %2202 = vmatpush1.msra.mxu0 %v1868
    %2203 = vmatprep.subr.mxu0 0.0
    %2204 = vmatpush1.msra.mxu0 %v1869
    %2205 = vmatprep.subr.mxu0 0.0
    %2206 = vmatpush1.msra.mxu0 %v1870
    %2207 = vmatprep.subr.mxu0 0.0
    %2208 = vmatpush1.msra.mxu0 %v1871
    %2209 = vmatprep.subr.mxu0 0.0
    %2210 = vmatpush1.msra.mxu0 %v1872
    %2211 = vmatprep.subr.mxu0 0.0
    %2212 = vmatpush1.msra.mxu0 %v1873
    %2213 = vmatprep.subr.mxu0 0.0
    %2214 = vmatpush1.msra.mxu0 0.0
    %2215 = vmatprep.subr.mxu0 0.0
    %2216 = vmatpush1.msra.mxu0 0.0
    %2217 = vmatprep.subr.mxu0 0.0
    %2218 = vmatpush1.msra.mxu0 0.0
    %2219 = vmatprep.subr.mxu0 0.0
    %2220 = vmatpush1.msra.mxu0 0.0
    %2221 = vmatprep.subr.mxu0 0.0
    %2222 = vmatpush1.msra.mxu0 0.0
    %2223 = vmatprep.subr.mxu0 0.0
    %2224 = vmatpush1.msra.mxu0 0.0
    %2225 = vmatprep.subr.mxu0 0.0
    %2226 = vmatpush1.msra.mxu0 0.0
    %2227 = vmatprep.subr.mxu0 0.0
    %2228 = vmatpush1.msra.mxu0 0.0
    %2229 = vmatprep.subr.mxu0 0.0
    %2230 = vmatpush1.msra.mxu0 0.0
    %2231 = vmatprep.subr.mxu0 0.0
    %2232 = vmatpush1.msra.mxu0 0.0
    %2233 = vmatprep.subr.mxu0 0.0
    %2234 = vmatpush1.msra.mxu0 0.0
    %2235 = vmatprep.subr.mxu0 0.0
    %2236 = vmatpush1.msra.mxu0 0.0
    %2237 = vmatprep.subr.mxu0 0.0
    %2238 = vmatpush1.msra.mxu0 0.0
    %2239 = vmatprep.subr.mxu0 0.0
    %2240 = vmatpush1.msra.mxu0 0.0
    %2241 = vmatprep.subr.mxu0 0.0
    %2242 = vmatpush1.msra.mxu0 0.0
    %2243 = vmatprep.subr.mxu0 0.0
    %2244 = vmatpush1.msra.mxu0 0.0
    %2245 = vmatprep.subr.mxu0 0.0
    %2246 = vmatpush1.msra.mxu0 0.0
    %2247 = vmatprep.subr.mxu0 0.0
    %2248 = vmatpush1.msra.mxu0 0.0
    %2249 = vmatprep.subr.mxu0 0.0
    %2250 = vmatpush1.msra.mxu0 0.0
    %2251 = vmatprep.subr.mxu0 0.0
    %2252 = vmatpush1.msra.mxu0 0.0
    %2253 = vmatprep.subr.mxu0 0.0
    %2254 = vmatpush1.msra.mxu0 0.0
    %2255 = vmatprep.subr.mxu0 0.0
    %2256 = vmatpush1.msra.mxu0 0.0
    %2257 = vmatprep.subr.mxu0 0.0
    %2258 = vmatpush1.msra.mxu0 0.0
    %2259 = vmatprep.subr.mxu0 0.0
    %2260 = vmatpush1.msra.mxu0 0.0
    %2261 = vmatprep.mubr.f32.mxu0 0.0
    %2262 = vmatmul.mubr.f32.gmra.mrb[0].mxu0 %v2195
    %v2263 = vpop.f32.mrb[0].mxu0
    %v2264 = vadd.f32 0.0, %v2263
    %v2265 = vpop.f32.mrb[0].mxu0
    %2266 = vdwg.mxu0
    %v2267 = vadd.f32 %v1862, %v2264
    %v2268 = vtanh.pop %v2267
    %2269 = vst.msk [vmem:[#allocation2 + $0x8] sm:$0x3] %vm1949, %v2268
    %v2271 = vsel %vm670, %v2268, 0
    %2273 = vmatprep.subr.mxu0 0.0
    %2274 = vmatpush1.msra.mxu0 %v1866
    %2275 = vmatprep.subr.mxu0 0.0
    %2276 = vmatpush1.msra.mxu0 %v1867
    %2277 = vmatprep.subr.mxu0 0.0
    %2278 = vmatpush1.msra.mxu0 %v1868
    %2279 = vmatprep.subr.mxu0 0.0
    %2280 = vmatpush1.msra.mxu0 %v1869
    %2281 = vmatprep.subr.mxu0 0.0
    %2282 = vmatpush1.msra.mxu0 %v1870
    %2283 = vmatprep.subr.mxu0 0.0
    %2284 = vmatpush1.msra.mxu0 %v1871
    %2285 = vmatprep.subr.mxu0 0.0
    %2286 = vmatpush1.msra.mxu0 %v1872
    %2287 = vmatprep.subr.mxu0 0.0
    %2288 = vmatpush1.msra.mxu0 %v1873
    %2289 = vmatprep.subr.mxu0 0.0
    %2290 = vmatpush1.msra.mxu0 0.0
    %2291 = vmatprep.subr.mxu0 0.0
    %2292 = vmatpush1.msra.mxu0 0.0
    %2293 = vmatprep.subr.mxu0 0.0
    %2294 = vmatpush1.msra.mxu0 0.0
    %2295 = vmatprep.subr.mxu0 0.0
    %2296 = vmatpush1.msra.mxu0 0.0
    %2297 = vmatprep.subr.mxu0 0.0
    %2298 = vmatpush1.msra.mxu0 0.0
    %2299 = vmatprep.subr.mxu0 0.0
    %2300 = vmatpush1.msra.mxu0 0.0
    %2301 = vmatprep.subr.mxu0 0.0
    %2302 = vmatpush1.msra.mxu0 0.0
    %2303 = vmatprep.subr.mxu0 0.0
    %2304 = vmatpush1.msra.mxu0 0.0
    %2305 = vmatprep.subr.mxu0 0.0
    %2306 = vmatpush1.msra.mxu0 0.0
    %2307 = vmatprep.subr.mxu0 0.0
    %2308 = vmatpush1.msra.mxu0 0.0
    %2309 = vmatprep.subr.mxu0 0.0
    %2310 = vmatpush1.msra.mxu0 0.0
    %2311 = vmatprep.subr.mxu0 0.0
    %2312 = vmatpush1.msra.mxu0 0.0
    %2313 = vmatprep.subr.mxu0 0.0
    %2314 = vmatpush1.msra.mxu0 0.0
    %2315 = vmatprep.subr.mxu0 0.0
    %2316 = vmatpush1.msra.mxu0 0.0
    %2317 = vmatprep.subr.mxu0 0.0
    %2318 = vmatpush1.msra.mxu0 0.0
    %2319 = vmatprep.subr.mxu0 0.0
    %2320 = vmatpush1.msra.mxu0 0.0
    %2321 = vmatprep.subr.mxu0 0.0
    %2322 = vmatpush1.msra.mxu0 0.0
    %2323 = vmatprep.subr.mxu0 0.0
    %2324 = vmatpush1.msra.mxu0 0.0
    %2325 = vmatprep.subr.mxu0 0.0
    %2326 = vmatpush1.msra.mxu0 0.0
    %2327 = vmatprep.subr.mxu0 0.0
    %2328 = vmatpush1.msra.mxu0 0.0
    %2329 = vmatprep.subr.mxu0 0.0
    %2330 = vmatpush1.msra.mxu0 0.0
    %2331 = vmatprep.subr.mxu0 0.0
    %2332 = vmatpush1.msra.mxu0 0.0
    %2333 = vmatprep.subr.mxu0 0.0
    %2334 = vmatpush1.msra.mxu0 0.0
    %2335 = vmatprep.subr.mxu0 0.0
    %2336 = vmatpush1.msra.mxu0 0.0
    %2337 = vmatprep.mubr.f32.mxu0 0.0
    %2338 = vmatmul.mubr.f32.gmra.mrb[0].mxu0 %v2271
    %v2339 = vpop.f32.mrb[0].mxu0
    %v2340 = vadd.f32 0.0, %v2339
    %v2341 = vpop.f32.mrb[0].mxu0
    %2342 = vdwg.mxu0
    %v2344 = vrot.slane %v2340, 6
    %v2346 = vadd.f32 %v1862, %v2344
    %v2347 = vtanh.pop %v2346
    %2348 = vst.msk [vmem:[#allocation2 + $0x8] sm:$0xc] %vm2029, %v2347
    %v2350 = vrot.slane %v2347, 2
    %v2351 = vsel %vm670, %v2350, 0
    %2353 = vmatprep.subr.mxu0 0.0
    %2354 = vmatpush1.msra.mxu0 %v1866
    %2355 = vmatprep.subr.mxu0 0.0
    %2356 = vmatpush1.msra.mxu0 %v1867
    %2357 = vmatprep.subr.mxu0 0.0
    %2358 = vmatpush1.msra.mxu0 %v1868
    %2359 = vmatprep.subr.mxu0 0.0
    %2360 = vmatpush1.msra.mxu0 %v1869
    %2361 = vmatprep.subr.mxu0 0.0
    %2362 = vmatpush1.msra.mxu0 %v1870
    %2363 = vmatprep.subr.mxu0 0.0
    %2364 = vmatpush1.msra.mxu0 %v1871
    %2365 = vmatprep.subr.mxu0 0.0
    %2366 = vmatpush1.msra.mxu0 %v1872
    %2367 = vmatprep.subr.mxu0 0.0
    %2368 = vmatpush1.msra.mxu0 %v1873
    %2369 = vmatprep.subr.mxu0 0.0
    %2370 = vmatpush1.msra.mxu0 0.0
    %2371 = vmatprep.subr.mxu0 0.0
    %2372 = vmatpush1.msra.mxu0 0.0
    %2373 = vmatprep.subr.mxu0 0.0
    %2374 = vmatpush1.msra.mxu0 0.0
    %2375 = vmatprep.subr.mxu0 0.0
    %2376 = vmatpush1.msra.mxu0 0.0
    %2377 = vmatprep.subr.mxu0 0.0
    %2378 = vmatpush1.msra.mxu0 0.0
    %2379 = vmatprep.subr.mxu0 0.0
    %2380 = vmatpush1.msra.mxu0 0.0
    %2381 = vmatprep.subr.mxu0 0.0
    %2382 = vmatpush1.msra.mxu0 0.0
    %2383 = vmatprep.subr.mxu0 0.0
    %2384 = vmatpush1.msra.mxu0 0.0
    %2385 = vmatprep.subr.mxu0 0.0
    %2386 = vmatpush1.msra.mxu0 0.0
    %2387 = vmatprep.subr.mxu0 0.0
    %2388 = vmatpush1.msra.mxu0 0.0
    %2389 = vmatprep.subr.mxu0 0.0
    %2390 = vmatpush1.msra.mxu0 0.0
    %2391 = vmatprep.subr.mxu0 0.0
    %2392 = vmatpush1.msra.mxu0 0.0
    %2393 = vmatprep.subr.mxu0 0.0
    %2394 = vmatpush1.msra.mxu0 0.0
    %2395 = vmatprep.subr.mxu0 0.0
    %2396 = vmatpush1.msra.mxu0 0.0
    %2397 = vmatprep.subr.mxu0 0.0
    %2398 = vmatpush1.msra.mxu0 0.0
    %2399 = vmatprep.subr.mxu0 0.0
    %2400 = vmatpush1.msra.mxu0 0.0
    %2401 = vmatprep.subr.mxu0 0.0
    %2402 = vmatpush1.msra.mxu0 0.0
    %2403 = vmatprep.subr.mxu0 0.0
    %2404 = vmatpush1.msra.mxu0 0.0
    %2405 = vmatprep.subr.mxu0 0.0
    %2406 = vmatpush1.msra.mxu0 0.0
    %2407 = vmatprep.subr.mxu0 0.0
    %2408 = vmatpush1.msra.mxu0 0.0
    %2409 = vmatprep.subr.mxu0 0.0
    %2410 = vmatpush1.msra.mxu0 0.0
    %2411 = vmatprep.subr.mxu0 0.0
    %2412 = vmatpush1.msra.mxu0 0.0
    %2413 = vmatprep.subr.mxu0 0.0
    %2414 = vmatpush1.msra.mxu0 0.0
    %2415 = vmatprep.subr.mxu0 0.0
    %2416 = vmatpush1.msra.mxu0 0.0
    %2417 = vmatprep.mubr.f32.mxu0 0.0
    %2418 = vmatmul.mubr.f32.gmra.mrb[0].mxu0 %v2351
    %v2419 = vpop.f32.mrb[0].mxu0
    %v2420 = vadd.f32 0.0, %v2419
    %v2421 = vpop.f32.mrb[0].mxu0
    %2422 = vdwg.mxu0
    %v2424 = vrot.slane %v2420, 4
    %v2426 = vadd.f32 %v1862, %v2424
    %v2427 = vtanh.pop %v2426
    %2428 = vst.msk [vmem:[#allocation2 + $0x8] sm:$0x30] %vm2110, %v2427
    %v2430 = vrot.slane %v2427, 4
    %v2431 = vsel %vm670, %v2430, 0
    %2433 = vmatprep.subr.mxu0 0.0
    %2434 = vmatpush1.msra.mxu0 %v1866
    %2435 = vmatprep.subr.mxu0 0.0
    %2436 = vmatpush1.msra.mxu0 %v1867
    %2437 = vmatprep.subr.mxu0 0.0
    %2438 = vmatpush1.msra.mxu0 %v1868
    %2439 = vmatprep.subr.mxu0 0.0
    %2440 = vmatpush1.msra.mxu0 %v1869
    %2441 = vmatprep.subr.mxu0 0.0
    %2442 = vmatpush1.msra.mxu0 %v1870
    %2443 = vmatprep.subr.mxu0 0.0
    %2444 = vmatpush1.msra.mxu0 %v1871
    %2445 = vmatprep.subr.mxu0 0.0
    %2446 = vmatpush1.msra.mxu0 %v1872
    %2447 = vmatprep.subr.mxu0 0.0
    %2448 = vmatpush1.msra.mxu0 %v1873
    %2449 = vmatprep.subr.mxu0 0.0
    %2450 = vmatpush1.msra.mxu0 0.0
    %2451 = vmatprep.subr.mxu0 0.0
    %2452 = vmatpush1.msra.mxu0 0.0
    %2453 = vmatprep.subr.mxu0 0.0
    %2454 = vmatpush1.msra.mxu0 0.0
    %2455 = vmatprep.subr.mxu0 0.0
    %2456 = vmatpush1.msra.mxu0 0.0
    %2457 = vmatprep.subr.mxu0 0.0
    %2458 = vmatpush1.msra.mxu0 0.0
    %2459 = vmatprep.subr.mxu0 0.0
    %2460 = vmatpush1.msra.mxu0 0.0
    %2461 = vmatprep.subr.mxu0 0.0
    %2462 = vmatpush1.msra.mxu0 0.0
    %2463 = vmatprep.subr.mxu0 0.0
    %2464 = vmatpush1.msra.mxu0 0.0
    %2465 = vmatprep.subr.mxu0 0.0
    %2466 = vmatpush1.msra.mxu0 0.0
    %2467 = vmatprep.subr.mxu0 0.0
    %2468 = vmatpush1.msra.mxu0 0.0
    %2469 = vmatprep.subr.mxu0 0.0
    %2470 = vmatpush1.msra.mxu0 0.0
    %2471 = vmatprep.subr.mxu0 0.0
    %2472 = vmatpush1.msra.mxu0 0.0
    %2473 = vmatprep.subr.mxu0 0.0
    %2474 = vmatpush1.msra.mxu0 0.0
    %2475 = vmatprep.subr.mxu0 0.0
    %2476 = vmatpush1.msra.mxu0 0.0
    %2477 = vmatprep.subr.mxu0 0.0
    %2478 = vmatpush1.msra.mxu0 0.0
    %2479 = vmatprep.subr.mxu0 0.0
    %2480 = vmatpush1.msra.mxu0 0.0
    %2481 = vmatprep.subr.mxu0 0.0
    %2482 = vmatpush1.msra.mxu0 0.0
    %2483 = vmatprep.subr.mxu0 0.0
    %2484 = vmatpush1.msra.mxu0 0.0
    %2485 = vmatprep.subr.mxu0 0.0
    %2486 = vmatpush1.msra.mxu0 0.0
    %2487 = vmatprep.subr.mxu0 0.0
    %2488 = vmatpush1.msra.mxu0 0.0
    %2489 = vmatprep.subr.mxu0 0.0
    %2490 = vmatpush1.msra.mxu0 0.0
    %2491 = vmatprep.subr.mxu0 0.0
    %2492 = vmatpush1.msra.mxu0 0.0
    %2493 = vmatprep.subr.mxu0 0.0
    %2494 = vmatpush1.msra.mxu0 0.0
    %2495 = vmatprep.subr.mxu0 0.0
    %2496 = vmatpush1.msra.mxu0 0.0
    %2497 = vmatprep.mubr.f32.mxu0 0.0
    %2498 = vmatmul.mubr.f32.gmra.mrb[0].mxu0 %v2431
    %v2499 = vpop.f32.mrb[0].mxu0
    %v2500 = vadd.f32 0.0, %v2499
    %v2501 = vpop.f32.mrb[0].mxu0
    %2502 = vdwg.mxu0
    %v2504 = vrot.slane %v2500, 2
    %v2506 = vadd.f32 %v1862, %v2504
    %v2507 = vtanh.pop %v2506
    %2508 = vst.msk [vmem:[#allocation2 + $0x8] sm:$0xc0] %vm2191, %v2507
    %v2509 = vld [vmem:[#allocation2] sm:$0xff]
    %v2510 = vld [vmem:[#allocation2 + $0x8] sm:$0xff]
    %2511 = vmatprep.subr.mxu0 0.0
    %2512 = vmatpush1.msra.mxu0 %v2509
    %2513 = vmatprep.subr.mxu0 0.0
    %2514 = vmatpush1.msra.mxu0 %v2510
    %2515 = vmatprep.subr.mxu0 0.0
    %2516 = vmatpush1.msra.mxu0 0.0
    %2517 = vmatprep.subr.mxu0 0.0
    %2518 = vmatpush1.msra.mxu0 0.0
    %2519 = vmatprep.subr.mxu0 0.0
    %2520 = vmatpush1.msra.mxu0 0.0
    %2521 = vmatprep.subr.mxu0 0.0
    %2522 = vmatpush1.msra.mxu0 0.0
    %2523 = vmatprep.subr.mxu0 0.0
    %2524 = vmatpush1.msra.mxu0 0.0
    %2525 = vmatprep.subr.mxu0 0.0
    %2526 = vmatpush1.msra.mxu0 0.0
    %2527 = vmatprep.subr.mxu0 0.0
    %2528 = vmatpush1.msra.mxu0 0.0
    %2529 = vmatprep.subr.mxu0 0.0
    %2530 = vmatpush1.msra.mxu0 0.0
    %2531 = vmatprep.subr.mxu0 0.0
    %2532 = vmatpush1.msra.mxu0 0.0
    %2533 = vmatprep.subr.mxu0 0.0
    %2534 = vmatpush1.msra.mxu0 0.0
    %2535 = vmatprep.subr.mxu0 0.0
    %2536 = vmatpush1.msra.mxu0 0.0
    %2537 = vmatprep.subr.mxu0 0.0
    %2538 = vmatpush1.msra.mxu0 0.0
    %2539 = vmatprep.subr.mxu0 0.0
    %2540 = vmatpush1.msra.mxu0 0.0
    %2541 = vmatprep.subr.mxu0 0.0
    %2542 = vmatpush1.msra.mxu0 0.0
    %2543 = vmatprep.subr.mxu0 0.0
    %2544 = vmatpush1.msra.mxu0 0.0
    %2545 = vmatprep.subr.mxu0 0.0
    %2546 = vmatpush1.msra.mxu0 0.0
    %2547 = vmatprep.subr.mxu0 0.0
    %2548 = vmatpush1.msra.mxu0 0.0
    %2549 = vmatprep.subr.mxu0 0.0
    %2550 = vmatpush1.msra.mxu0 0.0
    %2551 = vmatprep.subr.mxu0 0.0
    %2552 = vmatpush1.msra.mxu0 0.0
    %2553 = vmatprep.subr.mxu0 0.0
    %2554 = vmatpush1.msra.mxu0 0.0
    %2555 = vmatprep.subr.mxu0 0.0
    %2556 = vmatpush1.msra.mxu0 0.0
    %2557 = vmatprep.subr.mxu0 0.0
    %2558 = vmatpush1.msra.mxu0 0.0
    %2559 = vmatprep.subr.mxu0 0.0
    %2560 = vmatpush1.msra.mxu0 0.0
    %2561 = vmatprep.subr.mxu0 0.0
    %2562 = vmatpush1.msra.mxu0 0.0
    %2563 = vmatprep.subr.mxu0 0.0
    %2564 = vmatpush1.msra.mxu0 0.0
    %2565 = vmatprep.subr.mxu0 0.0
    %2566 = vmatpush1.msra.mxu0 0.0
    %2567 = vmatprep.subr.mxu0 0.0
    %2568 = vmatpush1.msra.mxu0 0.0
    %2569 = vmatprep.subr.mxu0 0.0
    %2570 = vmatpush1.msra.mxu0 0.0
    %2571 = vmatprep.subr.mxu0 0.0
    %2572 = vmatpush1.msra.mxu0 0.0
    %2573 = vmatprep.subr.mxu0 0.0
    %2574 = vmatpush1.msra.mxu0 0.0
    %2575 = vmatprep.mubr.f32.mxu0 0.0
    %2576 = vmatmul.mubr.f32.gmra.mrb[0].mxu0 %v1614
    %v2577 = vpop.f32.mrb[0].mxu0
    %v2578 = vadd.f32 0.0, %v2577
    %v2579 = vpop.f32.mrb[0].mxu0
    %2580 = vmatprep.mubr.f32.mxu0 0.0
    %2581 = vmatmul.mubr.f32.gmra.mrb[0].mxu0 %v1617
    %v2582 = vpop.f32.mrb[0].mxu0
    %v2583 = vadd.f32 0.0, %v2582
    %v2584 = vpop.f32.mrb[0].mxu0
    %2585 = vdwg.mxu0
    %v2586 = vsel %vm1604, %v2509, %v2578
    %v2587 = vsel %vm1604, %v2510, %v2583
    %v2588 = vsel %vm670, %v2586, 0.0
    %v2589 = vsel %vm670, %v2587, 0.0
    %v2590 = vadd.f32 %v2588, %v2589
    %v2591 = vrot.slane %v2590, 4
    %v2592 = vadd.f32 %v2590, %v2591
    %v2593 = vrot.slane %v2592, 2
    %v2594 = vadd.f32 %v2592, %v2593
    %v2595 = vrot.slane %v2594, 1
    %v2596 = vadd.f32 %v2594, %v2595
    %v2597 = vmul.f32 %v2596, 0.0625
    %v2598 = vsub.f32 %v2586, %v2597
    %v2599 = vsub.f32 %v2587, %v2597
    %v2600 = vmul.f32 %v2598, %v2598
    %v2601 = vmul.f32 %v2599, %v2599
    %v2602 = vsel %vm670, %v2600, 0.0
    %v2603 = vsel %vm670, %v2601, 0.0
    %v2604 = vadd.f32 %v2602, %v2603
    %v2605 = vrot.slane %v2604, 4
    %v2606 = vadd.f32 %v2604, %v2605
    %v2607 = vrot.slane %v2606, 2
    %v2608 = vadd.f32 %v2606, %v2607
    %v2609 = vrot.slane %v2608, 1
    %v2610 = vadd.f32 %v2608, %v2609
    %v2611 = vmul.f32 %v2610, 0.0625
    %v2612 = vadd.f32 %v2611, 1e-05
    %v2613 = vrsqrt.pop %v2612
    %v2614 = vmul.f32 %v2598, %v2613
    %v2615 = vmul.f32 %v2599, %v2613
    %v2616 = vlaneseq
    %v2617 = vshrl.u32 %v2616, 7
    %v2618 = vsub.s32 6, %v2617
    %v2619 = vrot.slane %v145, %v2618
    %v2620 = vmul.f32 %v2614, %v2619
    %v2621 = vmul.f32 %v2615, %v2619
    %v2622 = vlaneseq
    %v2623 = vshrl.u32 %v2622, 7
    %v2624 = vsub.s32 7, %v2623
    %v2625 = vrot.slane %v145, %v2624
    %v2626 = vadd.f32 %v2620, %v2625
    %v2627 = vadd.f32 %v2621, %v2625
    %v2628 = vld [vmem:[#allocation15] sm:$0xff]
    %v2629 = vld [vmem:[#allocation15 + $0x8] sm:$0xff]
    %v2630 = vld [vmem:[#allocation15 + $0x10] sm:$0xff]
    %v2631 = vld [vmem:[#allocation15 + $0x18] sm:$0xff]
    %v2632 = vld [vmem:[#allocation15 + $0x20] sm:$0xff]
    %v2633 = vld [vmem:[#allocation15 + $0x28] sm:$0xff]
    %v2634 = vld [vmem:[#allocation15 + $0x30] sm:$0xff]
    %v2635 = vld [vmem:[#allocation15 + $0x38] sm:$0xff]
    %2636 = vmatprep.subr.mxu0 0.0
    %2637 = vmatpush1.msra.mxu0 %v2626
    %2638 = vmatprep.subr.mxu0 0.0
    %2639 = vmatpush1.msra.mxu0 %v2627
    %2640 = vmatprep.subr.mxu0 0.0
    %2641 = vmatpush1.msra.mxu0 0.0
    %2642 = vmatprep.subr.mxu0 0.0
    %2643 = vmatpush1.msra.mxu0 0.0
    %2644 = vmatprep.subr.mxu0 0.0
    %2645 = vmatpush1.msra.mxu0 0.0
    %2646 = vmatprep.subr.mxu0 0.0
    %2647 = vmatpush1.msra.mxu0 0.0
    %2648 = vmatprep.subr.mxu0 0.0
    %2649 = vmatpush1.msra.mxu0 0.0
    %2650 = vmatprep.subr.mxu0 0.0
    %2651 = vmatpush1.msra.mxu0 0.0
    %2652 = vmatprep.subr.mxu0 0.0
    %2653 = vmatpush1.msra.mxu0 0.0
    %2654 = vmatprep.subr.mxu0 0.0
    %2655 = vmatpush1.msra.mxu0 0.0
    %2656 = vmatprep.subr.mxu0 0.0
    %2657 = vmatpush1.msra.mxu0 0.0
    %2658 = vmatprep.subr.mxu0 0.0
    %2659 = vmatpush1.msra.mxu0 0.0
    %2660 = vmatprep.subr.mxu0 0.0
    %2661 = vmatpush1.msra.mxu0 0.0
    %2662 = vmatprep.subr.mxu0 0.0
    %2663 = vmatpush1.msra.mxu0 0.0
    %2664 = vmatprep.subr.mxu0 0.0
    %2665 = vmatpush1.msra.mxu0 0.0
    %2666 = vmatprep.subr.mxu0 0.0
    %2667 = vmatpush1.msra.mxu0 0.0
    %2668 = vmatprep.subr.mxu0 0.0
    %2669 = vmatpush1.msra.mxu0 0.0
    %2670 = vmatprep.subr.mxu0 0.0
    %2671 = vmatpush1.msra.mxu0 0.0
    %2672 = vmatprep.subr.mxu0 0.0
    %2673 = vmatpush1.msra.mxu0 0.0
    %2674 = vmatprep.subr.mxu0 0.0
    %2675 = vmatpush1.msra.mxu0 0.0
    %2676 = vmatprep.subr.mxu0 0.0
    %2677 = vmatpush1.msra.mxu0 0.0
    %2678 = vmatprep.subr.mxu0 0.0
    %2679 = vmatpush1.msra.mxu0 0.0
    %2680 = vmatprep.subr.mxu0 0.0
    %2681 = vmatpush1.msra.mxu0 0.0
    %2682 = vmatprep.subr.mxu0 0.0
    %2683 = vmatpush1.msra.mxu0 0.0
    %2684 = vmatprep.subr.mxu0 0.0
    %2685 = vmatpush1.msra.mxu0 0.0
    %2686 = vmatprep.subr.mxu0 0.0
    %2687 = vmatpush1.msra.mxu0 0.0
    %2688 = vmatprep.subr.mxu0 0.0
    %2689 = vmatpush1.msra.mxu0 0.0
    %2690 = vmatprep.subr.mxu0 0.0
    %2691 = vmatpush1.msra.mxu0 0.0
    %2692 = vmatprep.subr.mxu0 0.0
    %2693 = vmatpush1.msra.mxu0 0.0
    %2694 = vmatprep.subr.mxu0 0.0
    %2695 = vmatpush1.msra.mxu0 0.0
    %2696 = vmatprep.subr.mxu0 0.0
    %2697 = vmatpush1.msra.mxu0 0.0
    %2698 = vmatprep.subr.mxu0 0.0
    %2699 = vmatpush1.msra.mxu0 0.0
    %2700 = vmatprep.mubr.f32.mxu0 0.0
    %2701 = vmatmul.mubr.f32.gmra.mrb[0].mxu0 %v1614
    %v2702 = vpop.f32.mrb[0].mxu0
    %v2703 = vadd.f32 0.0, %v2702
    %v2704 = vpop.f32.mrb[0].mxu0
    %2705 = vmatprep.mubr.f32.mxu0 0.0
    %2706 = vmatmul.mubr.f32.gmra.mrb[0].mxu0 %v1617
    %v2707 = vpop.f32.mrb[0].mxu0
    %v2708 = vadd.f32 0.0, %v2707
    %v2709 = vpop.f32.mrb[0].mxu0
    %2710 = vdwg.mxu0
    %s2711 = scalar_lea.vmem [#allocation15], 64
    %v2712 = vld [vmem:[%s2711] sm:$0xff]
    %v2713 = vld [vmem:[%s2711 + $0x8] sm:$0xff]
    %v2714 = vld [vmem:[%s2711 + $0x10] sm:$0xff]
    %v2715 = vld [vmem:[%s2711 + $0x18] sm:$0xff]
    %v2716 = vld [vmem:[%s2711 + $0x20] sm:$0xff]
    %v2717 = vld [vmem:[%s2711 + $0x28] sm:$0xff]
    %v2718 = vld [vmem:[%s2711 + $0x30] sm:$0xff]
    %v2719 = vld [vmem:[%s2711 + $0x38] sm:$0xff]
    %v2721 = vsel %vm670, %v2703, 0
    %v2724 = vsel %vm670, %v2708, 0
    %2726 = vmatprep.subr.mxu0 0.0
    %2727 = vmatpush1.msra.mxu0 %v2712
    %2728 = vmatprep.subr.mxu0 0.0
    %2729 = vmatpush1.msra.mxu0 %v2713
    %2730 = vmatprep.subr.mxu0 0.0
    %2731 = vmatpush1.msra.mxu0 %v2714
    %2732 = vmatprep.subr.mxu0 0.0
    %2733 = vmatpush1.msra.mxu0 %v2715
    %2734 = vmatprep.subr.mxu0 0.0
    %2735 = vmatpush1.msra.mxu0 %v2716
    %2736 = vmatprep.subr.mxu0 0.0
    %2737 = vmatpush1.msra.mxu0 %v2717
    %2738 = vmatprep.subr.mxu0 0.0
    %2739 = vmatpush1.msra.mxu0 %v2718
    %2740 = vmatprep.subr.mxu0 0.0
    %2741 = vmatpush1.msra.mxu0 %v2719
    %2742 = vmatprep.subr.mxu0 0.0
    %2743 = vmatpush1.msra.mxu0 0.0
    %2744 = vmatprep.subr.mxu0 0.0
    %2745 = vmatpush1.msra.mxu0 0.0
    %2746 = vmatprep.subr.mxu0 0.0
    %2747 = vmatpush1.msra.mxu0 0.0
    %2748 = vmatprep.subr.mxu0 0.0
    %2749 = vmatpush1.msra.mxu0 0.0
    %2750 = vmatprep.subr.mxu0 0.0
    %2751 = vmatpush1.msra.mxu0 0.0
    %2752 = vmatprep.subr.mxu0 0.0
    %2753 = vmatpush1.msra.mxu0 0.0
    %2754 = vmatprep.subr.mxu0 0.0
    %2755 = vmatpush1.msra.mxu0 0.0
    %2756 = vmatprep.subr.mxu0 0.0
    %2757 = vmatpush1.msra.mxu0 0.0
    %2758 = vmatprep.subr.mxu0 0.0
    %2759 = vmatpush1.msra.mxu0 0.0
    %2760 = vmatprep.subr.mxu0 0.0
    %2761 = vmatpush1.msra.mxu0 0.0
    %2762 = vmatprep.subr.mxu0 0.0
    %2763 = vmatpush1.msra.mxu0 0.0
    %2764 = vmatprep.subr.mxu0 0.0
    %2765 = vmatpush1.msra.mxu0 0.0
    %2766 = vmatprep.subr.mxu0 0.0
    %2767 = vmatpush1.msra.mxu0 0.0
    %2768 = vmatprep.subr.mxu0 0.0
    %2769 = vmatpush1.msra.mxu0 0.0
    %2770 = vmatprep.subr.mxu0 0.0
    %2771 = vmatpush1.msra.mxu0 0.0
    %2772 = vmatprep.subr.mxu0 0.0
    %2773 = vmatpush1.msra.mxu0 0.0
    %2774 = vmatprep.subr.mxu0 0.0
    %2775 = vmatpush1.msra.mxu0 0.0
    %2776 = vmatprep.subr.mxu0 0.0
    %2777 = vmatpush1.msra.mxu0 0.0
    %2778 = vmatprep.subr.mxu0 0.0
    %2779 = vmatpush1.msra.mxu0 0.0
    %2780 = vmatprep.subr.mxu0 0.0
    %2781 = vmatpush1.msra.mxu0 0.0
    %2782 = vmatprep.subr.mxu0 0.0
    %2783 = vmatpush1.msra.mxu0 0.0
    %2784 = vmatprep.subr.mxu0 0.0
    %2785 = vmatpush1.msra.mxu0 0.0
    %2786 = vmatprep.subr.mxu0 0.0
    %2787 = vmatpush1.msra.mxu0 0.0
    %2788 = vmatprep.subr.mxu0 0.0
    %2789 = vmatpush1.msra.mxu0 0.0
    %2790 = vmatprep.mubr.f32.mxu0 0.0
    %2791 = vmatmul.mubr.f32.gmra.mrb[0].mxu0 %v2721
    %v2792 = vpop.f32.mrb[0].mxu0
    %v2793 = vadd.f32 0.0, %v2792
    %v2794 = vpop.f32.mrb[0].mxu0
    %2795 = vmatprep.mubr.f32.mxu0 0.0
    %2796 = vmatmul.mubr.f32.gmra.mrb[0].mxu0 %v2724
    %v2797 = vpop.f32.mrb[0].mxu0
    %v2798 = vadd.f32 0.0, %v2797
    %v2799 = vpop.f32.mrb[0].mxu0
    %2800 = vdwg.mxu0
    %v2802 = vsel %vm670, %v2626, 0
    %v2805 = vsel %vm670, %v2627, 0
    %2807 = vmatprep.subr.mxu0 0.0
    %2808 = vmatpush1.msra.mxu0 %v2628
    %2809 = vmatprep.subr.mxu0 0.0
    %2810 = vmatpush1.msra.mxu0 %v2629
    %2811 = vmatprep.subr.mxu0 0.0
    %2812 = vmatpush1.msra.mxu0 %v2630
    %2813 = vmatprep.subr.mxu0 0.0
    %2814 = vmatpush1.msra.mxu0 %v2631
    %2815 = vmatprep.subr.mxu0 0.0
    %2816 = vmatpush1.msra.mxu0 %v2632
    %2817 = vmatprep.subr.mxu0 0.0
    %2818 = vmatpush1.msra.mxu0 %v2633
    %2819 = vmatprep.subr.mxu0 0.0
    %2820 = vmatpush1.msra.mxu0 %v2634
    %2821 = vmatprep.subr.mxu0 0.0
    %2822 = vmatpush1.msra.mxu0 %v2635
    %2823 = vmatprep.subr.mxu0 0.0
    %2824 = vmatpush1.msra.mxu0 0.0
    %2825 = vmatprep.subr.mxu0 0.0
    %2826 = vmatpush1.msra.mxu0 0.0
    %2827 = vmatprep.subr.mxu0 0.0
    %2828 = vmatpush1.msra.mxu0 0.0
    %2829 = vmatprep.subr.mxu0 0.0
    %2830 = vmatpush1.msra.mxu0 0.0
    %2831 = vmatprep.subr.mxu0 0.0
    %2832 = vmatpush1.msra.mxu0 0.0
    %2833 = vmatprep.subr.mxu0 0.0
    %2834 = vmatpush1.msra.mxu0 0.0
    %2835 = vmatprep.subr.mxu0 0.0
    %2836 = vmatpush1.msra.mxu0 0.0
    %2837 = vmatprep.subr.mxu0 0.0
    %2838 = vmatpush1.msra.mxu0 0.0
    %2839 = vmatprep.subr.mxu0 0.0
    %2840 = vmatpush1.msra.mxu0 0.0
    %2841 = vmatprep.subr.mxu0 0.0
    %2842 = vmatpush1.msra.mxu0 0.0
    %2843 = vmatprep.subr.mxu0 0.0
    %2844 = vmatpush1.msra.mxu0 0.0
    %2845 = vmatprep.subr.mxu0 0.0
    %2846 = vmatpush1.msra.mxu0 0.0
    %2847 = vmatprep.subr.mxu0 0.0
    %2848 = vmatpush1.msra.mxu0 0.0
    %2849 = vmatprep.subr.mxu0 0.0
    %2850 = vmatpush1.msra.mxu0 0.0
    %2851 = vmatprep.subr.mxu0 0.0
    %2852 = vmatpush1.msra.mxu0 0.0
    %2853 = vmatprep.subr.mxu0 0.0
    %2854 = vmatpush1.msra.mxu0 0.0
    %2855 = vmatprep.subr.mxu0 0.0
    %2856 = vmatpush1.msra.mxu0 0.0
    %2857 = vmatprep.subr.mxu0 0.0
    %2858 = vmatpush1.msra.mxu0 0.0
    %2859 = vmatprep.subr.mxu0 0.0
    %2860 = vmatpush1.msra.mxu0 0.0
    %2861 = vmatprep.subr.mxu0 0.0
    %2862 = vmatpush1.msra.mxu0 0.0
    %2863 = vmatprep.subr.mxu0 0.0
    %2864 = vmatpush1.msra.mxu0 0.0
    %2865 = vmatprep.subr.mxu0 0.0
    %2866 = vmatpush1.msra.mxu0 0.0
    %2867 = vmatprep.subr.mxu0 0.0
    %2868 = vmatpush1.msra.mxu0 0.0
    %2869 = vmatprep.subr.mxu0 0.0
    %2870 = vmatpush1.msra.mxu0 0.0
    %2871 = vmatprep.mubr.f32.mxu0 0.0
    %2872 = vmatmul.mubr.f32.gmra.mrb[0].mxu0 %v2802
    %v2873 = vpop.f32.mrb[0].mxu0
    %v2874 = vadd.f32 %v2793, %v2873
    %v2875 = vpop.f32.mrb[0].mxu0
    %2876 = vmatprep.mubr.f32.mxu0 0.0
    %2877 = vmatmul.mubr.f32.gmra.mrb[0].mxu0 %v2805
    %v2878 = vpop.f32.mrb[0].mxu0
    %v2879 = vadd.f32 %v2798, %v2878
    %v2880 = vpop.f32.mrb[0].mxu0
    %2881 = vdwg.mxu0
    %s2882 = scalar_lea.vmem [#allocation15], 128
    %v2883 = vld [vmem:[%s2882] sm:$0xff]
    %v2884 = vld [vmem:[%s2882 + $0x8] sm:$0xff]
    %v2885 = vld [vmem:[%s2882 + $0x10] sm:$0xff]
    %v2886 = vld [vmem:[%s2882 + $0x18] sm:$0xff]
    %v2887 = vld [vmem:[%s2882 + $0x20] sm:$0xff]
    %v2888 = vld [vmem:[%s2882 + $0x28] sm:$0xff]
    %v2889 = vld [vmem:[%s2882 + $0x30] sm:$0xff]
    %v2890 = vld [vmem:[%s2882 + $0x38] sm:$0xff]
    %2891 = vmatprep.subr.mxu0 0.0
    %2892 = vmatpush1.msra.mxu0 %v2883
    %2893 = vmatprep.subr.mxu0 0.0
    %2894 = vmatpush1.msra.mxu0 %v2884
    %2895 = vmatprep.subr.mxu0 0.0
    %2896 = vmatpush1.msra.mxu0 %v2885
    %2897 = vmatprep.subr.mxu0 0.0
    %2898 = vmatpush1.msra.mxu0 %v2886
    %2899 = vmatprep.subr.mxu0 0.0
    %2900 = vmatpush1.msra.mxu0 %v2887
    %2901 = vmatprep.subr.mxu0 0.0
    %2902 = vmatpush1.msra.mxu0 %v2888
    %2903 = vmatprep.subr.mxu0 0.0
    %2904 = vmatpush1.msra.mxu0 %v2889
    %2905 = vmatprep.subr.mxu0 0.0
    %2906 = vmatpush1.msra.mxu0 %v2890
    %2907 = vmatprep.subr.mxu0 0.0
    %2908 = vmatpush1.msra.mxu0 0.0
    %2909 = vmatprep.subr.mxu0 0.0
    %2910 = vmatpush1.msra.mxu0 0.0
    %2911 = vmatprep.subr.mxu0 0.0
    %2912 = vmatpush1.msra.mxu0 0.0
    %2913 = vmatprep.subr.mxu0 0.0
    %2914 = vmatpush1.msra.mxu0 0.0
    %2915 = vmatprep.subr.mxu0 0.0
    %2916 = vmatpush1.msra.mxu0 0.0
    %2917 = vmatprep.subr.mxu0 0.0
    %2918 = vmatpush1.msra.mxu0 0.0
    %2919 = vmatprep.subr.mxu0 0.0
    %2920 = vmatpush1.msra.mxu0 0.0
    %2921 = vmatprep.subr.mxu0 0.0
    %2922 = vmatpush1.msra.mxu0 0.0
    %2923 = vmatprep.subr.mxu0 0.0
    %2924 = vmatpush1.msra.mxu0 0.0
    %2925 = vmatprep.subr.mxu0 0.0
    %2926 = vmatpush1.msra.mxu0 0.0
    %2927 = vmatprep.subr.mxu0 0.0
    %2928 = vmatpush1.msra.mxu0 0.0
    %2929 = vmatprep.subr.mxu0 0.0
    %2930 = vmatpush1.msra.mxu0 0.0
    %2931 = vmatprep.subr.mxu0 0.0
    %2932 = vmatpush1.msra.mxu0 0.0
    %2933 = vmatprep.subr.mxu0 0.0
    %2934 = vmatpush1.msra.mxu0 0.0
    %2935 = vmatprep.subr.mxu0 0.0
    %2936 = vmatpush1.msra.mxu0 0.0
    %2937 = vmatprep.subr.mxu0 0.0
    %2938 = vmatpush1.msra.mxu0 0.0
    %2939 = vmatprep.subr.mxu0 0.0
    %2940 = vmatpush1.msra.mxu0 0.0
    %2941 = vmatprep.subr.mxu0 0.0
    %2942 = vmatpush1.msra.mxu0 0.0
    %2943 = vmatprep.subr.mxu0 0.0
    %2944 = vmatpush1.msra.mxu0 0.0
    %2945 = vmatprep.subr.mxu0 0.0
    %2946 = vmatpush1.msra.mxu0 0.0
    %2947 = vmatprep.subr.mxu0 0.0
    %2948 = vmatpush1.msra.mxu0 0.0
    %2949 = vmatprep.subr.mxu0 0.0
    %2950 = vmatpush1.msra.mxu0 0.0
    %2951 = vmatprep.subr.mxu0 0.0
    %2952 = vmatpush1.msra.mxu0 0.0
    %2953 = vmatprep.subr.mxu0 0.0
    %2954 = vmatpush1.msra.mxu0 0.0
    %2955 = vmatprep.mubr.f32.mxu0 0.0
    %2956 = vmatmul.mubr.f32.gmra.mrb[0].mxu0 %v1875
    %v2957 = vpop.f32.mrb[0].mxu0
    %v2958 = vadd.f32 0.0, %v2957
    %v2959 = vpop.f32.mrb[0].mxu0
    %2960 = vdwg.mxu0
    %v2961 = vadd.f32 %v2874, %v2958
    %v2962 = vtanh.pop %v2961
    %2963 = vst.msk [vmem:[#allocation2] sm:$0x3] %vm1949, %v2962
    %v2965 = vsel %vm670, %v2962, 0
    %2967 = vmatprep.subr.mxu0 0.0
    %2968 = vmatpush1.msra.mxu0 %v2883
    %2969 = vmatprep.subr.mxu0 0.0
    %2970 = vmatpush1.msra.mxu0 %v2884
    %2971 = vmatprep.subr.mxu0 0.0
    %2972 = vmatpush1.msra.mxu0 %v2885
    %2973 = vmatprep.subr.mxu0 0.0
    %2974 = vmatpush1.msra.mxu0 %v2886
    %2975 = vmatprep.subr.mxu0 0.0
    %2976 = vmatpush1.msra.mxu0 %v2887
    %2977 = vmatprep.subr.mxu0 0.0
    %2978 = vmatpush1.msra.mxu0 %v2888
    %2979 = vmatprep.subr.mxu0 0.0
    %2980 = vmatpush1.msra.mxu0 %v2889
    %2981 = vmatprep.subr.mxu0 0.0
    %2982 = vmatpush1.msra.mxu0 %v2890
    %2983 = vmatprep.subr.mxu0 0.0
    %2984 = vmatpush1.msra.mxu0 0.0
    %2985 = vmatprep.subr.mxu0 0.0
    %2986 = vmatpush1.msra.mxu0 0.0
    %2987 = vmatprep.subr.mxu0 0.0
    %2988 = vmatpush1.msra.mxu0 0.0
    %2989 = vmatprep.subr.mxu0 0.0
    %2990 = vmatpush1.msra.mxu0 0.0
    %2991 = vmatprep.subr.mxu0 0.0
    %2992 = vmatpush1.msra.mxu0 0.0
    %2993 = vmatprep.subr.mxu0 0.0
    %2994 = vmatpush1.msra.mxu0 0.0
    %2995 = vmatprep.subr.mxu0 0.0
    %2996 = vmatpush1.msra.mxu0 0.0
    %2997 = vmatprep.subr.mxu0 0.0
    %2998 = vmatpush1.msra.mxu0 0.0
    %2999 = vmatprep.subr.mxu0 0.0
    %3000 = vmatpush1.msra.mxu0 0.0
    %3001 = vmatprep.subr.mxu0 0.0
    %3002 = vmatpush1.msra.mxu0 0.0
    %3003 = vmatprep.subr.mxu0 0.0
    %3004 = vmatpush1.msra.mxu0 0.0
    %3005 = vmatprep.subr.mxu0 0.0
    %3006 = vmatpush1.msra.mxu0 0.0
    %3007 = vmatprep.subr.mxu0 0.0
    %3008 = vmatpush1.msra.mxu0 0.0
    %3009 = vmatprep.subr.mxu0 0.0
    %3010 = vmatpush1.msra.mxu0 0.0
    %3011 = vmatprep.subr.mxu0 0.0
    %3012 = vmatpush1.msra.mxu0 0.0
    %3013 = vmatprep.subr.mxu0 0.0
    %3014 = vmatpush1.msra.mxu0 0.0
    %3015 = vmatprep.subr.mxu0 0.0
    %3016 = vmatpush1.msra.mxu0 0.0
    %3017 = vmatprep.subr.mxu0 0.0
    %3018 = vmatpush1.msra.mxu0 0.0
    %3019 = vmatprep.subr.mxu0 0.0
    %3020 = vmatpush1.msra.mxu0 0.0
    %3021 = vmatprep.subr.mxu0 0.0
    %3022 = vmatpush1.msra.mxu0 0.0
    %3023 = vmatprep.subr.mxu0 0.0
    %3024 = vmatpush1.msra.mxu0 0.0
    %3025 = vmatprep.subr.mxu0 0.0
    %3026 = vmatpush1.msra.mxu0 0.0
    %3027 = vmatprep.subr.mxu0 0.0
    %3028 = vmatpush1.msra.mxu0 0.0
    %3029 = vmatprep.subr.mxu0 0.0
    %3030 = vmatpush1.msra.mxu0 0.0
    %3031 = vmatprep.mubr.f32.mxu0 0.0
    %3032 = vmatmul.mubr.f32.gmra.mrb[0].mxu0 %v2965
    %v3033 = vpop.f32.mrb[0].mxu0
    %v3034 = vadd.f32 0.0, %v3033
    %v3035 = vpop.f32.mrb[0].mxu0
    %3036 = vdwg.mxu0
    %v3038 = vrot.slane %v3034, 6
    %v3040 = vadd.f32 %v2874, %v3038
    %v3041 = vtanh.pop %v3040
    %3042 = vst.msk [vmem:[#allocation2] sm:$0xc] %vm2029, %v3041
    %v3044 = vrot.slane %v3041, 2
    %v3045 = vsel %vm670, %v3044, 0
    %3047 = vmatprep.subr.mxu0 0.0
    %3048 = vmatpush1.msra.mxu0 %v2883
    %3049 = vmatprep.subr.mxu0 0.0
    %3050 = vmatpush1.msra.mxu0 %v2884
    %3051 = vmatprep.subr.mxu0 0.0
    %3052 = vmatpush1.msra.mxu0 %v2885
    %3053 = vmatprep.subr.mxu0 0.0
    %3054 = vmatpush1.msra.mxu0 %v2886
    %3055 = vmatprep.subr.mxu0 0.0
    %3056 = vmatpush1.msra.mxu0 %v2887
    %3057 = vmatprep.subr.mxu0 0.0
    %3058 = vmatpush1.msra.mxu0 %v2888
    %3059 = vmatprep.subr.mxu0 0.0
    %3060 = vmatpush1.msra.mxu0 %v2889
    %3061 = vmatprep.subr.mxu0 0.0
    %3062 = vmatpush1.msra.mxu0 %v2890
    %3063 = vmatprep.subr.mxu0 0.0
    %3064 = vmatpush1.msra.mxu0 0.0
    %3065 = vmatprep.subr.mxu0 0.0
    %3066 = vmatpush1.msra.mxu0 0.0
    %3067 = vmatprep.subr.mxu0 0.0
    %3068 = vmatpush1.msra.mxu0 0.0
    %3069 = vmatprep.subr.mxu0 0.0
    %3070 = vmatpush1.msra.mxu0 0.0
    %3071 = vmatprep.subr.mxu0 0.0
    %3072 = vmatpush1.msra.mxu0 0.0
    %3073 = vmatprep.subr.mxu0 0.0
    %3074 = vmatpush1.msra.mxu0 0.0
    %3075 = vmatprep.subr.mxu0 0.0
    %3076 = vmatpush1.msra.mxu0 0.0
    %3077 = vmatprep.subr.mxu0 0.0
    %3078 = vmatpush1.msra.mxu0 0.0
    %3079 = vmatprep.subr.mxu0 0.0
    %3080 = vmatpush1.msra.mxu0 0.0
    %3081 = vmatprep.subr.mxu0 0.0
    %3082 = vmatpush1.msra.mxu0 0.0
    %3083 = vmatprep.subr.mxu0 0.0
    %3084 = vmatpush1.msra.mxu0 0.0
    %3085 = vmatprep.subr.mxu0 0.0
    %3086 = vmatpush1.msra.mxu0 0.0
    %3087 = vmatprep.subr.mxu0 0.0
    %3088 = vmatpush1.msra.mxu0 0.0
    %3089 = vmatprep.subr.mxu0 0.0
    %3090 = vmatpush1.msra.mxu0 0.0
    %3091 = vmatprep.subr.mxu0 0.0
    %3092 = vmatpush1.msra.mxu0 0.0
    %3093 = vmatprep.subr.mxu0 0.0
    %3094 = vmatpush1.msra.mxu0 0.0
    %3095 = vmatprep.subr.mxu0 0.0
    %3096 = vmatpush1.msra.mxu0 0.0
    %3097 = vmatprep.subr.mxu0 0.0
    %3098 = vmatpush1.msra.mxu0 0.0
    %3099 = vmatprep.subr.mxu0 0.0
    %3100 = vmatpush1.msra.mxu0 0.0
    %3101 = vmatprep.subr.mxu0 0.0
    %3102 = vmatpush1.msra.mxu0 0.0
    %3103 = vmatprep.subr.mxu0 0.0
    %3104 = vmatpush1.msra.mxu0 0.0
    %3105 = vmatprep.subr.mxu0 0.0
    %3106 = vmatpush1.msra.mxu0 0.0
    %3107 = vmatprep.subr.mxu0 0.0
    %3108 = vmatpush1.msra.mxu0 0.0
    %3109 = vmatprep.subr.mxu0 0.0
    %3110 = vmatpush1.msra.mxu0 0.0
    %3111 = vmatprep.mubr.f32.mxu0 0.0
    %3112 = vmatmul.mubr.f32.gmra.mrb[0].mxu0 %v3045
    %v3113 = vpop.f32.mrb[0].mxu0
    %v3114 = vadd.f32 0.0, %v3113
    %v3115 = vpop.f32.mrb[0].mxu0
    %3116 = vdwg.mxu0
    %v3118 = vrot.slane %v3114, 4
    %v3120 = vadd.f32 %v2874, %v3118
    %v3121 = vtanh.pop %v3120
    %3122 = vst.msk [vmem:[#allocation2] sm:$0x30] %vm2110, %v3121
    %v3124 = vrot.slane %v3121, 4
    %v3125 = vsel %vm670, %v3124, 0
    %3127 = vmatprep.subr.mxu0 0.0
    %3128 = vmatpush1.msra.mxu0 %v2883
    %3129 = vmatprep.subr.mxu0 0.0
    %3130 = vmatpush1.msra.mxu0 %v2884
    %3131 = vmatprep.subr.mxu0 0.0
    %3132 = vmatpush1.msra.mxu0 %v2885
    %3133 = vmatprep.subr.mxu0 0.0
    %3134 = vmatpush1.msra.mxu0 %v2886
    %3135 = vmatprep.subr.mxu0 0.0
    %3136 = vmatpush1.msra.mxu0 %v2887
    %3137 = vmatprep.subr.mxu0 0.0
    %3138 = vmatpush1.msra.mxu0 %v2888
    %3139 = vmatprep.subr.mxu0 0.0
    %3140 = vmatpush1.msra.mxu0 %v2889
    %3141 = vmatprep.subr.mxu0 0.0
    %3142 = vmatpush1.msra.mxu0 %v2890
    %3143 = vmatprep.subr.mxu0 0.0
    %3144 = vmatpush1.msra.mxu0 0.0
    %3145 = vmatprep.subr.mxu0 0.0
    %3146 = vmatpush1.msra.mxu0 0.0
    %3147 = vmatprep.subr.mxu0 0.0
    %3148 = vmatpush1.msra.mxu0 0.0
    %3149 = vmatprep.subr.mxu0 0.0
    %3150 = vmatpush1.msra.mxu0 0.0
    %3151 = vmatprep.subr.mxu0 0.0
    %3152 = vmatpush1.msra.mxu0 0.0
    %3153 = vmatprep.subr.mxu0 0.0
    %3154 = vmatpush1.msra.mxu0 0.0
    %3155 = vmatprep.subr.mxu0 0.0
    %3156 = vmatpush1.msra.mxu0 0.0
    %3157 = vmatprep.subr.mxu0 0.0
    %3158 = vmatpush1.msra.mxu0 0.0
    %3159 = vmatprep.subr.mxu0 0.0
    %3160 = vmatpush1.msra.mxu0 0.0
    %3161 = vmatprep.subr.mxu0 0.0
    %3162 = vmatpush1.msra.mxu0 0.0
    %3163 = vmatprep.subr.mxu0 0.0
    %3164 = vmatpush1.msra.mxu0 0.0
    %3165 = vmatprep.subr.mxu0 0.0
    %3166 = vmatpush1.msra.mxu0 0.0
    %3167 = vmatprep.subr.mxu0 0.0
    %3168 = vmatpush1.msra.mxu0 0.0
    %3169 = vmatprep.subr.mxu0 0.0
    %3170 = vmatpush1.msra.mxu0 0.0
    %3171 = vmatprep.subr.mxu0 0.0
    %3172 = vmatpush1.msra.mxu0 0.0
    %3173 = vmatprep.subr.mxu0 0.0
    %3174 = vmatpush1.msra.mxu0 0.0
    %3175 = vmatprep.subr.mxu0 0.0
    %3176 = vmatpush1.msra.mxu0 0.0
    %3177 = vmatprep.subr.mxu0 0.0
    %3178 = vmatpush1.msra.mxu0 0.0
    %3179 = vmatprep.subr.mxu0 0.0
    %3180 = vmatpush1.msra.mxu0 0.0
    %3181 = vmatprep.subr.mxu0 0.0
    %3182 = vmatpush1.msra.mxu0 0.0
    %3183 = vmatprep.subr.mxu0 0.0
    %3184 = vmatpush1.msra.mxu0 0.0
    %3185 = vmatprep.subr.mxu0 0.0
    %3186 = vmatpush1.msra.mxu0 0.0
    %3187 = vmatprep.subr.mxu0 0.0
    %3188 = vmatpush1.msra.mxu0 0.0
    %3189 = vmatprep.subr.mxu0 0.0
    %3190 = vmatpush1.msra.mxu0 0.0
    %3191 = vmatprep.mubr.f32.mxu0 0.0
    %3192 = vmatmul.mubr.f32.gmra.mrb[0].mxu0 %v3125
    %v3193 = vpop.f32.mrb[0].mxu0
    %v3194 = vadd.f32 0.0, %v3193
    %v3195 = vpop.f32.mrb[0].mxu0
    %3196 = vdwg.mxu0
    %v3198 = vrot.slane %v3194, 2
    %v3200 = vadd.f32 %v2874, %v3198
    %v3201 = vtanh.pop %v3200
    %3202 = vst.msk [vmem:[#allocation2] sm:$0xc0] %vm2191, %v3201
    %v3204 = vrot.slane %v3201, 6
    %v3205 = vsel %vm670, %v3204, 0
    %3207 = vmatprep.subr.mxu0 0.0
    %3208 = vmatpush1.msra.mxu0 %v2883
    %3209 = vmatprep.subr.mxu0 0.0
    %3210 = vmatpush1.msra.mxu0 %v2884
    %3211 = vmatprep.subr.mxu0 0.0
    %3212 = vmatpush1.msra.mxu0 %v2885
    %3213 = vmatprep.subr.mxu0 0.0
    %3214 = vmatpush1.msra.mxu0 %v2886
    %3215 = vmatprep.subr.mxu0 0.0
    %3216 = vmatpush1.msra.mxu0 %v2887
    %3217 = vmatprep.subr.mxu0 0.0
    %3218 = vmatpush1.msra.mxu0 %v2888
    %3219 = vmatprep.subr.mxu0 0.0
    %3220 = vmatpush1.msra.mxu0 %v2889
    %3221 = vmatprep.subr.mxu0 0.0
    %3222 = vmatpush1.msra.mxu0 %v2890
    %3223 = vmatprep.subr.mxu0 0.0
    %3224 = vmatpush1.msra.mxu0 0.0
    %3225 = vmatprep.subr.mxu0 0.0
    %3226 = vmatpush1.msra.mxu0 0.0
    %3227 = vmatprep.subr.mxu0 0.0
    %3228 = vmatpush1.msra.mxu0 0.0
    %3229 = vmatprep.subr.mxu0 0.0
    %3230 = vmatpush1.msra.mxu0 0.0
    %3231 = vmatprep.subr.mxu0 0.0
    %3232 = vmatpush1.msra.mxu0 0.0
    %3233 = vmatprep.subr.mxu0 0.0
    %3234 = vmatpush1.msra.mxu0 0.0
    %3235 = vmatprep.subr.mxu0 0.0
    %3236 = vmatpush1.msra.mxu0 0.0
    %3237 = vmatprep.subr.mxu0 0.0
    %3238 = vmatpush1.msra.mxu0 0.0
    %3239 = vmatprep.subr.mxu0 0.0
    %3240 = vmatpush1.msra.mxu0 0.0
    %3241 = vmatprep.subr.mxu0 0.0
    %3242 = vmatpush1.msra.mxu0 0.0
    %3243 = vmatprep.subr.mxu0 0.0
    %3244 = vmatpush1.msra.mxu0 0.0
    %3245 = vmatprep.subr.mxu0 0.0
    %3246 = vmatpush1.msra.mxu0 0.0
    %3247 = vmatprep.subr.mxu0 0.0
    %3248 = vmatpush1.msra.mxu0 0.0
    %3249 = vmatprep.subr.mxu0 0.0
    %3250 = vmatpush1.msra.mxu0 0.0
    %3251 = vmatprep.subr.mxu0 0.0
    %3252 = vmatpush1.msra.mxu0 0.0
    %3253 = vmatprep.subr.mxu0 0.0
    %3254 = vmatpush1.msra.mxu0 0.0
    %3255 = vmatprep.subr.mxu0 0.0
    %3256 = vmatpush1.msra.mxu0 0.0
    %3257 = vmatprep.subr.mxu0 0.0
    %3258 = vmatpush1.msra.mxu0 0.0
    %3259 = vmatprep.subr.mxu0 0.0
    %3260 = vmatpush1.msra.mxu0 0.0
    %3261 = vmatprep.subr.mxu0 0.0
    %3262 = vmatpush1.msra.mxu0 0.0
    %3263 = vmatprep.subr.mxu0 0.0
    %3264 = vmatpush1.msra.mxu0 0.0
    %3265 = vmatprep.subr.mxu0 0.0
    %3266 = vmatpush1.msra.mxu0 0.0
    %3267 = vmatprep.subr.mxu0 0.0
    %3268 = vmatpush1.msra.mxu0 0.0
    %3269 = vmatprep.subr.mxu0 0.0
    %3270 = vmatpush1.msra.mxu0 0.0
    %3271 = vmatprep.mubr.f32.mxu0 0.0
    %3272 = vmatmul.mubr.f32.gmra.mrb[0].mxu0 %v3205
    %v3273 = vpop.f32.mrb[0].mxu0
    %v3274 = vadd.f32 0.0, %v3273
    %v3275 = vpop.f32.mrb[0].mxu0
    %3276 = vdwg.mxu0
    %v3277 = vadd.f32 %v2879, %v3274
    %v3278 = vtanh.pop %v3277
    %3279 = vst.msk [vmem:[#allocation2 + $0x8] sm:$0x3] %vm1949, %v3278
    %v3281 = vsel %vm670, %v3278, 0
    %3283 = vmatprep.subr.mxu0 0.0
    %3284 = vmatpush1.msra.mxu0 %v2883
    %3285 = vmatprep.subr.mxu0 0.0
    %3286 = vmatpush1.msra.mxu0 %v2884
    %3287 = vmatprep.subr.mxu0 0.0
    %3288 = vmatpush1.msra.mxu0 %v2885
    %3289 = vmatprep.subr.mxu0 0.0
    %3290 = vmatpush1.msra.mxu0 %v2886
    %3291 = vmatprep.subr.mxu0 0.0
    %3292 = vmatpush1.msra.mxu0 %v2887
    %3293 = vmatprep.subr.mxu0 0.0
    %3294 = vmatpush1.msra.mxu0 %v2888
    %3295 = vmatprep.subr.mxu0 0.0
    %3296 = vmatpush1.msra.mxu0 %v2889
    %3297 = vmatprep.subr.mxu0 0.0
    %3298 = vmatpush1.msra.mxu0 %v2890
    %3299 = vmatprep.subr.mxu0 0.0
    %3300 = vmatpush1.msra.mxu0 0.0
    %3301 = vmatprep.subr.mxu0 0.0
    %3302 = vmatpush1.msra.mxu0 0.0
    %3303 = vmatprep.subr.mxu0 0.0
    %3304 = vmatpush1.msra.mxu0 0.0
    %3305 = vmatprep.subr.mxu0 0.0
    %3306 = vmatpush1.msra.mxu0 0.0
    %3307 = vmatprep.subr.mxu0 0.0
    %3308 = vmatpush1.msra.mxu0 0.0
    %3309 = vmatprep.subr.mxu0 0.0
    %3310 = vmatpush1.msra.mxu0 0.0
    %3311 = vmatprep.subr.mxu0 0.0
    %3312 = vmatpush1.msra.mxu0 0.0
    %3313 = vmatprep.subr.mxu0 0.0
    %3314 = vmatpush1.msra.mxu0 0.0
    %3315 = vmatprep.subr.mxu0 0.0
    %3316 = vmatpush1.msra.mxu0 0.0
    %3317 = vmatprep.subr.mxu0 0.0
    %3318 = vmatpush1.msra.mxu0 0.0
    %3319 = vmatprep.subr.mxu0 0.0
    %3320 = vmatpush1.msra.mxu0 0.0
    %3321 = vmatprep.subr.mxu0 0.0
    %3322 = vmatpush1.msra.mxu0 0.0
    %3323 = vmatprep.subr.mxu0 0.0
    %3324 = vmatpush1.msra.mxu0 0.0
    %3325 = vmatprep.subr.mxu0 0.0
    %3326 = vmatpush1.msra.mxu0 0.0
    %3327 = vmatprep.subr.mxu0 0.0
    %3328 = vmatpush1.msra.mxu0 0.0
    %3329 = vmatprep.subr.mxu0 0.0
    %3330 = vmatpush1.msra.mxu0 0.0
    %3331 = vmatprep.subr.mxu0 0.0
    %3332 = vmatpush1.msra.mxu0 0.0
    %3333 = vmatprep.subr.mxu0 0.0
    %3334 = vmatpush1.msra.mxu0 0.0
    %3335 = vmatprep.subr.mxu0 0.0
    %3336 = vmatpush1.msra.mxu0 0.0
    %3337 = vmatprep.subr.mxu0 0.0
    %3338 = vmatpush1.msra.mxu0 0.0
    %3339 = vmatprep.subr.mxu0 0.0
    %3340 = vmatpush1.msra.mxu0 0.0
    %3341 = vmatprep.subr.mxu0 0.0
    %3342 = vmatpush1.msra.mxu0 0.0
    %3343 = vmatprep.subr.mxu0 0.0
    %3344 = vmatpush1.msra.mxu0 0.0
    %3345 = vmatprep.subr.mxu0 0.0
    %3346 = vmatpush1.msra.mxu0 0.0
    %3347 = vmatprep.mubr.f32.mxu0 0.0
    %3348 = vmatmul.mubr.f32.gmra.mrb[0].mxu0 %v3281
    %v3349 = vpop.f32.mrb[0].mxu0
    %v3350 = vadd.f32 0.0, %v3349
    %v3351 = vpop.f32.mrb[0].mxu0
    %3352 = vdwg.mxu0
    %v3354 = vrot.slane %v3350, 6
    %v3356 = vadd.f32 %v2879, %v3354
    %v3357 = vtanh.pop %v3356
    %3358 = vst.msk [vmem:[#allocation2 + $0x8] sm:$0xc] %vm2029, %v3357
    %v3360 = vrot.slane %v3357, 2
    %v3361 = vsel %vm670, %v3360, 0
    %3363 = vmatprep.subr.mxu0 0.0
    %3364 = vmatpush1.msra.mxu0 %v2883
    %3365 = vmatprep.subr.mxu0 0.0
    %3366 = vmatpush1.msra.mxu0 %v2884
    %3367 = vmatprep.subr.mxu0 0.0
    %3368 = vmatpush1.msra.mxu0 %v2885
    %3369 = vmatprep.subr.mxu0 0.0
    %3370 = vmatpush1.msra.mxu0 %v2886
    %3371 = vmatprep.subr.mxu0 0.0
    %3372 = vmatpush1.msra.mxu0 %v2887
    %3373 = vmatprep.subr.mxu0 0.0
    %3374 = vmatpush1.msra.mxu0 %v2888
    %3375 = vmatprep.subr.mxu0 0.0
    %3376 = vmatpush1.msra.mxu0 %v2889
    %3377 = vmatprep.subr.mxu0 0.0
    %3378 = vmatpush1.msra.mxu0 %v2890
    %3379 = vmatprep.subr.mxu0 0.0
    %3380 = vmatpush1.msra.mxu0 0.0
    %3381 = vmatprep.subr.mxu0 0.0
    %3382 = vmatpush1.msra.mxu0 0.0
    %3383 = vmatprep.subr.mxu0 0.0
    %3384 = vmatpush1.msra.mxu0 0.0
    %3385 = vmatprep.subr.mxu0 0.0
    %3386 = vmatpush1.msra.mxu0 0.0
    %3387 = vmatprep.subr.mxu0 0.0
    %3388 = vmatpush1.msra.mxu0 0.0
    %3389 = vmatprep.subr.mxu0 0.0
    %3390 = vmatpush1.msra.mxu0 0.0
    %3391 = vmatprep.subr.mxu0 0.0
    %3392 = vmatpush1.msra.mxu0 0.0
    %3393 = vmatprep.subr.mxu0 0.0
    %3394 = vmatpush1.msra.mxu0 0.0
    %3395 = vmatprep.subr.mxu0 0.0
    %3396 = vmatpush1.msra.mxu0 0.0
    %3397 = vmatprep.subr.mxu0 0.0
    %3398 = vmatpush1.msra.mxu0 0.0
    %3399 = vmatprep.subr.mxu0 0.0
    %3400 = vmatpush1.msra.mxu0 0.0
    %3401 = vmatprep.subr.mxu0 0.0
    %3402 = vmatpush1.msra.mxu0 0.0
    %3403 = vmatprep.subr.mxu0 0.0
    %3404 = vmatpush1.msra.mxu0 0.0
    %3405 = vmatprep.subr.mxu0 0.0
    %3406 = vmatpush1.msra.mxu0 0.0
    %3407 = vmatprep.subr.mxu0 0.0
    %3408 = vmatpush1.msra.mxu0 0.0
    %3409 = vmatprep.subr.mxu0 0.0
    %3410 = vmatpush1.msra.mxu0 0.0
    %3411 = vmatprep.subr.mxu0 0.0
    %3412 = vmatpush1.msra.mxu0 0.0
    %3413 = vmatprep.subr.mxu0 0.0
    %3414 = vmatpush1.msra.mxu0 0.0
    %3415 = vmatprep.subr.mxu0 0.0
    %3416 = vmatpush1.msra.mxu0 0.0
    %3417 = vmatprep.subr.mxu0 0.0
    %3418 = vmatpush1.msra.mxu0 0.0
    %3419 = vmatprep.subr.mxu0 0.0
    %3420 = vmatpush1.msra.mxu0 0.0
    %3421 = vmatprep.subr.mxu0 0.0
    %3422 = vmatpush1.msra.mxu0 0.0
    %3423 = vmatprep.subr.mxu0 0.0
    %3424 = vmatpush1.msra.mxu0 0.0
    %3425 = vmatprep.subr.mxu0 0.0
    %3426 = vmatpush1.msra.mxu0 0.0
    %3427 = vmatprep.mubr.f32.mxu0 0.0
    %3428 = vmatmul.mubr.f32.gmra.mrb[0].mxu0 %v3361
    %v3429 = vpop.f32.mrb[0].mxu0
    %v3430 = vadd.f32 0.0, %v3429
    %v3431 = vpop.f32.mrb[0].mxu0
    %3432 = vdwg.mxu0
    %v3434 = vrot.slane %v3430, 4
    %v3436 = vadd.f32 %v2879, %v3434
    %v3437 = vtanh.pop %v3436
    %3438 = vst.msk [vmem:[#allocation2 + $0x8] sm:$0x30] %vm2110, %v3437
    %v3440 = vrot.slane %v3437, 4
    %v3441 = vsel %vm670, %v3440, 0
    %3443 = vmatprep.subr.mxu0 0.0
    %3444 = vmatpush1.msra.mxu0 %v2883
    %3445 = vmatprep.subr.mxu0 0.0
    %3446 = vmatpush1.msra.mxu0 %v2884
    %3447 = vmatprep.subr.mxu0 0.0
    %3448 = vmatpush1.msra.mxu0 %v2885
    %3449 = vmatprep.subr.mxu0 0.0
    %3450 = vmatpush1.msra.mxu0 %v2886
    %3451 = vmatprep.subr.mxu0 0.0
    %3452 = vmatpush1.msra.mxu0 %v2887
    %3453 = vmatprep.subr.mxu0 0.0
    %3454 = vmatpush1.msra.mxu0 %v2888
    %3455 = vmatprep.subr.mxu0 0.0
    %3456 = vmatpush1.msra.mxu0 %v2889
    %3457 = vmatprep.subr.mxu0 0.0
    %3458 = vmatpush1.msra.mxu0 %v2890
    %3459 = vmatprep.subr.mxu0 0.0
    %3460 = vmatpush1.msra.mxu0 0.0
    %3461 = vmatprep.subr.mxu0 0.0
    %3462 = vmatpush1.msra.mxu0 0.0
    %3463 = vmatprep.subr.mxu0 0.0
    %3464 = vmatpush1.msra.mxu0 0.0
    %3465 = vmatprep.subr.mxu0 0.0
    %3466 = vmatpush1.msra.mxu0 0.0
    %3467 = vmatprep.subr.mxu0 0.0
    %3468 = vmatpush1.msra.mxu0 0.0
    %3469 = vmatprep.subr.mxu0 0.0
    %3470 = vmatpush1.msra.mxu0 0.0
    %3471 = vmatprep.subr.mxu0 0.0
    %3472 = vmatpush1.msra.mxu0 0.0
    %3473 = vmatprep.subr.mxu0 0.0
    %3474 = vmatpush1.msra.mxu0 0.0
    %3475 = vmatprep.subr.mxu0 0.0
    %3476 = vmatpush1.msra.mxu0 0.0
    %3477 = vmatprep.subr.mxu0 0.0
    %3478 = vmatpush1.msra.mxu0 0.0
    %3479 = vmatprep.subr.mxu0 0.0
    %3480 = vmatpush1.msra.mxu0 0.0
    %3481 = vmatprep.subr.mxu0 0.0
    %3482 = vmatpush1.msra.mxu0 0.0
    %3483 = vmatprep.subr.mxu0 0.0
    %3484 = vmatpush1.msra.mxu0 0.0
    %3485 = vmatprep.subr.mxu0 0.0
    %3486 = vmatpush1.msra.mxu0 0.0
    %3487 = vmatprep.subr.mxu0 0.0
    %3488 = vmatpush1.msra.mxu0 0.0
    %3489 = vmatprep.subr.mxu0 0.0
    %3490 = vmatpush1.msra.mxu0 0.0
    %3491 = vmatprep.subr.mxu0 0.0
    %3492 = vmatpush1.msra.mxu0 0.0
    %3493 = vmatprep.subr.mxu0 0.0
    %3494 = vmatpush1.msra.mxu0 0.0
    %3495 = vmatprep.subr.mxu0 0.0
    %3496 = vmatpush1.msra.mxu0 0.0
    %3497 = vmatprep.subr.mxu0 0.0
    %3498 = vmatpush1.msra.mxu0 0.0
    %3499 = vmatprep.subr.mxu0 0.0
    %3500 = vmatpush1.msra.mxu0 0.0
    %3501 = vmatprep.subr.mxu0 0.0
    %3502 = vmatpush1.msra.mxu0 0.0
    %3503 = vmatprep.subr.mxu0 0.0
    %3504 = vmatpush1.msra.mxu0 0.0
    %3505 = vmatprep.subr.mxu0 0.0
    %3506 = vmatpush1.msra.mxu0 0.0
    %3507 = vmatprep.mubr.f32.mxu0 0.0
    %3508 = vmatmul.mubr.f32.gmra.mrb[0].mxu0 %v3441
    %v3509 = vpop.f32.mrb[0].mxu0
    %v3510 = vadd.f32 0.0, %v3509
    %v3511 = vpop.f32.mrb[0].mxu0
    %3512 = vdwg.mxu0
    %v3514 = vrot.slane %v3510, 2
    %v3516 = vadd.f32 %v2879, %v3514
    %v3517 = vtanh.pop %v3516
    %3518 = vst.msk [vmem:[#allocation2 + $0x8] sm:$0xc0] %vm2191, %v3517
    %v3519 = vld [vmem:[#allocation2] sm:$0xff]
    %v3520 = vld [vmem:[#allocation2 + $0x8] sm:$0xff]
    %3521 = vmatprep.subr.mxu0 0.0
    %3522 = vmatpush1.msra.mxu0 %v3519
    %3523 = vmatprep.subr.mxu0 0.0
    %3524 = vmatpush1.msra.mxu0 %v3520
    %3525 = vmatprep.subr.mxu0 0.0
    %3526 = vmatpush1.msra.mxu0 0.0
    %3527 = vmatprep.subr.mxu0 0.0
    %3528 = vmatpush1.msra.mxu0 0.0
    %3529 = vmatprep.subr.mxu0 0.0
    %3530 = vmatpush1.msra.mxu0 0.0
    %3531 = vmatprep.subr.mxu0 0.0
    %3532 = vmatpush1.msra.mxu0 0.0
    %3533 = vmatprep.subr.mxu0 0.0
    %3534 = vmatpush1.msra.mxu0 0.0
    %3535 = vmatprep.subr.mxu0 0.0
    %3536 = vmatpush1.msra.mxu0 0.0
    %3537 = vmatprep.subr.mxu0 0.0
    %3538 = vmatpush1.msra.mxu0 0.0
    %3539 = vmatprep.subr.mxu0 0.0
    %3540 = vmatpush1.msra.mxu0 0.0
    %3541 = vmatprep.subr.mxu0 0.0
    %3542 = vmatpush1.msra.mxu0 0.0
    %3543 = vmatprep.subr.mxu0 0.0
    %3544 = vmatpush1.msra.mxu0 0.0
    %3545 = vmatprep.subr.mxu0 0.0
    %3546 = vmatpush1.msra.mxu0 0.0
    %3547 = vmatprep.subr.mxu0 0.0
    %3548 = vmatpush1.msra.mxu0 0.0
    %3549 = vmatprep.subr.mxu0 0.0
    %3550 = vmatpush1.msra.mxu0 0.0
    %3551 = vmatprep.subr.mxu0 0.0
    %3552 = vmatpush1.msra.mxu0 0.0
    %3553 = vmatprep.subr.mxu0 0.0
    %3554 = vmatpush1.msra.mxu0 0.0
    %3555 = vmatprep.subr.mxu0 0.0
    %3556 = vmatpush1.msra.mxu0 0.0
    %3557 = vmatprep.subr.mxu0 0.0
    %3558 = vmatpush1.msra.mxu0 0.0
    %3559 = vmatprep.subr.mxu0 0.0
    %3560 = vmatpush1.msra.mxu0 0.0
    %3561 = vmatprep.subr.mxu0 0.0
    %3562 = vmatpush1.msra.mxu0 0.0
    %3563 = vmatprep.subr.mxu0 0.0
    %3564 = vmatpush1.msra.mxu0 0.0
    %3565 = vmatprep.subr.mxu0 0.0
    %3566 = vmatpush1.msra.mxu0 0.0
    %3567 = vmatprep.subr.mxu0 0.0
    %3568 = vmatpush1.msra.mxu0 0.0
    %3569 = vmatprep.subr.mxu0 0.0
    %3570 = vmatpush1.msra.mxu0 0.0
    %3571 = vmatprep.subr.mxu0 0.0
    %3572 = vmatpush1.msra.mxu0 0.0
    %3573 = vmatprep.subr.mxu0 0.0
    %3574 = vmatpush1.msra.mxu0 0.0
    %3575 = vmatprep.subr.mxu0 0.0
    %3576 = vmatpush1.msra.mxu0 0.0
    %3577 = vmatprep.subr.mxu0 0.0
    %3578 = vmatpush1.msra.mxu0 0.0
    %3579 = vmatprep.subr.mxu0 0.0
    %3580 = vmatpush1.msra.mxu0 0.0
    %3581 = vmatprep.subr.mxu0 0.0
    %3582 = vmatpush1.msra.mxu0 0.0
    %3583 = vmatprep.subr.mxu0 0.0
    %3584 = vmatpush1.msra.mxu0 0.0
    %3585 = vmatprep.mubr.f32.mxu0 0.0
    %3586 = vmatmul.mubr.f32.gmra.mrb[0].mxu0 %v1614
    %v3587 = vpop.f32.mrb[0].mxu0
    %v3588 = vadd.f32 0.0, %v3587
    %v3589 = vpop.f32.mrb[0].mxu0
    %3590 = vmatprep.mubr.f32.mxu0 0.0
    %3591 = vmatmul.mubr.f32.gmra.mrb[0].mxu0 %v1617
    %v3592 = vpop.f32.mrb[0].mxu0
    %v3593 = vadd.f32 0.0, %v3592
    %v3594 = vpop.f32.mrb[0].mxu0
    %3595 = vdwg.mxu0
    %v3596 = vsel %vm1604, %v3519, %v3588
    %v3597 = vsel %vm1604, %v3520, %v3593
    %3598 = vst.msk [vmem:[#allocation17] sm:$0xff] %vm670, %v3596
    %3599 = vst.msk [vmem:[#allocation17 + $0x8] sm:$0xff] %vm670, %v3597
    // Predicated region
    $region74: #{encoder_forward.1} parent=1 // pred_check
      _
    $region75: #{encoder_forward.1} parent=1 // pred_check_branch
      %3601 = sbr.rel (0) target = $region77
    $region76: #{encoder_forward.1} parent=1 // pred_region
      %s3603 = ssub.s32 256, 256
      %3604 = vsyncadd [#allocation5], %s3603
      %s3605 = sshll.u32 [#allocation17], 4
      %s3606 = int_to_ptr.vmem [resolvable:$true] %s3605
      %3611 = dma.vmem_to_hbm [thread:$0]  %s3606, 256, %s10, [#allocation5], 128, 128, 8
    $region77: #{encoder_forward.1} parent=1 // pred_fallthru
      _
    // Predicated region
    $region78: #{encoder_forward.1} parent=1 // pred_check
      _
    $region79: #{encoder_forward.1} parent=1 // pred_check_branch
      %3613 = sbr.rel (0) target = $region81
    $region80: #{encoder_forward.1} parent=1 // pred_region
      %3614 = dma.done [#allocation5], 256
    $region81: #{encoder_forward.1} parent=1 // pred_fallthru
      _
    %3615 = vsyncpa [#allocation4], 1
    %3616 = vsyncpa [#allocation7], 1
    %3617 = vsyncpa [#allocation10], 1
    %3618 = vsyncpa [#allocation13], 1
    %3619 = vsyncpa [#allocation16], 1
    %3620 = vsyncpa [#allocation5], 1

</llo_original>
